<compile_context>
chip_gen: v7x
topology: tpu7x:2x2x1
jax: 0.10.0
libtpu: 0.0.40
codegen_flags: <defaults>
</compile_context>

<pallas_src>
import functools

import jax
import jax.numpy as jnp
from jax.experimental import pallas as pl
from jax.experimental.pallas import tpu as pltpu

CHAR_EMBED = 50   # e_char, fixed by the module
KERNEL = 5        # Conv1d kernel size (standard a5 CNN)
PAD = 1           # Conv1d padding     (standard a5 CNN)


def _round_up(x, m):
    return ((x + m - 1) // m) * m


def char_cnn_highway_kernel(x_ref, wconv_ref, bconv_ref, whw_ref, bhw_ref, o_ref):
    """Fused per-tap conv + ReLU + max-over-time + Highway.

    x_ref     : (Wp, TN, Cp)  bf16  length-major, channel-padded activations
    wconv_ref : (K,  Cp, Op)  bf16  per-tap conv weights (zero-padded)
    bconv_ref : (1,  Op)      f32   conv bias (zero-padded)
    whw_ref   : (Op, 2*Op)    bf16  fused highway weight [proj | gate]
    bhw_ref   : (1,  2*Op)    f32   fused highway bias   [proj | gate]
    o_ref     : (TN, Op)      f32   word embeddings (lane-dense, zero-padded)
    """
    wp = x_ref.shape[0]
    k_taps = wconv_ref.shape[0]
    op = wconv_ref.shape[2]
    w_out = wp - k_taps + 1

    # --- conv (per-tap matmuls) + running max over time -----------------------
    # conv[t] = sum_k x[t+k] @ w[k]; bias/ReLU applied once after the max
    # (both monotone, so max-then-relu == relu-then-max).
    def conv_at(t):
        acc = jnp.dot(x_ref[t], wconv_ref[0], preferred_element_type=jnp.float32)
        for k in range(1, k_taps):
            acc = acc + jnp.dot(x_ref[t + k], wconv_ref[k],
                                preferred_element_type=jnp.float32)
        return acc                                             # (TN, Op) f32

    m = conv_at(0)
    for t in range(1, w_out):                                  # small static loop
        m = jnp.maximum(m, conv_at(t))
    conv_out = jnp.maximum(m + bconv_ref[...], 0.0)            # (TN, Op) f32

    # --- highway (proj and gate fused into one matmul) ------------------------
    hw = jnp.dot(conv_out.astype(whw_ref.dtype), whw_ref[...],
                 preferred_element_type=jnp.float32) + bhw_ref[...]   # (TN, 2*Op)
    proj = jnp.maximum(hw[:, :op], 0.0)
    gate = jax.nn.sigmoid(hw[:, op:])
    o_ref[...] = (gate * proj + (1.0 - gate) * conv_out).astype(o_ref.dtype)


def model_embeddings_forward(input_ids, emb_table,
                             wconv, bconv, wproj, bproj, wgate, bgate,
                             word_embed_size, tn=512):
    """input_ids: (L, B, W) int32 char indices -> (L, B, word_embed_size) f32."""
    L, B, W = input_ids.shape
    O = word_embed_size
    K, C = KERNEL, CHAR_EMBED
    N = L * B
    Wp = W + 2 * PAD

    # padded sizes: lane-dense output, channel pad to 64 (small, full-dim block)
    Op = _round_up(O, 128)                                   # e.g. 32 -> 128
    Cp = _round_up(C, 64)                                    # 50 -> 64

    # tile rows: multiple of 16 (bf16 sublane packing), big by default (mem-bound)
    TN = _round_up(min(tn, _round_up(N, 16)), 16)
    N_pad = _round_up(N, TN)
    # keep the grid >= 2 whenever possible so both v7x TensorCores get work
    if N_pad // TN < 2 and N > 16:
        TN = _round_up(pl.cdiv(N, 2), 16)
        N_pad = _round_up(N, TN)
    grid = (N_pad // TN,)

    # 1. embedding lookup (glue) -- cast to bf16 BEFORE any layout work so no
    #    large f32 intermediate is ever materialized
    x_char = jnp.take(emb_table.astype(jnp.bfloat16), input_ids, axis=0)  # (L,B,W,50)
    # 2. reproduce the reference's raw .reshape (NOT a transpose)
    x_resh = jnp.reshape(x_char, (-1, C, W))                  # (N, 50, W)
    # layout plumbing only: length-major, channels-last, zero-pad time/N/channels
    x_lm = jnp.transpose(x_resh, (2, 0, 1))                   # (W, N, 50)
    x_lm = jnp.pad(x_lm, ((PAD, PAD), (0, N_pad - N), (0, Cp - C)))  # (Wp,N_pad,Cp) bf16

    # parameter layout plumbing (PyTorch shapes -> kernel shapes)
    # conv weight (O, C, K) -> per-tap (K, Cp, Op), zero-padded
    w_taps = jnp.transpose(wconv, (2, 1, 0))                  # (K, C, O)
    w_taps = jnp.pad(w_taps, ((0, 0), (0, Cp - C), (0, Op - O))).astype(jnp.bfloat16)
    bconv_p = jnp.pad(bconv, (0, Op - O)).reshape(1, Op).astype(jnp.float32)
    # highway: fuse proj & gate into one (Op, 2*Op) weight / (1, 2*Op) bias
    w_hw = jnp.concatenate(
        [jnp.pad(wproj.T, ((0, Op - O), (0, Op - O))),
         jnp.pad(wgate.T, ((0, Op - O), (0, Op - O)))], axis=1).astype(jnp.bfloat16)
    b_hw = jnp.concatenate(
        [jnp.pad(bproj, (0, Op - O)),
         jnp.pad(bgate, (0, Op - O))]).reshape(1, 2 * Op).astype(jnp.float32)

    out = pl.pallas_call(
        char_cnn_highway_kernel,
        out_shape=jax.ShapeDtypeStruct((N_pad, Op), jnp.float32),
        grid_spec=pltpu.PrefetchScalarGridSpec(
            num_scalar_prefetch=0,
            grid=grid,
            in_specs=[
                pl.BlockSpec((Wp, TN, Cp), lambda i: (0, i, 0)),
                pl.BlockSpec((K, Cp, Op), lambda i: (0, 0, 0)),
                pl.BlockSpec((1, Op), lambda i: (0, 0)),
                pl.BlockSpec((Op, 2 * Op), lambda i: (0, 0)),
                pl.BlockSpec((1, 2 * Op), lambda i: (0, 0)),
            ],
            out_specs=pl.BlockSpec((TN, Op), lambda i: (i, 0)),
        ),
        compiler_params=pltpu.CompilerParams(
            dimension_semantics=("parallel",),
            vmem_limit_bytes=32 * 1024 * 1024),
    )(x_lm, w_taps, bconv_p, w_hw, b_hw)

    # 5. dropout: eval-mode identity
    # TODO(synk): training-mode dropout (Bernoulli mask via pltpu.prng_*) omitted;
    #             reference semantics reproduced in eval mode.
    return out[:N, :O].reshape(L, B, O)


def _reference(input_ids, emb_table, wconv, bconv, wproj, bproj, wgate, bgate, O):
    """Independent pure-JAX (f32) reference of the same forward pass."""
    L, B, W = input_ids.shape
    x_char = jnp.take(emb_table, input_ids, axis=0)           # (L, B, W, 50)
    x_resh = x_char.reshape(-1, CHAR_EMBED, W)                # raw reshape (PyTorch)
    x = jnp.pad(x_resh, ((0, 0), (0, 0), (PAD, PAD)))         # (N, C, Wp)
    conv = jax.lax.conv_general_dilated(
        x, wconv, window_strides=(1,), padding="VALID",
        dimension_numbers=("NCH", "OIH", "NCH")) + bconv[None, :, None]
    conv_out = jnp.max(jax.nn.relu(conv), axis=-1)            # (N, O)
    proj = jax.nn.relu(conv_out @ wproj.T + bproj)
    gate = jax.nn.sigmoid(conv_out @ wgate.T + bgate)
    hw = gate * proj + (1.0 - gate) * conv_out
    return hw.reshape(L, B, O)


if __name__ == "__main__":
    # small shapes consistent with the module
    L, B, W = 8, 4, 12         # sentence_length, batch_size, max_word_length
    VOCAB_CHARS = 30           # len(vocab.char2id)
    WORD_EMBED = 32            # word_embed_size
    PAD_IDX = 0                # vocab.char2id['<pad>']

    key = jax.random.PRNGKey(0)
    k_in, k_emb, k_wc, k_bc, k_wp, k_bp, k_wg, k_bg = jax.random.split(key, 8)

    input_ids = jax.random.randint(k_in, (L, B, W), 0, VOCAB_CHARS, dtype=jnp.int32)

    emb_table = 0.1 * jax.random.normal(k_emb, (VOCAB_CHARS, CHAR_EMBED), jnp.float32)
    emb_table = emb_table.at[PAD_IDX].set(0.0)                # padding_idx row = 0

    # nn.Conv1d(50, WORD_EMBED, kernel_size=5) weight: (O, C, K), bias: (O,)
    wconv = 0.1 * jax.random.normal(k_wc, (WORD_EMBED, CHAR_EMBED, KERNEL), jnp.float32)
    bconv = 0.1 * jax.random.normal(k_bc, (WORD_EMBED,), jnp.float32)
    # Highway nn.Linear(O, O) weights: (O, O), biases: (O,)
    wproj = 0.1 * jax.random.normal(k_wp, (WORD_EMBED, WORD_EMBED), jnp.float32)
    bproj = 0.1 * jax.random.normal(k_bp, (WORD_EMBED,), jnp.float32)
    wgate = 0.1 * jax.random.normal(k_wg, (WORD_EMBED, WORD_EMBED), jnp.float32)
    bgate = 0.1 * jax.random.normal(k_bg, (WORD_EMBED,), jnp.float32)

    # default tn=512; at this demo size (N=32) the tiling logic picks TN=16 so
    # grid=(2,) and the pipelined / megacore-parallel path is exercised
    fwd = jax.jit(functools.partial(model_embeddings_forward,
                                    word_embed_size=WORD_EMBED))
    out = fwd(input_ids, emb_table, wconv, bconv, wproj, bproj, wgate, bgate)
    out = jax.block_until_ready(out)
    assert out.shape == (L, B, WORD_EMBED) and out.dtype == jnp.float32

    # correctness check vs an independent f32 reference (bf16 MXU operands ->
    # small numeric delta, hence the loosened tolerance)
    ref = _reference(input_ids, emb_table, wconv, bconv, wproj, bproj,
                     wgate, bgate, WORD_EMBED)
    assert jnp.allclose(out, ref, atol=2e-2, rtol=2e-2), \
        float(jnp.max(jnp.abs(out - ref)))

    print("KERNEL_OK")
</pallas_src>

<mosaic_0001>
module attributes {stable_mosaic.version = 11 : i64} {
  func.func @char_cnn_highway_kernel(%arg0: i32, %arg1: memref<14x16x64xbf16, #tpu.memory_space<vmem>>, %arg2: memref<5x64x128xbf16, #tpu.memory_space<vmem>>, %arg3: memref<1x128xf32, #tpu.memory_space<vmem>>, %arg4: memref<128x256xbf16, #tpu.memory_space<vmem>>, %arg5: memref<1x256xf32, #tpu.memory_space<vmem>>, %arg6: memref<16x128xf32, #tpu.memory_space<vmem>>) attributes {dimension_semantics = [#tpu.dimension_semantics<parallel>], iteration_bounds = array<i64: 2>, scalar_prefetch = 0 : i64, scratch_operands = 0 : i64, tpu.core_type = #tpu.core_type<tc>, window_params = [{transform_indices = @transform_0, window_bounds = array<i64: 14, 16, 64>}, {pipeline_mode = #tpu.pipeline_mode<synchronous>, transform_indices = @transform_1, window_bounds = array<i64: 5, 64, 128>}, {pipeline_mode = #tpu.pipeline_mode<synchronous>, transform_indices = @transform_2, window_bounds = array<i64: 1, 128>}, {pipeline_mode = #tpu.pipeline_mode<synchronous>, transform_indices = @transform_3, window_bounds = array<i64: 128, 256>}, {pipeline_mode = #tpu.pipeline_mode<synchronous>, transform_indices = @transform_4, window_bounds = array<i64: 1, 256>}, {transform_indices = @transform_5, window_bounds = array<i64: 16, 128>}]} {
    %c0 = arith.constant 0 : index
    %c0_0 = arith.constant 0 : index
    %c0_1 = arith.constant 0 : index
    %0 = vector.load %arg1[%c0, %c0_0, %c0_1] : memref<14x16x64xbf16, #tpu.memory_space<vmem>>, vector<1x16x64xbf16>
    %1 = vector.shape_cast %0 : vector<1x16x64xbf16> to vector<16x64xbf16>
    %c0_2 = arith.constant 0 : index
    %c0_3 = arith.constant 0 : index
    %c0_4 = arith.constant 0 : index
    %2 = vector.load %arg2[%c0_2, %c0_3, %c0_4] : memref<5x64x128xbf16, #tpu.memory_space<vmem>>, vector<1x64x128xbf16>
    %3 = vector.shape_cast %2 : vector<1x64x128xbf16> to vector<64x128xbf16>
    %cst = arith.constant dense<0.000000e+00> : vector<16x128xf32>
    %4 = tpu.matmul %1, %3, %cst {dimension_numbers = #tpu.dot_dimension_numbers<[1], [0], [0], [1], [0, 0, 1, 1], [], []>} : vector<16x64xbf16>, vector<64x128xbf16>, vector<16x128xf32> -> vector<16x128xf32>
    %c1 = arith.constant 1 : index
    %c0_5 = arith.constant 0 : index
    %c0_6 = arith.constant 0 : index
    %5 = vector.load %arg1[%c1, %c0_5, %c0_6] : memref<14x16x64xbf16, #tpu.memory_space<vmem>>, vector<1x16x64xbf16>
    %6 = vector.shape_cast %5 : vector<1x16x64xbf16> to vector<16x64xbf16>
    %c1_7 = arith.constant 1 : index
    %c0_8 = arith.constant 0 : index
    %c0_9 = arith.constant 0 : index
    %7 = vector.load %arg2[%c1_7, %c0_8, %c0_9] : memref<5x64x128xbf16, #tpu.memory_space<vmem>>, vector<1x64x128xbf16>
    %8 = vector.shape_cast %7 : vector<1x64x128xbf16> to vector<64x128xbf16>
    %cst_10 = arith.constant dense<0.000000e+00> : vector<16x128xf32>
    %9 = tpu.matmul %6, %8, %cst_10 {dimension_numbers = #tpu.dot_dimension_numbers<[1], [0], [0], [1], [0, 0, 1, 1], [], []>} : vector<16x64xbf16>, vector<64x128xbf16>, vector<16x128xf32> -> vector<16x128xf32>
    %10 = arith.addf %4, %9 : vector<16x128xf32>
    %c2 = arith.constant 2 : index
    %c0_11 = arith.constant 0 : index
    %c0_12 = arith.constant 0 : index
    %11 = vector.load %arg1[%c2, %c0_11, %c0_12] : memref<14x16x64xbf16, #tpu.memory_space<vmem>>, vector<1x16x64xbf16>
    %12 = vector.shape_cast %11 : vector<1x16x64xbf16> to vector<16x64xbf16>
    %c2_13 = arith.constant 2 : index
    %c0_14 = arith.constant 0 : index
    %c0_15 = arith.constant 0 : index
    %13 = vector.load %arg2[%c2_13, %c0_14, %c0_15] : memref<5x64x128xbf16, #tpu.memory_space<vmem>>, vector<1x64x128xbf16>
    %14 = vector.shape_cast %13 : vector<1x64x128xbf16> to vector<64x128xbf16>
    %cst_16 = arith.constant dense<0.000000e+00> : vector<16x128xf32>
    %15 = tpu.matmul %12, %14, %cst_16 {dimension_numbers = #tpu.dot_dimension_numbers<[1], [0], [0], [1], [0, 0, 1, 1], [], []>} : vector<16x64xbf16>, vector<64x128xbf16>, vector<16x128xf32> -> vector<16x128xf32>
    %16 = arith.addf %10, %15 : vector<16x128xf32>
    %c3 = arith.constant 3 : index
    %c0_17 = arith.constant 0 : index
    %c0_18 = arith.constant 0 : index
    %17 = vector.load %arg1[%c3, %c0_17, %c0_18] : memref<14x16x64xbf16, #tpu.memory_space<vmem>>, vector<1x16x64xbf16>
    %18 = vector.shape_cast %17 : vector<1x16x64xbf16> to vector<16x64xbf16>
    %c3_19 = arith.constant 3 : index
    %c0_20 = arith.constant 0 : index
    %c0_21 = arith.constant 0 : index
    %19 = vector.load %arg2[%c3_19, %c0_20, %c0_21] : memref<5x64x128xbf16, #tpu.memory_space<vmem>>, vector<1x64x128xbf16>
    %20 = vector.shape_cast %19 : vector<1x64x128xbf16> to vector<64x128xbf16>
    %cst_22 = arith.constant dense<0.000000e+00> : vector<16x128xf32>
    %21 = tpu.matmul %18, %20, %cst_22 {dimension_numbers = #tpu.dot_dimension_numbers<[1], [0], [0], [1], [0, 0, 1, 1], [], []>} : vector<16x64xbf16>, vector<64x128xbf16>, vector<16x128xf32> -> vector<16x128xf32>
    %22 = arith.addf %16, %21 : vector<16x128xf32>
    %c4 = arith.constant 4 : index
    %c0_23 = arith.constant 0 : index
    %c0_24 = arith.constant 0 : index
    %23 = vector.load %arg1[%c4, %c0_23, %c0_24] : memref<14x16x64xbf16, #tpu.memory_space<vmem>>, vector<1x16x64xbf16>
    %24 = vector.shape_cast %23 : vector<1x16x64xbf16> to vector<16x64xbf16>
    %c4_25 = arith.constant 4 : index
    %c0_26 = arith.constant 0 : index
    %c0_27 = arith.constant 0 : index
    %25 = vector.load %arg2[%c4_25, %c0_26, %c0_27] : memref<5x64x128xbf16, #tpu.memory_space<vmem>>, vector<1x64x128xbf16>
    %26 = vector.shape_cast %25 : vector<1x64x128xbf16> to vector<64x128xbf16>
    %cst_28 = arith.constant dense<0.000000e+00> : vector<16x128xf32>
    %27 = tpu.matmul %24, %26, %cst_28 {dimension_numbers = #tpu.dot_dimension_numbers<[1], [0], [0], [1], [0, 0, 1, 1], [], []>} : vector<16x64xbf16>, vector<64x128xbf16>, vector<16x128xf32> -> vector<16x128xf32>
    %28 = arith.addf %22, %27 : vector<16x128xf32>
    %c1_29 = arith.constant 1 : index
    %c0_30 = arith.constant 0 : index
    %c0_31 = arith.constant 0 : index
    %29 = vector.load %arg1[%c1_29, %c0_30, %c0_31] : memref<14x16x64xbf16, #tpu.memory_space<vmem>>, vector<1x16x64xbf16>
    %30 = vector.shape_cast %29 : vector<1x16x64xbf16> to vector<16x64xbf16>
    %c0_32 = arith.constant 0 : index
    %c0_33 = arith.constant 0 : index
    %c0_34 = arith.constant 0 : index
    %31 = vector.load %arg2[%c0_32, %c0_33, %c0_34] : memref<5x64x128xbf16, #tpu.memory_space<vmem>>, vector<1x64x128xbf16>
    %32 = vector.shape_cast %31 : vector<1x64x128xbf16> to vector<64x128xbf16>
    %cst_35 = arith.constant dense<0.000000e+00> : vector<16x128xf32>
    %33 = tpu.matmul %30, %32, %cst_35 {dimension_numbers = #tpu.dot_dimension_numbers<[1], [0], [0], [1], [0, 0, 1, 1], [], []>} : vector<16x64xbf16>, vector<64x128xbf16>, vector<16x128xf32> -> vector<16x128xf32>
    %c2_36 = arith.constant 2 : index
    %c0_37 = arith.constant 0 : index
    %c0_38 = arith.constant 0 : index
    %34 = vector.load %arg1[%c2_36, %c0_37, %c0_38] : memref<14x16x64xbf16, #tpu.memory_space<vmem>>, vector<1x16x64xbf16>
    %35 = vector.shape_cast %34 : vector<1x16x64xbf16> to vector<16x64xbf16>
    %c1_39 = arith.constant 1 : index
    %c0_40 = arith.constant 0 : index
    %c0_41 = arith.constant 0 : index
    %36 = vector.load %arg2[%c1_39, %c0_40, %c0_41] : memref<5x64x128xbf16, #tpu.memory_space<vmem>>, vector<1x64x128xbf16>
    %37 = vector.shape_cast %36 : vector<1x64x128xbf16> to vector<64x128xbf16>
    %cst_42 = arith.constant dense<0.000000e+00> : vector<16x128xf32>
    %38 = tpu.matmul %35, %37, %cst_42 {dimension_numbers = #tpu.dot_dimension_numbers<[1], [0], [0], [1], [0, 0, 1, 1], [], []>} : vector<16x64xbf16>, vector<64x128xbf16>, vector<16x128xf32> -> vector<16x128xf32>
    %39 = arith.addf %33, %38 : vector<16x128xf32>
    %c3_43 = arith.constant 3 : index
    %c0_44 = arith.constant 0 : index
    %c0_45 = arith.constant 0 : index
    %40 = vector.load %arg1[%c3_43, %c0_44, %c0_45] : memref<14x16x64xbf16, #tpu.memory_space<vmem>>, vector<1x16x64xbf16>
    %41 = vector.shape_cast %40 : vector<1x16x64xbf16> to vector<16x64xbf16>
    %c2_46 = arith.constant 2 : index
    %c0_47 = arith.constant 0 : index
    %c0_48 = arith.constant 0 : index
    %42 = vector.load %arg2[%c2_46, %c0_47, %c0_48] : memref<5x64x128xbf16, #tpu.memory_space<vmem>>, vector<1x64x128xbf16>
    %43 = vector.shape_cast %42 : vector<1x64x128xbf16> to vector<64x128xbf16>
    %cst_49 = arith.constant dense<0.000000e+00> : vector<16x128xf32>
    %44 = tpu.matmul %41, %43, %cst_49 {dimension_numbers = #tpu.dot_dimension_numbers<[1], [0], [0], [1], [0, 0, 1, 1], [], []>} : vector<16x64xbf16>, vector<64x128xbf16>, vector<16x128xf32> -> vector<16x128xf32>
    %45 = arith.addf %39, %44 : vector<16x128xf32>
    %c4_50 = arith.constant 4 : index
    %c0_51 = arith.constant 0 : index
    %c0_52 = arith.constant 0 : index
    %46 = vector.load %arg1[%c4_50, %c0_51, %c0_52] : memref<14x16x64xbf16, #tpu.memory_space<vmem>>, vector<1x16x64xbf16>
    %47 = vector.shape_cast %46 : vector<1x16x64xbf16> to vector<16x64xbf16>
    %c3_53 = arith.constant 3 : index
    %c0_54 = arith.constant 0 : index
    %c0_55 = arith.constant 0 : index
    %48 = vector.load %arg2[%c3_53, %c0_54, %c0_55] : memref<5x64x128xbf16, #tpu.memory_space<vmem>>, vector<1x64x128xbf16>
    %49 = vector.shape_cast %48 : vector<1x64x128xbf16> to vector<64x128xbf16>
    %cst_56 = arith.constant dense<0.000000e+00> : vector<16x128xf32>
    %50 = tpu.matmul %47, %49, %cst_56 {dimension_numbers = #tpu.dot_dimension_numbers<[1], [0], [0], [1], [0, 0, 1, 1], [], []>} : vector<16x64xbf16>, vector<64x128xbf16>, vector<16x128xf32> -> vector<16x128xf32>
    %51 = arith.addf %45, %50 : vector<16x128xf32>
    %c5 = arith.constant 5 : index
    %c0_57 = arith.constant 0 : index
    %c0_58 = arith.constant 0 : index
    %52 = vector.load %arg1[%c5, %c0_57, %c0_58] : memref<14x16x64xbf16, #tpu.memory_space<vmem>>, vector<1x16x64xbf16>
    %53 = vector.shape_cast %52 : vector<1x16x64xbf16> to vector<16x64xbf16>
    %c4_59 = arith.constant 4 : index
    %c0_60 = arith.constant 0 : index
    %c0_61 = arith.constant 0 : index
    %54 = vector.load %arg2[%c4_59, %c0_60, %c0_61] : memref<5x64x128xbf16, #tpu.memory_space<vmem>>, vector<1x64x128xbf16>
    %55 = vector.shape_cast %54 : vector<1x64x128xbf16> to vector<64x128xbf16>
    %cst_62 = arith.constant dense<0.000000e+00> : vector<16x128xf32>
    %56 = tpu.matmul %53, %55, %cst_62 {dimension_numbers = #tpu.dot_dimension_numbers<[1], [0], [0], [1], [0, 0, 1, 1], [], []>} : vector<16x64xbf16>, vector<64x128xbf16>, vector<16x128xf32> -> vector<16x128xf32>
    %57 = arith.addf %51, %56 : vector<16x128xf32>
    %58 = arith.maximumf %28, %57 : vector<16x128xf32>
    %c2_63 = arith.constant 2 : index
    %c0_64 = arith.constant 0 : index
    %c0_65 = arith.constant 0 : index
    %59 = vector.load %arg1[%c2_63, %c0_64, %c0_65] : memref<14x16x64xbf16, #tpu.memory_space<vmem>>, vector<1x16x64xbf16>
    %60 = vector.shape_cast %59 : vector<1x16x64xbf16> to vector<16x64xbf16>
    %c0_66 = arith.constant 0 : index
    %c0_67 = arith.constant 0 : index
    %c0_68 = arith.constant 0 : index
    %61 = vector.load %arg2[%c0_66, %c0_67, %c0_68] : memref<5x64x128xbf16, #tpu.memory_space<vmem>>, vector<1x64x128xbf16>
    %62 = vector.shape_cast %61 : vector<1x64x128xbf16> to vector<64x128xbf16>
    %cst_69 = arith.constant dense<0.000000e+00> : vector<16x128xf32>
    %63 = tpu.matmul %60, %62, %cst_69 {dimension_numbers = #tpu.dot_dimension_numbers<[1], [0], [0], [1], [0, 0, 1, 1], [], []>} : vector<16x64xbf16>, vector<64x128xbf16>, vector<16x128xf32> -> vector<16x128xf32>
    %c3_70 = arith.constant 3 : index
    %c0_71 = arith.constant 0 : index
    %c0_72 = arith.constant 0 : index
    %64 = vector.load %arg1[%c3_70, %c0_71, %c0_72] : memref<14x16x64xbf16, #tpu.memory_space<vmem>>, vector<1x16x64xbf16>
    %65 = vector.shape_cast %64 : vector<1x16x64xbf16> to vector<16x64xbf16>
    %c1_73 = arith.constant 1 : index
    %c0_74 = arith.constant 0 : index
    %c0_75 = arith.constant 0 : index
    %66 = vector.load %arg2[%c1_73, %c0_74, %c0_75] : memref<5x64x128xbf16, #tpu.memory_space<vmem>>, vector<1x64x128xbf16>
    %67 = vector.shape_cast %66 : vector<1x64x128xbf16> to vector<64x128xbf16>
    %cst_76 = arith.constant dense<0.000000e+00> : vector<16x128xf32>
    %68 = tpu.matmul %65, %67, %cst_76 {dimension_numbers = #tpu.dot_dimension_numbers<[1], [0], [0], [1], [0, 0, 1, 1], [], []>} : vector<16x64xbf16>, vector<64x128xbf16>, vector<16x128xf32> -> vector<16x128xf32>
    %69 = arith.addf %63, %68 : vector<16x128xf32>
    %c4_77 = arith.constant 4 : index
    %c0_78 = arith.constant 0 : index
    %c0_79 = arith.constant 0 : index
    %70 = vector.load %arg1[%c4_77, %c0_78, %c0_79] : memref<14x16x64xbf16, #tpu.memory_space<vmem>>, vector<1x16x64xbf16>
    %71 = vector.shape_cast %70 : vector<1x16x64xbf16> to vector<16x64xbf16>
    %c2_80 = arith.constant 2 : index
    %c0_81 = arith.constant 0 : index
    %c0_82 = arith.constant 0 : index
    %72 = vector.load %arg2[%c2_80, %c0_81, %c0_82] : memref<5x64x128xbf16, #tpu.memory_space<vmem>>, vector<1x64x128xbf16>
    %73 = vector.shape_cast %72 : vector<1x64x128xbf16> to vector<64x128xbf16>
    %cst_83 = arith.constant dense<0.000000e+00> : vector<16x128xf32>
    %74 = tpu.matmul %71, %73, %cst_83 {dimension_numbers = #tpu.dot_dimension_numbers<[1], [0], [0], [1], [0, 0, 1, 1], [], []>} : vector<16x64xbf16>, vector<64x128xbf16>, vector<16x128xf32> -> vector<16x128xf32>
    %75 = arith.addf %69, %74 : vector<16x128xf32>
    %c5_84 = arith.constant 5 : index
    %c0_85 = arith.constant 0 : index
    %c0_86 = arith.constant 0 : index
    %76 = vector.load %arg1[%c5_84, %c0_85, %c0_86] : memref<14x16x64xbf16, #tpu.memory_space<vmem>>, vector<1x16x64xbf16>
    %77 = vector.shape_cast %76 : vector<1x16x64xbf16> to vector<16x64xbf16>
    %c3_87 = arith.constant 3 : index
    %c0_88 = arith.constant 0 : index
    %c0_89 = arith.constant 0 : index
    %78 = vector.load %arg2[%c3_87, %c0_88, %c0_89] : memref<5x64x128xbf16, #tpu.memory_space<vmem>>, vector<1x64x128xbf16>
    %79 = vector.shape_cast %78 : vector<1x64x128xbf16> to vector<64x128xbf16>
    %cst_90 = arith.constant dense<0.000000e+00> : vector<16x128xf32>
    %80 = tpu.matmul %77, %79, %cst_90 {dimension_numbers = #tpu.dot_dimension_numbers<[1], [0], [0], [1], [0, 0, 1, 1], [], []>} : vector<16x64xbf16>, vector<64x128xbf16>, vector<16x128xf32> -> vector<16x128xf32>
    %81 = arith.addf %75, %80 : vector<16x128xf32>
    %c6 = arith.constant 6 : index
    %c0_91 = arith.constant 0 : index
    %c0_92 = arith.constant 0 : index
    %82 = vector.load %arg1[%c6, %c0_91, %c0_92] : memref<14x16x64xbf16, #tpu.memory_space<vmem>>, vector<1x16x64xbf16>
    %83 = vector.shape_cast %82 : vector<1x16x64xbf16> to vector<16x64xbf16>
    %c4_93 = arith.constant 4 : index
    %c0_94 = arith.constant 0 : index
    %c0_95 = arith.constant 0 : index
    %84 = vector.load %arg2[%c4_93, %c0_94, %c0_95] : memref<5x64x128xbf16, #tpu.memory_space<vmem>>, vector<1x64x128xbf16>
    %85 = vector.shape_cast %84 : vector<1x64x128xbf16> to vector<64x128xbf16>
    %cst_96 = arith.constant dense<0.000000e+00> : vector<16x128xf32>
    %86 = tpu.matmul %83, %85, %cst_96 {dimension_numbers = #tpu.dot_dimension_numbers<[1], [0], [0], [1], [0, 0, 1, 1], [], []>} : vector<16x64xbf16>, vector<64x128xbf16>, vector<16x128xf32> -> vector<16x128xf32>
    %87 = arith.addf %81, %86 : vector<16x128xf32>
    %88 = arith.maximumf %58, %87 : vector<16x128xf32>
    %c3_97 = arith.constant 3 : index
    %c0_98 = arith.constant 0 : index
    %c0_99 = arith.constant 0 : index
    %89 = vector.load %arg1[%c3_97, %c0_98, %c0_99] : memref<14x16x64xbf16, #tpu.memory_space<vmem>>, vector<1x16x64xbf16>
    %90 = vector.shape_cast %89 : vector<1x16x64xbf16> to vector<16x64xbf16>
    %c0_100 = arith.constant 0 : index
    %c0_101 = arith.constant 0 : index
    %c0_102 = arith.constant 0 : index
    %91 = vector.load %arg2[%c0_100, %c0_101, %c0_102] : memref<5x64x128xbf16, #tpu.memory_space<vmem>>, vector<1x64x128xbf16>
    %92 = vector.shape_cast %91 : vector<1x64x128xbf16> to vector<64x128xbf16>
    %cst_103 = arith.constant dense<0.000000e+00> : vector<16x128xf32>
    %93 = tpu.matmul %90, %92, %cst_103 {dimension_numbers = #tpu.dot_dimension_numbers<[1], [0], [0], [1], [0, 0, 1, 1], [], []>} : vector<16x64xbf16>, vector<64x128xbf16>, vector<16x128xf32> -> vector<16x128xf32>
    %c4_104 = arith.constant 4 : index
    %c0_105 = arith.constant 0 : index
    %c0_106 = arith.constant 0 : index
    %94 = vector.load %arg1[%c4_104, %c0_105, %c0_106] : memref<14x16x64xbf16, #tpu.memory_space<vmem>>, vector<1x16x64xbf16>
    %95 = vector.shape_cast %94 : vector<1x16x64xbf16> to vector<16x64xbf16>
    %c1_107 = arith.constant 1 : index
    %c0_108 = arith.constant 0 : index
    %c0_109 = arith.constant 0 : index
    %96 = vector.load %arg2[%c1_107, %c0_108, %c0_109] : memref<5x64x128xbf16, #tpu.memory_space<vmem>>, vector<1x64x128xbf16>
    %97 = vector.shape_cast %96 : vector<1x64x128xbf16> to vector<64x128xbf16>
    %cst_110 = arith.constant dense<0.000000e+00> : vector<16x128xf32>
    %98 = tpu.matmul %95, %97, %cst_110 {dimension_numbers = #tpu.dot_dimension_numbers<[1], [0], [0], [1], [0, 0, 1, 1], [], []>} : vector<16x64xbf16>, vector<64x128xbf16>, vector<16x128xf32> -> vector<16x128xf32>
    %99 = arith.addf %93, %98 : vector<16x128xf32>
    %c5_111 = arith.constant 5 : index
    %c0_112 = arith.constant 0 : index
    %c0_113 = arith.constant 0 : index
    %100 = vector.load %arg1[%c5_111, %c0_112, %c0_113] : memref<14x16x64xbf16, #tpu.memory_space<vmem>>, vector<1x16x64xbf16>
    %101 = vector.shape_cast %100 : vector<1x16x64xbf16> to vector<16x64xbf16>
    %c2_114 = arith.constant 2 : index
    %c0_115 = arith.constant 0 : index
    %c0_116 = arith.constant 0 : index
    %102 = vector.load %arg2[%c2_114, %c0_115, %c0_116] : memref<5x64x128xbf16, #tpu.memory_space<vmem>>, vector<1x64x128xbf16>
    %103 = vector.shape_cast %102 : vector<1x64x128xbf16> to vector<64x128xbf16>
    %cst_117 = arith.constant dense<0.000000e+00> : vector<16x128xf32>
    %104 = tpu.matmul %101, %103, %cst_117 {dimension_numbers = #tpu.dot_dimension_numbers<[1], [0], [0], [1], [0, 0, 1, 1], [], []>} : vector<16x64xbf16>, vector<64x128xbf16>, vector<16x128xf32> -> vector<16x128xf32>
    %105 = arith.addf %99, %104 : vector<16x128xf32>
    %c6_118 = arith.constant 6 : index
    %c0_119 = arith.constant 0 : index
    %c0_120 = arith.constant 0 : index
    %106 = vector.load %arg1[%c6_118, %c0_119, %c0_120] : memref<14x16x64xbf16, #tpu.memory_space<vmem>>, vector<1x16x64xbf16>
    %107 = vector.shape_cast %106 : vector<1x16x64xbf16> to vector<16x64xbf16>
    %c3_121 = arith.constant 3 : index
    %c0_122 = arith.constant 0 : index
    %c0_123 = arith.constant 0 : index
    %108 = vector.load %arg2[%c3_121, %c0_122, %c0_123] : memref<5x64x128xbf16, #tpu.memory_space<vmem>>, vector<1x64x128xbf16>
    %109 = vector.shape_cast %108 : vector<1x64x128xbf16> to vector<64x128xbf16>
    %cst_124 = arith.constant dense<0.000000e+00> : vector<16x128xf32>
    %110 = tpu.matmul %107, %109, %cst_124 {dimension_numbers = #tpu.dot_dimension_numbers<[1], [0], [0], [1], [0, 0, 1, 1], [], []>} : vector<16x64xbf16>, vector<64x128xbf16>, vector<16x128xf32> -> vector<16x128xf32>
    %111 = arith.addf %105, %110 : vector<16x128xf32>
    %c7 = arith.constant 7 : index
    %c0_125 = arith.constant 0 : index
    %c0_126 = arith.constant 0 : index
    %112 = vector.load %arg1[%c7, %c0_125, %c0_126] : memref<14x16x64xbf16, #tpu.memory_space<vmem>>, vector<1x16x64xbf16>
    %113 = vector.shape_cast %112 : vector<1x16x64xbf16> to vector<16x64xbf16>
    %c4_127 = arith.constant 4 : index
    %c0_128 = arith.constant 0 : index
    %c0_129 = arith.constant 0 : index
    %114 = vector.load %arg2[%c4_127, %c0_128, %c0_129] : memref<5x64x128xbf16, #tpu.memory_space<vmem>>, vector<1x64x128xbf16>
    %115 = vector.shape_cast %114 : vector<1x64x128xbf16> to vector<64x128xbf16>
    %cst_130 = arith.constant dense<0.000000e+00> : vector<16x128xf32>
    %116 = tpu.matmul %113, %115, %cst_130 {dimension_numbers = #tpu.dot_dimension_numbers<[1], [0], [0], [1], [0, 0, 1, 1], [], []>} : vector<16x64xbf16>, vector<64x128xbf16>, vector<16x128xf32> -> vector<16x128xf32>
    %117 = arith.addf %111, %116 : vector<16x128xf32>
    %118 = arith.maximumf %88, %117 : vector<16x128xf32>
    %c4_131 = arith.constant 4 : index
    %c0_132 = arith.constant 0 : index
    %c0_133 = arith.constant 0 : index
    %119 = vector.load %arg1[%c4_131, %c0_132, %c0_133] : memref<14x16x64xbf16, #tpu.memory_space<vmem>>, vector<1x16x64xbf16>
    %120 = vector.shape_cast %119 : vector<1x16x64xbf16> to vector<16x64xbf16>
    %c0_134 = arith.constant 0 : index
    %c0_135 = arith.constant 0 : index
    %c0_136 = arith.constant 0 : index
    %121 = vector.load %arg2[%c0_134, %c0_135, %c0_136] : memref<5x64x128xbf16, #tpu.memory_space<vmem>>, vector<1x64x128xbf16>
    %122 = vector.shape_cast %121 : vector<1x64x128xbf16> to vector<64x128xbf16>
    %cst_137 = arith.constant dense<0.000000e+00> : vector<16x128xf32>
    %123 = tpu.matmul %120, %122, %cst_137 {dimension_numbers = #tpu.dot_dimension_numbers<[1], [0], [0], [1], [0, 0, 1, 1], [], []>} : vector<16x64xbf16>, vector<64x128xbf16>, vector<16x128xf32> -> vector<16x128xf32>
    %c5_138 = arith.constant 5 : index
    %c0_139 = arith.constant 0 : index
    %c0_140 = arith.constant 0 : index
    %124 = vector.load %arg1[%c5_138, %c0_139, %c0_140] : memref<14x16x64xbf16, #tpu.memory_space<vmem>>, vector<1x16x64xbf16>
    %125 = vector.shape_cast %124 : vector<1x16x64xbf16> to vector<16x64xbf16>
    %c1_141 = arith.constant 1 : index
    %c0_142 = arith.constant 0 : index
    %c0_143 = arith.constant 0 : index
    %126 = vector.load %arg2[%c1_141, %c0_142, %c0_143] : memref<5x64x128xbf16, #tpu.memory_space<vmem>>, vector<1x64x128xbf16>
    %127 = vector.shape_cast %126 : vector<1x64x128xbf16> to vector<64x128xbf16>
    %cst_144 = arith.constant dense<0.000000e+00> : vector<16x128xf32>
    %128 = tpu.matmul %125, %127, %cst_144 {dimension_numbers = #tpu.dot_dimension_numbers<[1], [0], [0], [1], [0, 0, 1, 1], [], []>} : vector<16x64xbf16>, vector<64x128xbf16>, vector<16x128xf32> -> vector<16x128xf32>
    %129 = arith.addf %123, %128 : vector<16x128xf32>
    %c6_145 = arith.constant 6 : index
    %c0_146 = arith.constant 0 : index
    %c0_147 = arith.constant 0 : index
    %130 = vector.load %arg1[%c6_145, %c0_146, %c0_147] : memref<14x16x64xbf16, #tpu.memory_space<vmem>>, vector<1x16x64xbf16>
    %131 = vector.shape_cast %130 : vector<1x16x64xbf16> to vector<16x64xbf16>
    %c2_148 = arith.constant 2 : index
    %c0_149 = arith.constant 0 : index
    %c0_150 = arith.constant 0 : index
    %132 = vector.load %arg2[%c2_148, %c0_149, %c0_150] : memref<5x64x128xbf16, #tpu.memory_space<vmem>>, vector<1x64x128xbf16>
    %133 = vector.shape_cast %132 : vector<1x64x128xbf16> to vector<64x128xbf16>
    %cst_151 = arith.constant dense<0.000000e+00> : vector<16x128xf32>
    %134 = tpu.matmul %131, %133, %cst_151 {dimension_numbers = #tpu.dot_dimension_numbers<[1], [0], [0], [1], [0, 0, 1, 1], [], []>} : vector<16x64xbf16>, vector<64x128xbf16>, vector<16x128xf32> -> vector<16x128xf32>
    %135 = arith.addf %129, %134 : vector<16x128xf32>
    %c7_152 = arith.constant 7 : index
    %c0_153 = arith.constant 0 : index
    %c0_154 = arith.constant 0 : index
    %136 = vector.load %arg1[%c7_152, %c0_153, %c0_154] : memref<14x16x64xbf16, #tpu.memory_space<vmem>>, vector<1x16x64xbf16>
    %137 = vector.shape_cast %136 : vector<1x16x64xbf16> to vector<16x64xbf16>
    %c3_155 = arith.constant 3 : index
    %c0_156 = arith.constant 0 : index
    %c0_157 = arith.constant 0 : index
    %138 = vector.load %arg2[%c3_155, %c0_156, %c0_157] : memref<5x64x128xbf16, #tpu.memory_space<vmem>>, vector<1x64x128xbf16>
    %139 = vector.shape_cast %138 : vector<1x64x128xbf16> to vector<64x128xbf16>
    %cst_158 = arith.constant dense<0.000000e+00> : vector<16x128xf32>
    %140 = tpu.matmul %137, %139, %cst_158 {dimension_numbers = #tpu.dot_dimension_numbers<[1], [0], [0], [1], [0, 0, 1, 1], [], []>} : vector<16x64xbf16>, vector<64x128xbf16>, vector<16x128xf32> -> vector<16x128xf32>
    %141 = arith.addf %135, %140 : vector<16x128xf32>
    %c8 = arith.constant 8 : index
    %c0_159 = arith.constant 0 : index
    %c0_160 = arith.constant 0 : index
    %142 = vector.load %arg1[%c8, %c0_159, %c0_160] : memref<14x16x64xbf16, #tpu.memory_space<vmem>>, vector<1x16x64xbf16>
    %143 = vector.shape_cast %142 : vector<1x16x64xbf16> to vector<16x64xbf16>
    %c4_161 = arith.constant 4 : index
    %c0_162 = arith.constant 0 : index
    %c0_163 = arith.constant 0 : index
    %144 = vector.load %arg2[%c4_161, %c0_162, %c0_163] : memref<5x64x128xbf16, #tpu.memory_space<vmem>>, vector<1x64x128xbf16>
    %145 = vector.shape_cast %144 : vector<1x64x128xbf16> to vector<64x128xbf16>
    %cst_164 = arith.constant dense<0.000000e+00> : vector<16x128xf32>
    %146 = tpu.matmul %143, %145, %cst_164 {dimension_numbers = #tpu.dot_dimension_numbers<[1], [0], [0], [1], [0, 0, 1, 1], [], []>} : vector<16x64xbf16>, vector<64x128xbf16>, vector<16x128xf32> -> vector<16x128xf32>
    %147 = arith.addf %141, %146 : vector<16x128xf32>
    %148 = arith.maximumf %118, %147 : vector<16x128xf32>
    %c5_165 = arith.constant 5 : index
    %c0_166 = arith.constant 0 : index
    %c0_167 = arith.constant 0 : index
    %149 = vector.load %arg1[%c5_165, %c0_166, %c0_167] : memref<14x16x64xbf16, #tpu.memory_space<vmem>>, vector<1x16x64xbf16>
    %150 = vector.shape_cast %149 : vector<1x16x64xbf16> to vector<16x64xbf16>
    %c0_168 = arith.constant 0 : index
    %c0_169 = arith.constant 0 : index
    %c0_170 = arith.constant 0 : index
    %151 = vector.load %arg2[%c0_168, %c0_169, %c0_170] : memref<5x64x128xbf16, #tpu.memory_space<vmem>>, vector<1x64x128xbf16>
    %152 = vector.shape_cast %151 : vector<1x64x128xbf16> to vector<64x128xbf16>
    %cst_171 = arith.constant dense<0.000000e+00> : vector<16x128xf32>
    %153 = tpu.matmul %150, %152, %cst_171 {dimension_numbers = #tpu.dot_dimension_numbers<[1], [0], [0], [1], [0, 0, 1, 1], [], []>} : vector<16x64xbf16>, vector<64x128xbf16>, vector<16x128xf32> -> vector<16x128xf32>
    %c6_172 = arith.constant 6 : index
    %c0_173 = arith.constant 0 : index
    %c0_174 = arith.constant 0 : index
    %154 = vector.load %arg1[%c6_172, %c0_173, %c0_174] : memref<14x16x64xbf16, #tpu.memory_space<vmem>>, vector<1x16x64xbf16>
    %155 = vector.shape_cast %154 : vector<1x16x64xbf16> to vector<16x64xbf16>
    %c1_175 = arith.constant 1 : index
    %c0_176 = arith.constant 0 : index
    %c0_177 = arith.constant 0 : index
    %156 = vector.load %arg2[%c1_175, %c0_176, %c0_177] : memref<5x64x128xbf16, #tpu.memory_space<vmem>>, vector<1x64x128xbf16>
    %157 = vector.shape_cast %156 : vector<1x64x128xbf16> to vector<64x128xbf16>
    %cst_178 = arith.constant dense<0.000000e+00> : vector<16x128xf32>
    %158 = tpu.matmul %155, %157, %cst_178 {dimension_numbers = #tpu.dot_dimension_numbers<[1], [0], [0], [1], [0, 0, 1, 1], [], []>} : vector<16x64xbf16>, vector<64x128xbf16>, vector<16x128xf32> -> vector<16x128xf32>
    %159 = arith.addf %153, %158 : vector<16x128xf32>
    %c7_179 = arith.constant 7 : index
    %c0_180 = arith.constant 0 : index
    %c0_181 = arith.constant 0 : index
    %160 = vector.load %arg1[%c7_179, %c0_180, %c0_181] : memref<14x16x64xbf16, #tpu.memory_space<vmem>>, vector<1x16x64xbf16>
    %161 = vector.shape_cast %160 : vector<1x16x64xbf16> to vector<16x64xbf16>
    %c2_182 = arith.constant 2 : index
    %c0_183 = arith.constant 0 : index
    %c0_184 = arith.constant 0 : index
    %162 = vector.load %arg2[%c2_182, %c0_183, %c0_184] : memref<5x64x128xbf16, #tpu.memory_space<vmem>>, vector<1x64x128xbf16>
    %163 = vector.shape_cast %162 : vector<1x64x128xbf16> to vector<64x128xbf16>
    %cst_185 = arith.constant dense<0.000000e+00> : vector<16x128xf32>
    %164 = tpu.matmul %161, %163, %cst_185 {dimension_numbers = #tpu.dot_dimension_numbers<[1], [0], [0], [1], [0, 0, 1, 1], [], []>} : vector<16x64xbf16>, vector<64x128xbf16>, vector<16x128xf32> -> vector<16x128xf32>
    %165 = arith.addf %159, %164 : vector<16x128xf32>
    %c8_186 = arith.constant 8 : index
    %c0_187 = arith.constant 0 : index
    %c0_188 = arith.constant 0 : index
    %166 = vector.load %arg1[%c8_186, %c0_187, %c0_188] : memref<14x16x64xbf16, #tpu.memory_space<vmem>>, vector<1x16x64xbf16>
    %167 = vector.shape_cast %166 : vector<1x16x64xbf16> to vector<16x64xbf16>
    %c3_189 = arith.constant 3 : index
    %c0_190 = arith.constant 0 : index
    %c0_191 = arith.constant 0 : index
    %168 = vector.load %arg2[%c3_189, %c0_190, %c0_191] : memref<5x64x128xbf16, #tpu.memory_space<vmem>>, vector<1x64x128xbf16>
    %169 = vector.shape_cast %168 : vector<1x64x128xbf16> to vector<64x128xbf16>
    %cst_192 = arith.constant dense<0.000000e+00> : vector<16x128xf32>
    %170 = tpu.matmul %167, %169, %cst_192 {dimension_numbers = #tpu.dot_dimension_numbers<[1], [0], [0], [1], [0, 0, 1, 1], [], []>} : vector<16x64xbf16>, vector<64x128xbf16>, vector<16x128xf32> -> vector<16x128xf32>
    %171 = arith.addf %165, %170 : vector<16x128xf32>
    %c9 = arith.constant 9 : index
    %c0_193 = arith.constant 0 : index
    %c0_194 = arith.constant 0 : index
    %172 = vector.load %arg1[%c9, %c0_193, %c0_194] : memref<14x16x64xbf16, #tpu.memory_space<vmem>>, vector<1x16x64xbf16>
    %173 = vector.shape_cast %172 : vector<1x16x64xbf16> to vector<16x64xbf16>
    %c4_195 = arith.constant 4 : index
    %c0_196 = arith.constant 0 : index
    %c0_197 = arith.constant 0 : index
    %174 = vector.load %arg2[%c4_195, %c0_196, %c0_197] : memref<5x64x128xbf16, #tpu.memory_space<vmem>>, vector<1x64x128xbf16>
    %175 = vector.shape_cast %174 : vector<1x64x128xbf16> to vector<64x128xbf16>
    %cst_198 = arith.constant dense<0.000000e+00> : vector<16x128xf32>
    %176 = tpu.matmul %173, %175, %cst_198 {dimension_numbers = #tpu.dot_dimension_numbers<[1], [0], [0], [1], [0, 0, 1, 1], [], []>} : vector<16x64xbf16>, vector<64x128xbf16>, vector<16x128xf32> -> vector<16x128xf32>
    %177 = arith.addf %171, %176 : vector<16x128xf32>
    %178 = arith.maximumf %148, %177 : vector<16x128xf32>
    %c6_199 = arith.constant 6 : index
    %c0_200 = arith.constant 0 : index
    %c0_201 = arith.constant 0 : index
    %179 = vector.load %arg1[%c6_199, %c0_200, %c0_201] : memref<14x16x64xbf16, #tpu.memory_space<vmem>>, vector<1x16x64xbf16>
    %180 = vector.shape_cast %179 : vector<1x16x64xbf16> to vector<16x64xbf16>
    %c0_202 = arith.constant 0 : index
    %c0_203 = arith.constant 0 : index
    %c0_204 = arith.constant 0 : index
    %181 = vector.load %arg2[%c0_202, %c0_203, %c0_204] : memref<5x64x128xbf16, #tpu.memory_space<vmem>>, vector<1x64x128xbf16>
    %182 = vector.shape_cast %181 : vector<1x64x128xbf16> to vector<64x128xbf16>
    %cst_205 = arith.constant dense<0.000000e+00> : vector<16x128xf32>
    %183 = tpu.matmul %180, %182, %cst_205 {dimension_numbers = #tpu.dot_dimension_numbers<[1], [0], [0], [1], [0, 0, 1, 1], [], []>} : vector<16x64xbf16>, vector<64x128xbf16>, vector<16x128xf32> -> vector<16x128xf32>
    %c7_206 = arith.constant 7 : index
    %c0_207 = arith.constant 0 : index
    %c0_208 = arith.constant 0 : index
    %184 = vector.load %arg1[%c7_206, %c0_207, %c0_208] : memref<14x16x64xbf16, #tpu.memory_space<vmem>>, vector<1x16x64xbf16>
    %185 = vector.shape_cast %184 : vector<1x16x64xbf16> to vector<16x64xbf16>
    %c1_209 = arith.constant 1 : index
    %c0_210 = arith.constant 0 : index
    %c0_211 = arith.constant 0 : index
    %186 = vector.load %arg2[%c1_209, %c0_210, %c0_211] : memref<5x64x128xbf16, #tpu.memory_space<vmem>>, vector<1x64x128xbf16>
    %187 = vector.shape_cast %186 : vector<1x64x128xbf16> to vector<64x128xbf16>
    %cst_212 = arith.constant dense<0.000000e+00> : vector<16x128xf32>
    %188 = tpu.matmul %185, %187, %cst_212 {dimension_numbers = #tpu.dot_dimension_numbers<[1], [0], [0], [1], [0, 0, 1, 1], [], []>} : vector<16x64xbf16>, vector<64x128xbf16>, vector<16x128xf32> -> vector<16x128xf32>
    %189 = arith.addf %183, %188 : vector<16x128xf32>
    %c8_213 = arith.constant 8 : index
    %c0_214 = arith.constant 0 : index
    %c0_215 = arith.constant 0 : index
    %190 = vector.load %arg1[%c8_213, %c0_214, %c0_215] : memref<14x16x64xbf16, #tpu.memory_space<vmem>>, vector<1x16x64xbf16>
    %191 = vector.shape_cast %190 : vector<1x16x64xbf16> to vector<16x64xbf16>
    %c2_216 = arith.constant 2 : index
    %c0_217 = arith.constant 0 : index
    %c0_218 = arith.constant 0 : index
    %192 = vector.load %arg2[%c2_216, %c0_217, %c0_218] : memref<5x64x128xbf16, #tpu.memory_space<vmem>>, vector<1x64x128xbf16>
    %193 = vector.shape_cast %192 : vector<1x64x128xbf16> to vector<64x128xbf16>
    %cst_219 = arith.constant dense<0.000000e+00> : vector<16x128xf32>
    %194 = tpu.matmul %191, %193, %cst_219 {dimension_numbers = #tpu.dot_dimension_numbers<[1], [0], [0], [1], [0, 0, 1, 1], [], []>} : vector<16x64xbf16>, vector<64x128xbf16>, vector<16x128xf32> -> vector<16x128xf32>
    %195 = arith.addf %189, %194 : vector<16x128xf32>
    %c9_220 = arith.constant 9 : index
    %c0_221 = arith.constant 0 : index
    %c0_222 = arith.constant 0 : index
    %196 = vector.load %arg1[%c9_220, %c0_221, %c0_222] : memref<14x16x64xbf16, #tpu.memory_space<vmem>>, vector<1x16x64xbf16>
    %197 = vector.shape_cast %196 : vector<1x16x64xbf16> to vector<16x64xbf16>
    %c3_223 = arith.constant 3 : index
    %c0_224 = arith.constant 0 : index
    %c0_225 = arith.constant 0 : index
    %198 = vector.load %arg2[%c3_223, %c0_224, %c0_225] : memref<5x64x128xbf16, #tpu.memory_space<vmem>>, vector<1x64x128xbf16>
    %199 = vector.shape_cast %198 : vector<1x64x128xbf16> to vector<64x128xbf16>
    %cst_226 = arith.constant dense<0.000000e+00> : vector<16x128xf32>
    %200 = tpu.matmul %197, %199, %cst_226 {dimension_numbers = #tpu.dot_dimension_numbers<[1], [0], [0], [1], [0, 0, 1, 1], [], []>} : vector<16x64xbf16>, vector<64x128xbf16>, vector<16x128xf32> -> vector<16x128xf32>
    %201 = arith.addf %195, %200 : vector<16x128xf32>
    %c10 = arith.constant 10 : index
    %c0_227 = arith.constant 0 : index
    %c0_228 = arith.constant 0 : index
    %202 = vector.load %arg1[%c10, %c0_227, %c0_228] : memref<14x16x64xbf16, #tpu.memory_space<vmem>>, vector<1x16x64xbf16>
    %203 = vector.shape_cast %202 : vector<1x16x64xbf16> to vector<16x64xbf16>
    %c4_229 = arith.constant 4 : index
    %c0_230 = arith.constant 0 : index
    %c0_231 = arith.constant 0 : index
    %204 = vector.load %arg2[%c4_229, %c0_230, %c0_231] : memref<5x64x128xbf16, #tpu.memory_space<vmem>>, vector<1x64x128xbf16>
    %205 = vector.shape_cast %204 : vector<1x64x128xbf16> to vector<64x128xbf16>
    %cst_232 = arith.constant dense<0.000000e+00> : vector<16x128xf32>
    %206 = tpu.matmul %203, %205, %cst_232 {dimension_numbers = #tpu.dot_dimension_numbers<[1], [0], [0], [1], [0, 0, 1, 1], [], []>} : vector<16x64xbf16>, vector<64x128xbf16>, vector<16x128xf32> -> vector<16x128xf32>
    %207 = arith.addf %201, %206 : vector<16x128xf32>
    %208 = arith.maximumf %178, %207 : vector<16x128xf32>
    %c7_233 = arith.constant 7 : index
    %c0_234 = arith.constant 0 : index
    %c0_235 = arith.constant 0 : index
    %209 = vector.load %arg1[%c7_233, %c0_234, %c0_235] : memref<14x16x64xbf16, #tpu.memory_space<vmem>>, vector<1x16x64xbf16>
    %210 = vector.shape_cast %209 : vector<1x16x64xbf16> to vector<16x64xbf16>
    %c0_236 = arith.constant 0 : index
    %c0_237 = arith.constant 0 : index
    %c0_238 = arith.constant 0 : index
    %211 = vector.load %arg2[%c0_236, %c0_237, %c0_238] : memref<5x64x128xbf16, #tpu.memory_space<vmem>>, vector<1x64x128xbf16>
    %212 = vector.shape_cast %211 : vector<1x64x128xbf16> to vector<64x128xbf16>
    %cst_239 = arith.constant dense<0.000000e+00> : vector<16x128xf32>
    %213 = tpu.matmul %210, %212, %cst_239 {dimension_numbers = #tpu.dot_dimension_numbers<[1], [0], [0], [1], [0, 0, 1, 1], [], []>} : vector<16x64xbf16>, vector<64x128xbf16>, vector<16x128xf32> -> vector<16x128xf32>
    %c8_240 = arith.constant 8 : index
    %c0_241 = arith.constant 0 : index
    %c0_242 = arith.constant 0 : index
    %214 = vector.load %arg1[%c8_240, %c0_241, %c0_242] : memref<14x16x64xbf16, #tpu.memory_space<vmem>>, vector<1x16x64xbf16>
    %215 = vector.shape_cast %214 : vector<1x16x64xbf16> to vector<16x64xbf16>
    %c1_243 = arith.constant 1 : index
    %c0_244 = arith.constant 0 : index
    %c0_245 = arith.constant 0 : index
    %216 = vector.load %arg2[%c1_243, %c0_244, %c0_245] : memref<5x64x128xbf16, #tpu.memory_space<vmem>>, vector<1x64x128xbf16>
    %217 = vector.shape_cast %216 : vector<1x64x128xbf16> to vector<64x128xbf16>
    %cst_246 = arith.constant dense<0.000000e+00> : vector<16x128xf32>
    %218 = tpu.matmul %215, %217, %cst_246 {dimension_numbers = #tpu.dot_dimension_numbers<[1], [0], [0], [1], [0, 0, 1, 1], [], []>} : vector<16x64xbf16>, vector<64x128xbf16>, vector<16x128xf32> -> vector<16x128xf32>
    %219 = arith.addf %213, %218 : vector<16x128xf32>
    %c9_247 = arith.constant 9 : index
    %c0_248 = arith.constant 0 : index
    %c0_249 = arith.constant 0 : index
    %220 = vector.load %arg1[%c9_247, %c0_248, %c0_249] : memref<14x16x64xbf16, #tpu.memory_space<vmem>>, vector<1x16x64xbf16>
    %221 = vector.shape_cast %220 : vector<1x16x64xbf16> to vector<16x64xbf16>
    %c2_250 = arith.constant 2 : index
    %c0_251 = arith.constant 0 : index
    %c0_252 = arith.constant 0 : index
    %222 = vector.load %arg2[%c2_250, %c0_251, %c0_252] : memref<5x64x128xbf16, #tpu.memory_space<vmem>>, vector<1x64x128xbf16>
    %223 = vector.shape_cast %222 : vector<1x64x128xbf16> to vector<64x128xbf16>
    %cst_253 = arith.constant dense<0.000000e+00> : vector<16x128xf32>
    %224 = tpu.matmul %221, %223, %cst_253 {dimension_numbers = #tpu.dot_dimension_numbers<[1], [0], [0], [1], [0, 0, 1, 1], [], []>} : vector<16x64xbf16>, vector<64x128xbf16>, vector<16x128xf32> -> vector<16x128xf32>
    %225 = arith.addf %219, %224 : vector<16x128xf32>
    %c10_254 = arith.constant 10 : index
    %c0_255 = arith.constant 0 : index
    %c0_256 = arith.constant 0 : index
    %226 = vector.load %arg1[%c10_254, %c0_255, %c0_256] : memref<14x16x64xbf16, #tpu.memory_space<vmem>>, vector<1x16x64xbf16>
    %227 = vector.shape_cast %226 : vector<1x16x64xbf16> to vector<16x64xbf16>
    %c3_257 = arith.constant 3 : index
    %c0_258 = arith.constant 0 : index
    %c0_259 = arith.constant 0 : index
    %228 = vector.load %arg2[%c3_257, %c0_258, %c0_259] : memref<5x64x128xbf16, #tpu.memory_space<vmem>>, vector<1x64x128xbf16>
    %229 = vector.shape_cast %228 : vector<1x64x128xbf16> to vector<64x128xbf16>
    %cst_260 = arith.constant dense<0.000000e+00> : vector<16x128xf32>
    %230 = tpu.matmul %227, %229, %cst_260 {dimension_numbers = #tpu.dot_dimension_numbers<[1], [0], [0], [1], [0, 0, 1, 1], [], []>} : vector<16x64xbf16>, vector<64x128xbf16>, vector<16x128xf32> -> vector<16x128xf32>
    %231 = arith.addf %225, %230 : vector<16x128xf32>
    %c11 = arith.constant 11 : index
    %c0_261 = arith.constant 0 : index
    %c0_262 = arith.constant 0 : index
    %232 = vector.load %arg1[%c11, %c0_261, %c0_262] : memref<14x16x64xbf16, #tpu.memory_space<vmem>>, vector<1x16x64xbf16>
    %233 = vector.shape_cast %232 : vector<1x16x64xbf16> to vector<16x64xbf16>
    %c4_263 = arith.constant 4 : index
    %c0_264 = arith.constant 0 : index
    %c0_265 = arith.constant 0 : index
    %234 = vector.load %arg2[%c4_263, %c0_264, %c0_265] : memref<5x64x128xbf16, #tpu.memory_space<vmem>>, vector<1x64x128xbf16>
    %235 = vector.shape_cast %234 : vector<1x64x128xbf16> to vector<64x128xbf16>
    %cst_266 = arith.constant dense<0.000000e+00> : vector<16x128xf32>
    %236 = tpu.matmul %233, %235, %cst_266 {dimension_numbers = #tpu.dot_dimension_numbers<[1], [0], [0], [1], [0, 0, 1, 1], [], []>} : vector<16x64xbf16>, vector<64x128xbf16>, vector<16x128xf32> -> vector<16x128xf32>
    %237 = arith.addf %231, %236 : vector<16x128xf32>
    %238 = arith.maximumf %208, %237 : vector<16x128xf32>
    %c8_267 = arith.constant 8 : index
    %c0_268 = arith.constant 0 : index
    %c0_269 = arith.constant 0 : index
    %239 = vector.load %arg1[%c8_267, %c0_268, %c0_269] : memref<14x16x64xbf16, #tpu.memory_space<vmem>>, vector<1x16x64xbf16>
    %240 = vector.shape_cast %239 : vector<1x16x64xbf16> to vector<16x64xbf16>
    %c0_270 = arith.constant 0 : index
    %c0_271 = arith.constant 0 : index
    %c0_272 = arith.constant 0 : index
    %241 = vector.load %arg2[%c0_270, %c0_271, %c0_272] : memref<5x64x128xbf16, #tpu.memory_space<vmem>>, vector<1x64x128xbf16>
    %242 = vector.shape_cast %241 : vector<1x64x128xbf16> to vector<64x128xbf16>
    %cst_273 = arith.constant dense<0.000000e+00> : vector<16x128xf32>
    %243 = tpu.matmul %240, %242, %cst_273 {dimension_numbers = #tpu.dot_dimension_numbers<[1], [0], [0], [1], [0, 0, 1, 1], [], []>} : vector<16x64xbf16>, vector<64x128xbf16>, vector<16x128xf32> -> vector<16x128xf32>
    %c9_274 = arith.constant 9 : index
    %c0_275 = arith.constant 0 : index
    %c0_276 = arith.constant 0 : index
    %244 = vector.load %arg1[%c9_274, %c0_275, %c0_276] : memref<14x16x64xbf16, #tpu.memory_space<vmem>>, vector<1x16x64xbf16>
    %245 = vector.shape_cast %244 : vector<1x16x64xbf16> to vector<16x64xbf16>
    %c1_277 = arith.constant 1 : index
    %c0_278 = arith.constant 0 : index
    %c0_279 = arith.constant 0 : index
    %246 = vector.load %arg2[%c1_277, %c0_278, %c0_279] : memref<5x64x128xbf16, #tpu.memory_space<vmem>>, vector<1x64x128xbf16>
    %247 = vector.shape_cast %246 : vector<1x64x128xbf16> to vector<64x128xbf16>
    %cst_280 = arith.constant dense<0.000000e+00> : vector<16x128xf32>
    %248 = tpu.matmul %245, %247, %cst_280 {dimension_numbers = #tpu.dot_dimension_numbers<[1], [0], [0], [1], [0, 0, 1, 1], [], []>} : vector<16x64xbf16>, vector<64x128xbf16>, vector<16x128xf32> -> vector<16x128xf32>
    %249 = arith.addf %243, %248 : vector<16x128xf32>
    %c10_281 = arith.constant 10 : index
    %c0_282 = arith.constant 0 : index
    %c0_283 = arith.constant 0 : index
    %250 = vector.load %arg1[%c10_281, %c0_282, %c0_283] : memref<14x16x64xbf16, #tpu.memory_space<vmem>>, vector<1x16x64xbf16>
    %251 = vector.shape_cast %250 : vector<1x16x64xbf16> to vector<16x64xbf16>
    %c2_284 = arith.constant 2 : index
    %c0_285 = arith.constant 0 : index
    %c0_286 = arith.constant 0 : index
    %252 = vector.load %arg2[%c2_284, %c0_285, %c0_286] : memref<5x64x128xbf16, #tpu.memory_space<vmem>>, vector<1x64x128xbf16>
    %253 = vector.shape_cast %252 : vector<1x64x128xbf16> to vector<64x128xbf16>
    %cst_287 = arith.constant dense<0.000000e+00> : vector<16x128xf32>
    %254 = tpu.matmul %251, %253, %cst_287 {dimension_numbers = #tpu.dot_dimension_numbers<[1], [0], [0], [1], [0, 0, 1, 1], [], []>} : vector<16x64xbf16>, vector<64x128xbf16>, vector<16x128xf32> -> vector<16x128xf32>
    %255 = arith.addf %249, %254 : vector<16x128xf32>
    %c11_288 = arith.constant 11 : index
    %c0_289 = arith.constant 0 : index
    %c0_290 = arith.constant 0 : index
    %256 = vector.load %arg1[%c11_288, %c0_289, %c0_290] : memref<14x16x64xbf16, #tpu.memory_space<vmem>>, vector<1x16x64xbf16>
    %257 = vector.shape_cast %256 : vector<1x16x64xbf16> to vector<16x64xbf16>
    %c3_291 = arith.constant 3 : index
    %c0_292 = arith.constant 0 : index
    %c0_293 = arith.constant 0 : index
    %258 = vector.load %arg2[%c3_291, %c0_292, %c0_293] : memref<5x64x128xbf16, #tpu.memory_space<vmem>>, vector<1x64x128xbf16>
    %259 = vector.shape_cast %258 : vector<1x64x128xbf16> to vector<64x128xbf16>
    %cst_294 = arith.constant dense<0.000000e+00> : vector<16x128xf32>
    %260 = tpu.matmul %257, %259, %cst_294 {dimension_numbers = #tpu.dot_dimension_numbers<[1], [0], [0], [1], [0, 0, 1, 1], [], []>} : vector<16x64xbf16>, vector<64x128xbf16>, vector<16x128xf32> -> vector<16x128xf32>
    %261 = arith.addf %255, %260 : vector<16x128xf32>
    %c12 = arith.constant 12 : index
    %c0_295 = arith.constant 0 : index
    %c0_296 = arith.constant 0 : index
    %262 = vector.load %arg1[%c12, %c0_295, %c0_296] : memref<14x16x64xbf16, #tpu.memory_space<vmem>>, vector<1x16x64xbf16>
    %263 = vector.shape_cast %262 : vector<1x16x64xbf16> to vector<16x64xbf16>
    %c4_297 = arith.constant 4 : index
    %c0_298 = arith.constant 0 : index
    %c0_299 = arith.constant 0 : index
    %264 = vector.load %arg2[%c4_297, %c0_298, %c0_299] : memref<5x64x128xbf16, #tpu.memory_space<vmem>>, vector<1x64x128xbf16>
    %265 = vector.shape_cast %264 : vector<1x64x128xbf16> to vector<64x128xbf16>
    %cst_300 = arith.constant dense<0.000000e+00> : vector<16x128xf32>
    %266 = tpu.matmul %263, %265, %cst_300 {dimension_numbers = #tpu.dot_dimension_numbers<[1], [0], [0], [1], [0, 0, 1, 1], [], []>} : vector<16x64xbf16>, vector<64x128xbf16>, vector<16x128xf32> -> vector<16x128xf32>
    %267 = arith.addf %261, %266 : vector<16x128xf32>
    %268 = arith.maximumf %238, %267 : vector<16x128xf32>
    %c9_301 = arith.constant 9 : index
    %c0_302 = arith.constant 0 : index
    %c0_303 = arith.constant 0 : index
    %269 = vector.load %arg1[%c9_301, %c0_302, %c0_303] : memref<14x16x64xbf16, #tpu.memory_space<vmem>>, vector<1x16x64xbf16>
    %270 = vector.shape_cast %269 : vector<1x16x64xbf16> to vector<16x64xbf16>
    %c0_304 = arith.constant 0 : index
    %c0_305 = arith.constant 0 : index
    %c0_306 = arith.constant 0 : index
    %271 = vector.load %arg2[%c0_304, %c0_305, %c0_306] : memref<5x64x128xbf16, #tpu.memory_space<vmem>>, vector<1x64x128xbf16>
    %272 = vector.shape_cast %271 : vector<1x64x128xbf16> to vector<64x128xbf16>
    %cst_307 = arith.constant dense<0.000000e+00> : vector<16x128xf32>
    %273 = tpu.matmul %270, %272, %cst_307 {dimension_numbers = #tpu.dot_dimension_numbers<[1], [0], [0], [1], [0, 0, 1, 1], [], []>} : vector<16x64xbf16>, vector<64x128xbf16>, vector<16x128xf32> -> vector<16x128xf32>
    %c10_308 = arith.constant 10 : index
    %c0_309 = arith.constant 0 : index
    %c0_310 = arith.constant 0 : index
    %274 = vector.load %arg1[%c10_308, %c0_309, %c0_310] : memref<14x16x64xbf16, #tpu.memory_space<vmem>>, vector<1x16x64xbf16>
    %275 = vector.shape_cast %274 : vector<1x16x64xbf16> to vector<16x64xbf16>
    %c1_311 = arith.constant 1 : index
    %c0_312 = arith.constant 0 : index
    %c0_313 = arith.constant 0 : index
    %276 = vector.load %arg2[%c1_311, %c0_312, %c0_313] : memref<5x64x128xbf16, #tpu.memory_space<vmem>>, vector<1x64x128xbf16>
    %277 = vector.shape_cast %276 : vector<1x64x128xbf16> to vector<64x128xbf16>
    %cst_314 = arith.constant dense<0.000000e+00> : vector<16x128xf32>
    %278 = tpu.matmul %275, %277, %cst_314 {dimension_numbers = #tpu.dot_dimension_numbers<[1], [0], [0], [1], [0, 0, 1, 1], [], []>} : vector<16x64xbf16>, vector<64x128xbf16>, vector<16x128xf32> -> vector<16x128xf32>
    %279 = arith.addf %273, %278 : vector<16x128xf32>
    %c11_315 = arith.constant 11 : index
    %c0_316 = arith.constant 0 : index
    %c0_317 = arith.constant 0 : index
    %280 = vector.load %arg1[%c11_315, %c0_316, %c0_317] : memref<14x16x64xbf16, #tpu.memory_space<vmem>>, vector<1x16x64xbf16>
    %281 = vector.shape_cast %280 : vector<1x16x64xbf16> to vector<16x64xbf16>
    %c2_318 = arith.constant 2 : index
    %c0_319 = arith.constant 0 : index
    %c0_320 = arith.constant 0 : index
    %282 = vector.load %arg2[%c2_318, %c0_319, %c0_320] : memref<5x64x128xbf16, #tpu.memory_space<vmem>>, vector<1x64x128xbf16>
    %283 = vector.shape_cast %282 : vector<1x64x128xbf16> to vector<64x128xbf16>
    %cst_321 = arith.constant dense<0.000000e+00> : vector<16x128xf32>
    %284 = tpu.matmul %281, %283, %cst_321 {dimension_numbers = #tpu.dot_dimension_numbers<[1], [0], [0], [1], [0, 0, 1, 1], [], []>} : vector<16x64xbf16>, vector<64x128xbf16>, vector<16x128xf32> -> vector<16x128xf32>
    %285 = arith.addf %279, %284 : vector<16x128xf32>
    %c12_322 = arith.constant 12 : index
    %c0_323 = arith.constant 0 : index
    %c0_324 = arith.constant 0 : index
    %286 = vector.load %arg1[%c12_322, %c0_323, %c0_324] : memref<14x16x64xbf16, #tpu.memory_space<vmem>>, vector<1x16x64xbf16>
    %287 = vector.shape_cast %286 : vector<1x16x64xbf16> to vector<16x64xbf16>
    %c3_325 = arith.constant 3 : index
    %c0_326 = arith.constant 0 : index
    %c0_327 = arith.constant 0 : index
    %288 = vector.load %arg2[%c3_325, %c0_326, %c0_327] : memref<5x64x128xbf16, #tpu.memory_space<vmem>>, vector<1x64x128xbf16>
    %289 = vector.shape_cast %288 : vector<1x64x128xbf16> to vector<64x128xbf16>
    %cst_328 = arith.constant dense<0.000000e+00> : vector<16x128xf32>
    %290 = tpu.matmul %287, %289, %cst_328 {dimension_numbers = #tpu.dot_dimension_numbers<[1], [0], [0], [1], [0, 0, 1, 1], [], []>} : vector<16x64xbf16>, vector<64x128xbf16>, vector<16x128xf32> -> vector<16x128xf32>
    %291 = arith.addf %285, %290 : vector<16x128xf32>
    %c13 = arith.constant 13 : index
    %c0_329 = arith.constant 0 : index
    %c0_330 = arith.constant 0 : index
    %292 = vector.load %arg1[%c13, %c0_329, %c0_330] : memref<14x16x64xbf16, #tpu.memory_space<vmem>>, vector<1x16x64xbf16>
    %293 = vector.shape_cast %292 : vector<1x16x64xbf16> to vector<16x64xbf16>
    %c4_331 = arith.constant 4 : index
    %c0_332 = arith.constant 0 : index
    %c0_333 = arith.constant 0 : index
    %294 = vector.load %arg2[%c4_331, %c0_332, %c0_333] : memref<5x64x128xbf16, #tpu.memory_space<vmem>>, vector<1x64x128xbf16>
    %295 = vector.shape_cast %294 : vector<1x64x128xbf16> to vector<64x128xbf16>
    %cst_334 = arith.constant dense<0.000000e+00> : vector<16x128xf32>
    %296 = tpu.matmul %293, %295, %cst_334 {dimension_numbers = #tpu.dot_dimension_numbers<[1], [0], [0], [1], [0, 0, 1, 1], [], []>} : vector<16x64xbf16>, vector<64x128xbf16>, vector<16x128xf32> -> vector<16x128xf32>
    %297 = arith.addf %291, %296 : vector<16x128xf32>
    %298 = arith.maximumf %268, %297 : vector<16x128xf32>
    %c0_335 = arith.constant 0 : index
    %c0_336 = arith.constant 0 : index
    %299 = vector.load %arg3[%c0_335, %c0_336] : memref<1x128xf32, #tpu.memory_space<vmem>>, vector<1x128xf32>
    %300 = vector.broadcast %299 : vector<1x128xf32> to vector<16x128xf32>
    %301 = arith.addf %298, %300 : vector<16x128xf32>
    %cst_337 = arith.constant 0.000000e+00 : f32
    %302 = vector.broadcast %cst_337 : f32 to vector<16x128xf32>
    %303 = arith.maximumf %301, %302 : vector<16x128xf32>
    %304 = arith.truncf %303 : vector<16x128xf32> to vector<16x128xbf16>
    %c0_338 = arith.constant 0 : index
    %c0_339 = arith.constant 0 : index
    %305 = vector.load %arg4[%c0_338, %c0_339] : memref<128x256xbf16, #tpu.memory_space<vmem>>, vector<128x256xbf16>
    %cst_340 = arith.constant dense<0.000000e+00> : vector<16x256xf32>
    %306 = tpu.matmul %304, %305, %cst_340 {dimension_numbers = #tpu.dot_dimension_numbers<[1], [0], [0], [1], [0, 0, 1, 1], [], []>} : vector<16x128xbf16>, vector<128x256xbf16>, vector<16x256xf32> -> vector<16x256xf32>
    %c0_341 = arith.constant 0 : index
    %c0_342 = arith.constant 0 : index
    %307 = vector.load %arg5[%c0_341, %c0_342] : memref<1x256xf32, #tpu.memory_space<vmem>>, vector<1x256xf32>
    %308 = vector.broadcast %307 : vector<1x256xf32> to vector<16x256xf32>
    %309 = arith.addf %306, %308 : vector<16x256xf32>
    %310 = vector.extract_strided_slice %309 {offsets = [0, 0], sizes = [16, 128], strides = [1, 1]} : vector<16x256xf32> to vector<16x128xf32>
    %cst_343 = arith.constant 0.000000e+00 : f32
    %311 = vector.broadcast %cst_343 : f32 to vector<16x128xf32>
    %312 = arith.maximumf %310, %311 : vector<16x128xf32>
    %313 = vector.extract_strided_slice %309 {offsets = [0, 128], sizes = [16, 128], strides = [1, 1]} : vector<16x256xf32> to vector<16x128xf32>
    %314 = arith.negf %313 : vector<16x128xf32>
    %315 = math.exp %314 : vector<16x128xf32>
    %cst_344 = arith.constant 1.000000e+00 : f32
    %316 = vector.broadcast %cst_344 : f32 to vector<16x128xf32>
    %317 = arith.addf %316, %315 : vector<16x128xf32>
    %318 = arith.divf %316, %317 : vector<16x128xf32>
    %319 = arith.mulf %318, %312 : vector<16x128xf32>
    %cst_345 = arith.constant 1.000000e+00 : f32
    %320 = vector.broadcast %cst_345 : f32 to vector<16x128xf32>
    %321 = arith.subf %320, %318 : vector<16x128xf32>
    %322 = arith.mulf %321, %303 : vector<16x128xf32>
    %323 = arith.addf %319, %322 : vector<16x128xf32>
    %c0_346 = arith.constant 0 : index
    %c0_347 = arith.constant 0 : index
    %324 = vector.load %arg6[%c0_346, %c0_347] : memref<16x128xf32, #tpu.memory_space<vmem>>, vector<16x128xf32>
    tpu.vector_store %arg6[%c0_346, %c0_347], %323 {strides = array<i32>} : memref<16x128xf32, #tpu.memory_space<vmem>>, vector<16x128xf32>,
    return
  }
  func.func @transform_0(%arg0: i32) -> (i32, i32, i32) {
    %c0_i32 = arith.constant 0 : i32
    %c0_i32_0 = arith.constant 0 : i32
    %c0_i32_1 = arith.constant 0 : i32
    return %c0_i32, %arg0, %c0_i32_0 : i32, i32, i32
  }
  func.func @transform_1(%arg0: i32) -> (i32, i32, i32) {
    %c0_i32 = arith.constant 0 : i32
    %c0_i32_0 = arith.constant 0 : i32
    %c0_i32_1 = arith.constant 0 : i32
    %c0_i32_2 = arith.constant 0 : i32
    return %c0_i32, %c0_i32_0, %c0_i32_1 : i32, i32, i32
  }
  func.func @transform_2(%arg0: i32) -> (i32, i32) {
    %c0_i32 = arith.constant 0 : i32
    %c0_i32_0 = arith.constant 0 : i32
    %c0_i32_1 = arith.constant 0 : i32
    return %c0_i32, %c0_i32_0 : i32, i32
  }
  func.func @transform_3(%arg0: i32) -> (i32, i32) {
    %c0_i32 = arith.constant 0 : i32
    %c0_i32_0 = arith.constant 0 : i32
    %c0_i32_1 = arith.constant 0 : i32
    return %c0_i32, %c0_i32_0 : i32, i32
  }
  func.func @transform_4(%arg0: i32) -> (i32, i32) {
    %c0_i32 = arith.constant 0 : i32
    %c0_i32_0 = arith.constant 0 : i32
    %c0_i32_1 = arith.constant 0 : i32
    return %c0_i32, %c0_i32_0 : i32, i32
  }
  func.func @transform_5(%arg0: i32) -> (i32, i32) {
    %c0_i32 = arith.constant 0 : i32
    %c0_i32_0 = arith.constant 0 : i32
    return %arg0, %c0_i32 : i32, i32
  }
}

</mosaic_0001>

<llo_original>
// kernel: model_embeddings_forward.1
$region0: #{model_embeddings_forward.1}
  #allocation0 [shape = 'u32[]', space=smem, size = 0x4, offset = 0x4, fixed_abs, tag = 'smem constant byte address 0x4 - core index']
  #allocation1 [shape = 'u32[144,128]{1,0:T(1,128)}', space=vmem, size = 0x12000, scoped, tag = 'internal scratch']
  %s0 = inlined_call_operand.vmem [shape: bf16[14,32,64], index: 0, kind: input, shape index: {}]
  %s1 = inlined_call_operand.vmem [shape: bf16[5,64,128], index: 1, kind: input, shape index: {}]
  %s2 = inlined_call_operand.vmem [shape: f32[1,128], index: 2, kind: input, shape index: {}]
  %s3 = inlined_call_operand.vmem [shape: bf16[128,256], index: 3, kind: input, shape index: {}]
  %s4 = inlined_call_operand.vmem [shape: f32[1,256], index: 4, kind: input, shape index: {}]
  %s5 = inlined_call_operand.hbm [shape: f32[32,128], index: 5, kind: output, shape index: {}]
  %s6 = sld [smem:[#allocation0]]
  $region94: #{model_embeddings_forward.1} parent=0
    _
  %s8 = ssub.s32 1, %s6
  %s9 = scalar_select 0, %s8, %s6
  $region1: #{model_embeddings_forward.1} parent=0
    #allocation2 [shape = 'u8[114688]{0}', space=vmem, size = 0x1c000, scoped, tag = 'input window, operand 0']
    #allocation3 [shape = 'u8[16384]{0}', space=vmem, size = 0x4000, scoped, tag = 'output window, operand 0']
    #allocation4 [shape = 's32[2]{0}', space=sflag, size = 0x8, scoped, tag = 'scoped memory for model_embeddings_forward.1']
    %10 = vsyncpa [#allocation4], 0
    %s11 = scalar_lea.sflag [#allocation4], 1
    %12 = vsyncpa %s11, 0
    loop: start=0, step=1, limit=4
    $region2: #{model_embeddings_forward.1} parent=1 // loop_pre_header
      _
    $region3: #{model_embeddings_forward.1} parent=1 // loop_header
      %s14 = sphi 0, %s18
      %p15 = scmp.ge.s32.totalorder %s14, 4
      %s24 = sphi 0, %s26
      %s27 = sphi 0, %s24
      %s28 = sphi 0, %s27
      %s44 = sphi 0, %s28
      %s48 = sphi 0, %s48
      %s50 = sphi 0, %s48
      %s51 = sphi 0, %s50
      %s65 = sphi 0, %s51
      %s69 = sphi 0, %s69
      %s71 = sphi 0, %s69
      %s72 = sphi 0, %s71
      %s86 = sphi 0, %s72
      %s90 = sphi 0, %s90
      %s92 = sphi 0, %s90
      %s93 = sphi 0, %s92
      %s107 = sphi 0, %s93
      %s111 = sphi 0, %s111
      %s113 = sphi 0, %s111
      %s114 = sphi 0, %s113
      %s128 = sphi 0, %s114
      %s134 = sphi 0, %s136
      %s137 = sphi 0, %s134
      %s138 = sphi 0, %s137
      %s154 = sphi 0, %s138
    $region4: #{model_embeddings_forward.1} parent=1 // loop_header_branch
      %17 = sbr.rel (%p15) target = $region8
    $region5: #{model_embeddings_forward.1} parent=1 // loop_body
      %s19 = ssub.s32 %s14, 1
      %s20 = ssub.s32 %s14, 2
      %s21 = sadd.s32 %s14, 1
      %s22 = ssub.s32 %s14, %s21
      %p23 = scmp.eq.s32.totalorder %s22, 0
      %s25 = sadd.s32 %s24, 1
      %s26 = scalar_select %p23, %s24, %s25
      %p29 = pneg %p23
      %p30 = scmp.eq.s32.totalorder %s14, 1
      %p31 = por %p29, %p30
      %p32 = scmp.ne.s32.totalorder %s24, %s27
      %p33 = scmp.eq.s32.totalorder %s14, 0
      %p34 = por %p32, %p33
      %p35 = scmp.ne.s32.totalorder %s24, %s27
      %p36 = scmp.eq.s32.totalorder %s19, 1
      %p37 = por %p35, %p36
      %p38 = scmp.ne.s32.totalorder %s27, %s28
      %p39 = scmp.eq.s32.totalorder %s19, 0
      %p40 = por %p38, %p39
      %p41 = scmp.ne.s32.totalorder %s27, %s28
      %p42 = scmp.eq.s32.totalorder %s20, 1
      %p43 = por %p41, %p42
      %p45 = scmp.ne.s32.totalorder %s28, %s44
      %p46 = scmp.eq.s32.totalorder %s20, 0
      %p47 = por %p45, %p46
      %s49 = sadd.s32 %s48, 1
      %p52 = scmp.eq.s32.totalorder %s14, 1
      %p53 = scmp.ne.s32.totalorder %s48, %s50
      %p54 = scmp.eq.s32.totalorder %s14, 0
      %p55 = por %p53, %p54
      %p56 = scmp.ne.s32.totalorder %s48, %s50
      %p57 = scmp.eq.s32.totalorder %s19, 1
      %p58 = por %p56, %p57
      %p59 = scmp.ne.s32.totalorder %s50, %s51
      %p60 = scmp.eq.s32.totalorder %s19, 0
      %p61 = por %p59, %p60
      %p62 = scmp.ne.s32.totalorder %s50, %s51
      %p63 = scmp.eq.s32.totalorder %s20, 1
      %p64 = por %p62, %p63
      %p66 = scmp.ne.s32.totalorder %s51, %s65
      %p67 = scmp.eq.s32.totalorder %s20, 0
      %p68 = por %p66, %p67
      %s70 = sadd.s32 %s69, 1
      %p73 = scmp.eq.s32.totalorder %s14, 1
      %p74 = scmp.ne.s32.totalorder %s69, %s71
      %p75 = scmp.eq.s32.totalorder %s14, 0
      %p76 = por %p74, %p75
      %p77 = scmp.ne.s32.totalorder %s69, %s71
      %p78 = scmp.eq.s32.totalorder %s19, 1
      %p79 = por %p77, %p78
      %p80 = scmp.ne.s32.totalorder %s71, %s72
      %p81 = scmp.eq.s32.totalorder %s19, 0
      %p82 = por %p80, %p81
      %p83 = scmp.ne.s32.totalorder %s71, %s72
      %p84 = scmp.eq.s32.totalorder %s20, 1
      %p85 = por %p83, %p84
      %p87 = scmp.ne.s32.totalorder %s72, %s86
      %p88 = scmp.eq.s32.totalorder %s20, 0
      %p89 = por %p87, %p88
      %s91 = sadd.s32 %s90, 1
      %p94 = scmp.eq.s32.totalorder %s14, 1
      %p95 = scmp.ne.s32.totalorder %s90, %s92
      %p96 = scmp.eq.s32.totalorder %s14, 0
      %p97 = por %p95, %p96
      %p98 = scmp.ne.s32.totalorder %s90, %s92
      %p99 = scmp.eq.s32.totalorder %s19, 1
      %p100 = por %p98, %p99
      %p101 = scmp.ne.s32.totalorder %s92, %s93
      %p102 = scmp.eq.s32.totalorder %s19, 0
      %p103 = por %p101, %p102
      %p104 = scmp.ne.s32.totalorder %s92, %s93
      %p105 = scmp.eq.s32.totalorder %s20, 1
      %p106 = por %p104, %p105
      %p108 = scmp.ne.s32.totalorder %s93, %s107
      %p109 = scmp.eq.s32.totalorder %s20, 0
      %p110 = por %p108, %p109
      %s112 = sadd.s32 %s111, 1
      %p115 = scmp.eq.s32.totalorder %s14, 1
      %p116 = scmp.ne.s32.totalorder %s111, %s113
      %p117 = scmp.eq.s32.totalorder %s14, 0
      %p118 = por %p116, %p117
      %p119 = scmp.ne.s32.totalorder %s111, %s113
      %p120 = scmp.eq.s32.totalorder %s19, 1
      %p121 = por %p119, %p120
      %p122 = scmp.ne.s32.totalorder %s113, %s114
      %p123 = scmp.eq.s32.totalorder %s19, 0
      %p124 = por %p122, %p123
      %p125 = scmp.ne.s32.totalorder %s113, %s114
      %p126 = scmp.eq.s32.totalorder %s20, 1
      %p127 = por %p125, %p126
      %p129 = scmp.ne.s32.totalorder %s114, %s128
      %p130 = scmp.eq.s32.totalorder %s20, 0
      %p131 = por %p129, %p130
      %s132 = ssub.s32 %s14, %s21
      %p133 = scmp.eq.s32.totalorder %s132, 0
      %s135 = sadd.s32 %s134, 1
      %s136 = scalar_select %p133, %s134, %s135
      %p139 = pneg %p133
      %p140 = scmp.eq.s32.totalorder %s14, 1
      %p141 = por %p139, %p140
      %p142 = scmp.ne.s32.totalorder %s134, %s137
      %p143 = scmp.eq.s32.totalorder %s14, 0
      %p144 = por %p142, %p143
      %p145 = scmp.ne.s32.totalorder %s134, %s137
      %p146 = scmp.eq.s32.totalorder %s19, 1
      %p147 = por %p145, %p146
      %p148 = scmp.ne.s32.totalorder %s137, %s138
      %p149 = scmp.eq.s32.totalorder %s19, 0
      %p150 = por %p148, %p149
      %p151 = scmp.ne.s32.totalorder %s137, %s138
      %p152 = scmp.eq.s32.totalorder %s20, 1
      %p153 = por %p151, %p152
      %p155 = scmp.ne.s32.totalorder %s138, %s154
      %p156 = scmp.eq.s32.totalorder %s20, 0
      %p157 = por %p155, %p156
      %p158 = scmp.le.s32.totalorder 1, %s14
      %p159 = scmp.lt.s32.totalorder %s14, 3
      %p160 = pnand %p158, %p159
      %p161 = pneg %p160
      // Predicated region
      $region9: #{model_embeddings_forward.1} parent=5 // pred_check
        _
      $region10: #{model_embeddings_forward.1} parent=5 // pred_check_branch
        %163 = sbr.rel (%p160) target = $region12
      $region11: #{model_embeddings_forward.1} parent=5 // pred_region
        %s164 = ssub.s32 %s14, 1
        // Predicated region
        $region13: #{model_embeddings_forward.1} parent=11 // pred_check
          %p165 = pneg %p61
        $region14: #{model_embeddings_forward.1} parent=11 // pred_check_branch
          %167 = sbr.rel (%p165) target = $region16
        $region15: #{model_embeddings_forward.1} parent=11 // pred_region
          _
        $region16: #{model_embeddings_forward.1} parent=11 // pred_fallthru
          _
        // Predicated region
        $region17: #{model_embeddings_forward.1} parent=11 // pred_check
          %p168 = pneg %p82
        $region18: #{model_embeddings_forward.1} parent=11 // pred_check_branch
          %170 = sbr.rel (%p168) target = $region20
        $region19: #{model_embeddings_forward.1} parent=11 // pred_region
          _
        $region20: #{model_embeddings_forward.1} parent=11 // pred_fallthru
          _
        // Predicated region
        $region21: #{model_embeddings_forward.1} parent=11 // pred_check
          %p171 = pneg %p103
        $region22: #{model_embeddings_forward.1} parent=11 // pred_check_branch
          %173 = sbr.rel (%p171) target = $region24
        $region23: #{model_embeddings_forward.1} parent=11 // pred_region
          _
        $region24: #{model_embeddings_forward.1} parent=11 // pred_fallthru
          _
        // Predicated region
        $region25: #{model_embeddings_forward.1} parent=11 // pred_check
          %p174 = pneg %p124
        $region26: #{model_embeddings_forward.1} parent=11 // pred_check_branch
          %176 = sbr.rel (%p174) target = $region28
        $region27: #{model_embeddings_forward.1} parent=11 // pred_region
          _
        $region28: #{model_embeddings_forward.1} parent=11 // pred_fallthru
          _
      $region12: #{model_embeddings_forward.1} parent=5 // pred_fallthru
        _
      %p177 = scmp.lt.s32.totalorder %s14, 2
      // Predicated region
      $region29: #{model_embeddings_forward.1} parent=5 // pred_check
        %p178 = pneg %p177
      $region30: #{model_embeddings_forward.1} parent=5 // pred_check_branch
        %180 = sbr.rel (%p178) target = $region32
      $region31: #{model_embeddings_forward.1} parent=5 // pred_region
        // Predicated region
        $region33: #{model_embeddings_forward.1} parent=31 // pred_check
          %p181 = pneg %p34
        $region34: #{model_embeddings_forward.1} parent=31 // pred_check_branch
          %183 = sbr.rel (%p181) target = $region36
        $region35: #{model_embeddings_forward.1} parent=31 // pred_region
          %s184 = sand.u32 %s24, 1
          %s185 = sand.u32 %s24, 1
          %s186 = smul.addr %s185, 112
          %s187 = scalar_lea.vmem [#allocation2], %s186
          %s188 = smul.u32 2, %s14
          %s189 = smul.addr %s188, 4
          %s190 = scalar_lea.vmem %s0, %s189
          // Predicated region
          $region37: #{model_embeddings_forward.1} parent=35 // pred_check
            _
          $region38: #{model_embeddings_forward.1} parent=35 // pred_check_branch
            %192 = sbr.rel (0) target = $region40
          $region39: #{model_embeddings_forward.1} parent=35 // pred_region
            // Predicated region
            $region41: #{model_embeddings_forward.1} parent=39 // pred_check
              _
            $region42: #{model_embeddings_forward.1} parent=39 // pred_check_branch
              %194 = sbr.rel target = $region44
            $region43: #{model_embeddings_forward.1} parent=39 // pred_region
              // Predicated region
              $region56: #{model_embeddings_forward.1} parent=43 // pred_check
                _
              $region57: #{model_embeddings_forward.1} parent=43 // pred_check_branch
                %263 = sbr.rel (0) target = $region59
              $region58: #{model_embeddings_forward.1} parent=43 // pred_region
                loop: start=0, step=1, limit=1
                $region60: #{model_embeddings_forward.1} parent=58 // loop_pre_header
                  _
                $region61: #{model_embeddings_forward.1} parent=58 // loop_header
                  %s265 = sphi 0, %s269
                  %p266 = scmp.ge.s32.totalorder %s265, 1
                  %s270 = sphi %s190, %s190
                  %s271 = sphi %s187, %s187
                $region62: #{model_embeddings_forward.1} parent=58 // loop_header_branch
                  %268 = sbr.rel (%p266) target = $region66
                $region63: #{model_embeddings_forward.1} parent=58 // loop_body
                  _
                $region64: #{model_embeddings_forward.1} parent=58 // loop_footer
                  %s269 = sadd.s32 1, %s265
                $region65: #{model_embeddings_forward.1} parent=58 // loop_footer_branch
                  %264 = sbr.rel target = $region61
                $region66: #{model_embeddings_forward.1} parent=58 // loop_exit
                  _
                loop: start=0, step=1, limit=1
                $region67: #{model_embeddings_forward.1} parent=58 // loop_pre_header
                  _
                $region68: #{model_embeddings_forward.1} parent=58 // loop_header
                  %s274 = sphi 0, %s278
                  %p275 = scmp.ge.s32.totalorder %s274, 1
                  %s279 = sphi %s190, %s190
                  %s280 = sphi %s187, %s187
                $region69: #{model_embeddings_forward.1} parent=58 // loop_header_branch
                  %277 = sbr.rel (%p275) target = $region73
                $region70: #{model_embeddings_forward.1} parent=58 // loop_body
                  %v281 = vld [vmem:[%s279] sm:$0xf]
                  %282 = vst [vmem:[%s280] sm:$0xf] %v281
                  %v283 = vld [vmem:[%s279 + $0x4] sm:$0xf]
                  %284 = vst [vmem:[%s280 + $0x4] sm:$0xf] %v283
                  %v285 = vld [vmem:[%s279 + $0x10] sm:$0xf]
                  %286 = vst [vmem:[%s280 + $0x8] sm:$0xf] %v285
                  %v287 = vld [vmem:[%s279 + $0x14] sm:$0xf]
                  %288 = vst [vmem:[%s280 + $0xc] sm:$0xf] %v287
                  %v289 = vld [vmem:[%s279 + $0x20] sm:$0xf]
                  %290 = vst [vmem:[%s280 + $0x10] sm:$0xf] %v289
                  %v291 = vld [vmem:[%s279 + $0x24] sm:$0xf]
                  %292 = vst [vmem:[%s280 + $0x14] sm:$0xf] %v291
                  %v293 = vld [vmem:[%s279 + $0x30] sm:$0xf]
                  %294 = vst [vmem:[%s280 + $0x18] sm:$0xf] %v293
                  %v295 = vld [vmem:[%s279 + $0x34] sm:$0xf]
                  %296 = vst [vmem:[%s280 + $0x1c] sm:$0xf] %v295
                  %v297 = vld [vmem:[%s279 + $0x40] sm:$0xf]
                  %298 = vst [vmem:[%s280 + $0x20] sm:$0xf] %v297
                  %v299 = vld [vmem:[%s279 + $0x44] sm:$0xf]
                  %300 = vst [vmem:[%s280 + $0x24] sm:$0xf] %v299
                  %v301 = vld [vmem:[%s279 + $0x50] sm:$0xf]
                  %302 = vst [vmem:[%s280 + $0x28] sm:$0xf] %v301
                  %v303 = vld [vmem:[%s279 + $0x54] sm:$0xf]
                  %304 = vst [vmem:[%s280 + $0x2c] sm:$0xf] %v303
                  %v305 = vld [vmem:[%s279 + $0x60] sm:$0xf]
                  %306 = vst [vmem:[%s280 + $0x30] sm:$0xf] %v305
                  %v307 = vld [vmem:[%s279 + $0x64] sm:$0xf]
                  %308 = vst [vmem:[%s280 + $0x34] sm:$0xf] %v307
                  %v309 = vld [vmem:[%s279 + $0x70] sm:$0xf]
                  %310 = vst [vmem:[%s280 + $0x38] sm:$0xf] %v309
                  %v311 = vld [vmem:[%s279 + $0x74] sm:$0xf]
                  %312 = vst [vmem:[%s280 + $0x3c] sm:$0xf] %v311
                  %v313 = vld [vmem:[%s279 + $0x80] sm:$0xf]
                  %314 = vst [vmem:[%s280 + $0x40] sm:$0xf] %v313
                  %v315 = vld [vmem:[%s279 + $0x84] sm:$0xf]
                  %316 = vst [vmem:[%s280 + $0x44] sm:$0xf] %v315
                  %v317 = vld [vmem:[%s279 + $0x90] sm:$0xf]
                  %318 = vst [vmem:[%s280 + $0x48] sm:$0xf] %v317
                  %v319 = vld [vmem:[%s279 + $0x94] sm:$0xf]
                  %320 = vst [vmem:[%s280 + $0x4c] sm:$0xf] %v319
                  %v321 = vld [vmem:[%s279 + $0xa0] sm:$0xf]
                  %322 = vst [vmem:[%s280 + $0x50] sm:$0xf] %v321
                  %v323 = vld [vmem:[%s279 + $0xa4] sm:$0xf]
                  %324 = vst [vmem:[%s280 + $0x54] sm:$0xf] %v323
                  %v325 = vld [vmem:[%s279 + $0xb0] sm:$0xf]
                  %326 = vst [vmem:[%s280 + $0x58] sm:$0xf] %v325
                  %v327 = vld [vmem:[%s279 + $0xb4] sm:$0xf]
                  %328 = vst [vmem:[%s280 + $0x5c] sm:$0xf] %v327
                  %v329 = vld [vmem:[%s279 + $0xc0] sm:$0xf]
                  %330 = vst [vmem:[%s280 + $0x60] sm:$0xf] %v329
                  %v331 = vld [vmem:[%s279 + $0xc4] sm:$0xf]
                  %332 = vst [vmem:[%s280 + $0x64] sm:$0xf] %v331
                  %v333 = vld [vmem:[%s279 + $0xd0] sm:$0xf]
                  %334 = vst [vmem:[%s280 + $0x68] sm:$0xf] %v333
                  %v335 = vld [vmem:[%s279 + $0xd4] sm:$0xf]
                  %336 = vst [vmem:[%s280 + $0x6c] sm:$0xf] %v335
                $region71: #{model_embeddings_forward.1} parent=58 // loop_footer
                  %s278 = sadd.s32 1, %s274
                $region72: #{model_embeddings_forward.1} parent=58 // loop_footer_branch
                  %273 = sbr.rel target = $region68
                $region73: #{model_embeddings_forward.1} parent=58 // loop_exit
                  _
              $region59: #{model_embeddings_forward.1} parent=43 // pred_fallthru
                _
            $region44: #{model_embeddings_forward.1} parent=39 // pred_fallthru
              _
            // Predicated region
            $region45: #{model_embeddings_forward.1} parent=39 // pred_check
              _
            $region46: #{model_embeddings_forward.1} parent=39 // pred_check_branch
              %196 = sbr.rel (0) target = $region48
            $region47: #{model_embeddings_forward.1} parent=39 // pred_region
              loop: start=0, step=1, limit=1
              $region49: #{model_embeddings_forward.1} parent=47 // loop_pre_header
                _
              $region50: #{model_embeddings_forward.1} parent=47 // loop_header
                %s199 = sphi 0, %s203
                %p200 = scmp.ge.s32.totalorder %s199, 1
                %s204 = sphi %s190, %s190
                %s205 = sphi %s187, %s187
              $region51: #{model_embeddings_forward.1} parent=47 // loop_header_branch
                %202 = sbr.rel (%p200) target = $region55
              $region52: #{model_embeddings_forward.1} parent=47 // loop_body
                %v206 = vld [vmem:[%s204] sm:$0xf]
                %207 = vst [vmem:[%s205] sm:$0xf] %v206
                %v208 = vld [vmem:[%s204 + $0x4] sm:$0xf]
                %209 = vst [vmem:[%s205 + $0x4] sm:$0xf] %v208
                %v210 = vld [vmem:[%s204 + $0x10] sm:$0xf]
                %211 = vst [vmem:[%s205 + $0x8] sm:$0xf] %v210
                %v212 = vld [vmem:[%s204 + $0x14] sm:$0xf]
                %213 = vst [vmem:[%s205 + $0xc] sm:$0xf] %v212
                %v214 = vld [vmem:[%s204 + $0x20] sm:$0xf]
                %215 = vst [vmem:[%s205 + $0x10] sm:$0xf] %v214
                %v216 = vld [vmem:[%s204 + $0x24] sm:$0xf]
                %217 = vst [vmem:[%s205 + $0x14] sm:$0xf] %v216
                %v218 = vld [vmem:[%s204 + $0x30] sm:$0xf]
                %219 = vst [vmem:[%s205 + $0x18] sm:$0xf] %v218
                %v220 = vld [vmem:[%s204 + $0x34] sm:$0xf]
                %221 = vst [vmem:[%s205 + $0x1c] sm:$0xf] %v220
                %v222 = vld [vmem:[%s204 + $0x40] sm:$0xf]
                %223 = vst [vmem:[%s205 + $0x20] sm:$0xf] %v222
                %v224 = vld [vmem:[%s204 + $0x44] sm:$0xf]
                %225 = vst [vmem:[%s205 + $0x24] sm:$0xf] %v224
                %v226 = vld [vmem:[%s204 + $0x50] sm:$0xf]
                %227 = vst [vmem:[%s205 + $0x28] sm:$0xf] %v226
                %v228 = vld [vmem:[%s204 + $0x54] sm:$0xf]
                %229 = vst [vmem:[%s205 + $0x2c] sm:$0xf] %v228
                %v230 = vld [vmem:[%s204 + $0x60] sm:$0xf]
                %231 = vst [vmem:[%s205 + $0x30] sm:$0xf] %v230
                %v232 = vld [vmem:[%s204 + $0x64] sm:$0xf]
                %233 = vst [vmem:[%s205 + $0x34] sm:$0xf] %v232
                %v234 = vld [vmem:[%s204 + $0x70] sm:$0xf]
                %235 = vst [vmem:[%s205 + $0x38] sm:$0xf] %v234
                %v236 = vld [vmem:[%s204 + $0x74] sm:$0xf]
                %237 = vst [vmem:[%s205 + $0x3c] sm:$0xf] %v236
                %v238 = vld [vmem:[%s204 + $0x80] sm:$0xf]
                %239 = vst [vmem:[%s205 + $0x40] sm:$0xf] %v238
                %v240 = vld [vmem:[%s204 + $0x84] sm:$0xf]
                %241 = vst [vmem:[%s205 + $0x44] sm:$0xf] %v240
                %v242 = vld [vmem:[%s204 + $0x90] sm:$0xf]
                %243 = vst [vmem:[%s205 + $0x48] sm:$0xf] %v242
                %v244 = vld [vmem:[%s204 + $0x94] sm:$0xf]
                %245 = vst [vmem:[%s205 + $0x4c] sm:$0xf] %v244
                %v246 = vld [vmem:[%s204 + $0xa0] sm:$0xf]
                %247 = vst [vmem:[%s205 + $0x50] sm:$0xf] %v246
                %v248 = vld [vmem:[%s204 + $0xa4] sm:$0xf]
                %249 = vst [vmem:[%s205 + $0x54] sm:$0xf] %v248
                %v250 = vld [vmem:[%s204 + $0xb0] sm:$0xf]
                %251 = vst [vmem:[%s205 + $0x58] sm:$0xf] %v250
                %v252 = vld [vmem:[%s204 + $0xb4] sm:$0xf]
                %253 = vst [vmem:[%s205 + $0x5c] sm:$0xf] %v252
                %v254 = vld [vmem:[%s204 + $0xc0] sm:$0xf]
                %255 = vst [vmem:[%s205 + $0x60] sm:$0xf] %v254
                %v256 = vld [vmem:[%s204 + $0xc4] sm:$0xf]
                %257 = vst [vmem:[%s205 + $0x64] sm:$0xf] %v256
                %v258 = vld [vmem:[%s204 + $0xd0] sm:$0xf]
                %259 = vst [vmem:[%s205 + $0x68] sm:$0xf] %v258
                %v260 = vld [vmem:[%s204 + $0xd4] sm:$0xf]
                %261 = vst [vmem:[%s205 + $0x6c] sm:$0xf] %v260
              $region53: #{model_embeddings_forward.1} parent=47 // loop_footer
                %s203 = sadd.s32 1, %s199
              $region54: #{model_embeddings_forward.1} parent=47 // loop_footer_branch
                %198 = sbr.rel target = $region50
              $region55: #{model_embeddings_forward.1} parent=47 // loop_exit
                _
            $region48: #{model_embeddings_forward.1} parent=39 // pred_fallthru
              _
          $region40: #{model_embeddings_forward.1} parent=35 // pred_fallthru
            _
          %337 = vnop
        $region36: #{model_embeddings_forward.1} parent=31 // pred_fallthru
          _
      $region32: #{model_embeddings_forward.1} parent=5 // pred_fallthru
        _
      %p338 = scmp.le.s32.totalorder 1, %s14
      %p339 = scmp.lt.s32.totalorder %s14, 3
      %p340 = pnand %p338, %p339
      %p341 = pneg %p340
      // Predicated region
      $region74: #{model_embeddings_forward.1} parent=5 // pred_check
        _
      $region75: #{model_embeddings_forward.1} parent=5 // pred_check_branch
        %343 = sbr.rel (%p340) target = $region77
      $region76: #{model_embeddings_forward.1} parent=5 // pred_region
        %s344 = ssub.s32 %s14, 1
        %s345 = sand.u32 %s27, 1
        %s346 = sand.u32 %s27, 1
        %s347 = smul.addr %s346, 112
        %s348 = scalar_lea.vmem [#allocation2], %s347
        // Predicated region
        $region78: #{model_embeddings_forward.1} parent=76 // pred_check
          %p349 = pneg %p40
        $region79: #{model_embeddings_forward.1} parent=76 // pred_check_branch
          %351 = sbr.rel (%p349) target = $region81
        $region80: #{model_embeddings_forward.1} parent=76 // pred_region
          _
        $region81: #{model_embeddings_forward.1} parent=76 // pred_fallthru
          _
        %s352 = sand.u32 %s27, 1
        %s353 = sand.u32 %s27, 1
        %s354 = smul.addr %s353, 112
        %s355 = scalar_lea.vmem [#allocation2], %s354
        %p356 = pneg %p40
        %p357 = pneg %p37
        %p358 = pneg %p61
        %p359 = pneg %p58
        %p360 = pneg %p82
        %p361 = pneg %p79
        %p362 = pneg %p103
        %p363 = pneg %p100
        %p364 = pneg %p124
        %p365 = pneg %p121
        %p366 = pneg %p150
        %p367 = pneg %p147
        %s368 = sand.u32 %s137, 1
        %s369 = scalar_lea.sflag [#allocation4], %s368
        %s370 = sand.u32 %s137, 1
        %s371 = smul.addr %s370, 16
        %s372 = scalar_lea.vmem [#allocation3], %s371
        %s373 = smul.u32 2, %s19
        %s374 = smul.u32 2, %s19
        %v376 = vld [vmem:[%s348] sm:$0xf]
        %v377 = vld [vmem:[%s348 + $0x4] sm:$0xf]
        %v378 = vld [vmem:[%s1] sm:$0xf]
        %v379 = vld [vmem:[%s1 + $0x4] sm:$0xf]
        %v380 = vld [vmem:[%s1 + $0x8] sm:$0xf]
        %v381 = vld [vmem:[%s1 + $0xc] sm:$0xf]
        %v382 = vld [vmem:[%s1 + $0x10] sm:$0xf]
        %v383 = vld [vmem:[%s1 + $0x14] sm:$0xf]
        %v384 = vld [vmem:[%s1 + $0x18] sm:$0xf]
        %v385 = vld [vmem:[%s1 + $0x1c] sm:$0xf]
        %s386 = scalar_lea.vmem %s348, 8 [#allocation2]
        %v387 = vld [vmem:[%s386] sm:$0xf]
        %v388 = vld [vmem:[%s386 + $0x4] sm:$0xf]
        %s389 = scalar_lea.vmem %s1, 32
        %v390 = vld [vmem:[%s389] sm:$0xf]
        %v391 = vld [vmem:[%s389 + $0x4] sm:$0xf]
        %v392 = vld [vmem:[%s389 + $0x8] sm:$0xf]
        %v393 = vld [vmem:[%s389 + $0xc] sm:$0xf]
        %v394 = vld [vmem:[%s389 + $0x10] sm:$0xf]
        %v395 = vld [vmem:[%s389 + $0x14] sm:$0xf]
        %v396 = vld [vmem:[%s389 + $0x18] sm:$0xf]
        %v397 = vld [vmem:[%s389 + $0x1c] sm:$0xf]
        %v400 = vunpack.c.l.b16 %v387
        %v401 = vunpack.c.l.b16 %v388
        %v402 = vpack.c.b16 %v401, %v400
        %v411 = vunpack.c.l.b16 %v390
        %v412 = vunpack.c.l.b16 %v391
        %v413 = vunpack.c.l.b16 %v392
        %v414 = vunpack.c.l.b16 %v393
        %v415 = vunpack.c.l.b16 %v394
        %v416 = vunpack.c.l.b16 %v395
        %v417 = vunpack.c.l.b16 %v396
        %v418 = vunpack.c.l.b16 %v397
        %v419 = vpack.c.b16 %v412, %v411
        %v420 = vpack.c.b16 %v414, %v413
        %v421 = vpack.c.b16 %v416, %v415
        %v422 = vpack.c.b16 %v418, %v417
        %vm427 = vcmask 523264
        %v429 = vsel %vm427, %v402, 0
        %431 = vmatprep.subr.bf16.mxu0 0
        %432 = vmatpush1.bf16.msra.mxu0 %v419
        %433 = vmatprep.subr.bf16.mxu0 0
        %434 = vmatpush1.bf16.msra.mxu0 %v420
        %435 = vmatprep.subr.bf16.mxu0 0
        %436 = vmatpush1.bf16.msra.mxu0 %v421
        %437 = vmatprep.subr.bf16.mxu0 0
        %438 = vmatpush1.bf16.msra.mxu0 %v422
        %439 = vmatprep.subr.bf16.mxu0 0
        %440 = vmatpush1.bf16.msra.mxu0 0
        %441 = vmatprep.subr.bf16.mxu0 0
        %442 = vmatpush1.bf16.msra.mxu0 0
        %443 = vmatprep.subr.bf16.mxu0 0
        %444 = vmatpush1.bf16.msra.mxu0 0
        %445 = vmatprep.subr.bf16.mxu0 0
        %446 = vmatpush1.bf16.msra.mxu0 0
        %447 = vmatprep.subr.bf16.mxu0 0
        %448 = vmatpush1.bf16.msra.mxu0 0
        %449 = vmatprep.subr.bf16.mxu0 0
        %450 = vmatpush1.bf16.msra.mxu0 0
        %451 = vmatprep.subr.bf16.mxu0 0
        %452 = vmatpush1.bf16.msra.mxu0 0
        %453 = vmatprep.subr.bf16.mxu0 0
        %454 = vmatpush1.bf16.msra.mxu0 0
        %455 = vmatprep.subr.bf16.mxu0 0
        %456 = vmatpush1.bf16.msra.mxu0 0
        %457 = vmatprep.subr.bf16.mxu0 0
        %458 = vmatpush1.bf16.msra.mxu0 0
        %459 = vmatprep.subr.bf16.mxu0 0
        %460 = vmatpush1.bf16.msra.mxu0 0
        %461 = vmatprep.subr.bf16.mxu0 0
        %462 = vmatpush1.bf16.msra.mxu0 0
        %463 = vmatprep.mubr.bf16.mxu0 0
        %464 = vmatmul.mubr.bf16.gmra.mrb[0].mxu0 %v429
        %v465 = vpop.f32.mrb[0].mxu0
        %v466 = vadd.f32 0.0, %v465
        %v467 = vpop.f32.mrb[0].mxu0
        %v468 = vpop.f32.mrb[0].mxu0
        %v469 = vadd.f32 0.0, %v468
        %v470 = vpop.f32.mrb[0].mxu0
        %471 = vdwg.mxu0
        %v474 = vunpack.c.l.b16 %v376
        %v475 = vunpack.c.l.b16 %v377
        %v476 = vpack.c.b16 %v475, %v474
        %v485 = vunpack.c.l.b16 %v378
        %v486 = vunpack.c.l.b16 %v379
        %v487 = vunpack.c.l.b16 %v380
        %v488 = vunpack.c.l.b16 %v381
        %v489 = vunpack.c.l.b16 %v382
        %v490 = vunpack.c.l.b16 %v383
        %v491 = vunpack.c.l.b16 %v384
        %v492 = vunpack.c.l.b16 %v385
        %v493 = vpack.c.b16 %v486, %v485
        %v494 = vpack.c.b16 %v488, %v487
        %v495 = vpack.c.b16 %v490, %v489
        %v496 = vpack.c.b16 %v492, %v491
        %v502 = vsel %vm427, %v476, 0
        %504 = vmatprep.subr.bf16.mxu0 0
        %505 = vmatpush1.bf16.msra.mxu0 %v493
        %506 = vmatprep.subr.bf16.mxu0 0
        %507 = vmatpush1.bf16.msra.mxu0 %v494
        %508 = vmatprep.subr.bf16.mxu0 0
        %509 = vmatpush1.bf16.msra.mxu0 %v495
        %510 = vmatprep.subr.bf16.mxu0 0
        %511 = vmatpush1.bf16.msra.mxu0 %v496
        %512 = vmatprep.subr.bf16.mxu0 0
        %513 = vmatpush1.bf16.msra.mxu0 0
        %514 = vmatprep.subr.bf16.mxu0 0
        %515 = vmatpush1.bf16.msra.mxu0 0
        %516 = vmatprep.subr.bf16.mxu0 0
        %517 = vmatpush1.bf16.msra.mxu0 0
        %518 = vmatprep.subr.bf16.mxu0 0
        %519 = vmatpush1.bf16.msra.mxu0 0
        %520 = vmatprep.subr.bf16.mxu0 0
        %521 = vmatpush1.bf16.msra.mxu0 0
        %522 = vmatprep.subr.bf16.mxu0 0
        %523 = vmatpush1.bf16.msra.mxu0 0
        %524 = vmatprep.subr.bf16.mxu0 0
        %525 = vmatpush1.bf16.msra.mxu0 0
        %526 = vmatprep.subr.bf16.mxu0 0
        %527 = vmatpush1.bf16.msra.mxu0 0
        %528 = vmatprep.subr.bf16.mxu0 0
        %529 = vmatpush1.bf16.msra.mxu0 0
        %530 = vmatprep.subr.bf16.mxu0 0
        %531 = vmatpush1.bf16.msra.mxu0 0
        %532 = vmatprep.subr.bf16.mxu0 0
        %533 = vmatpush1.bf16.msra.mxu0 0
        %534 = vmatprep.subr.bf16.mxu0 0
        %535 = vmatpush1.bf16.msra.mxu0 0
        %536 = vmatprep.mubr.bf16.mxu0 0
        %537 = vmatmul.mubr.bf16.gmra.mrb[0].mxu0 %v502
        %v538 = vpop.f32.mrb[0].mxu0
        %v539 = vadd.f32 %v466, %v538
        %v540 = vpop.f32.mrb[0].mxu0
        %v541 = vpop.f32.mrb[0].mxu0
        %v542 = vadd.f32 %v469, %v541
        %v543 = vpop.f32.mrb[0].mxu0
        %544 = vdwg.mxu0
        %s545 = scalar_lea.vmem %s348, 16 [#allocation2]
        %v546 = vld [vmem:[%s545] sm:$0xf]
        %v547 = vld [vmem:[%s545 + $0x4] sm:$0xf]
        %s548 = scalar_lea.vmem %s1, 64
        %v549 = vld [vmem:[%s548] sm:$0xf]
        %v550 = vld [vmem:[%s548 + $0x4] sm:$0xf]
        %v551 = vld [vmem:[%s548 + $0x8] sm:$0xf]
        %v552 = vld [vmem:[%s548 + $0xc] sm:$0xf]
        %v553 = vld [vmem:[%s548 + $0x10] sm:$0xf]
        %v554 = vld [vmem:[%s548 + $0x14] sm:$0xf]
        %v555 = vld [vmem:[%s548 + $0x18] sm:$0xf]
        %v556 = vld [vmem:[%s548 + $0x1c] sm:$0xf]
        %v559 = vunpack.c.l.b16 %v546
        %v560 = vunpack.c.l.b16 %v547
        %v561 = vpack.c.b16 %v560, %v559
        %v570 = vunpack.c.l.b16 %v549
        %v571 = vunpack.c.l.b16 %v550
        %v572 = vunpack.c.l.b16 %v551
        %v573 = vunpack.c.l.b16 %v552
        %v574 = vunpack.c.l.b16 %v553
        %v575 = vunpack.c.l.b16 %v554
        %v576 = vunpack.c.l.b16 %v555
        %v577 = vunpack.c.l.b16 %v556
        %v578 = vpack.c.b16 %v571, %v570
        %v579 = vpack.c.b16 %v573, %v572
        %v580 = vpack.c.b16 %v575, %v574
        %v581 = vpack.c.b16 %v577, %v576
        %v587 = vsel %vm427, %v561, 0
        %589 = vmatprep.subr.bf16.mxu0 0
        %590 = vmatpush1.bf16.msra.mxu0 %v578
        %591 = vmatprep.subr.bf16.mxu0 0
        %592 = vmatpush1.bf16.msra.mxu0 %v579
        %593 = vmatprep.subr.bf16.mxu0 0
        %594 = vmatpush1.bf16.msra.mxu0 %v580
        %595 = vmatprep.subr.bf16.mxu0 0
        %596 = vmatpush1.bf16.msra.mxu0 %v581
        %597 = vmatprep.subr.bf16.mxu0 0
        %598 = vmatpush1.bf16.msra.mxu0 0
        %599 = vmatprep.subr.bf16.mxu0 0
        %600 = vmatpush1.bf16.msra.mxu0 0
        %601 = vmatprep.subr.bf16.mxu0 0
        %602 = vmatpush1.bf16.msra.mxu0 0
        %603 = vmatprep.subr.bf16.mxu0 0
        %604 = vmatpush1.bf16.msra.mxu0 0
        %605 = vmatprep.subr.bf16.mxu0 0
        %606 = vmatpush1.bf16.msra.mxu0 0
        %607 = vmatprep.subr.bf16.mxu0 0
        %608 = vmatpush1.bf16.msra.mxu0 0
        %609 = vmatprep.subr.bf16.mxu0 0
        %610 = vmatpush1.bf16.msra.mxu0 0
        %611 = vmatprep.subr.bf16.mxu0 0
        %612 = vmatpush1.bf16.msra.mxu0 0
        %613 = vmatprep.subr.bf16.mxu0 0
        %614 = vmatpush1.bf16.msra.mxu0 0
        %615 = vmatprep.subr.bf16.mxu0 0
        %616 = vmatpush1.bf16.msra.mxu0 0
        %617 = vmatprep.subr.bf16.mxu0 0
        %618 = vmatpush1.bf16.msra.mxu0 0
        %619 = vmatprep.subr.bf16.mxu0 0
        %620 = vmatpush1.bf16.msra.mxu0 0
        %621 = vmatprep.mubr.bf16.mxu0 0
        %622 = vmatmul.mubr.bf16.gmra.mrb[0].mxu0 %v587
        %v623 = vpop.f32.mrb[0].mxu0
        %v624 = vadd.f32 0.0, %v623
        %v625 = vpop.f32.mrb[0].mxu0
        %v626 = vpop.f32.mrb[0].mxu0
        %v627 = vadd.f32 0.0, %v626
        %v628 = vpop.f32.mrb[0].mxu0
        %629 = vdwg.mxu0
        %v630 = vadd.f32 %v539, %v624
        %v631 = vadd.f32 %v542, %v627
        %s632 = scalar_lea.vmem %s348, 24 [#allocation2]
        %v633 = vld [vmem:[%s632] sm:$0xf]
        %v634 = vld [vmem:[%s632 + $0x4] sm:$0xf]
        %s635 = scalar_lea.vmem %s1, 96
        %v636 = vld [vmem:[%s635] sm:$0xf]
        %v637 = vld [vmem:[%s635 + $0x4] sm:$0xf]
        %v638 = vld [vmem:[%s635 + $0x8] sm:$0xf]
        %v639 = vld [vmem:[%s635 + $0xc] sm:$0xf]
        %v640 = vld [vmem:[%s635 + $0x10] sm:$0xf]
        %v641 = vld [vmem:[%s635 + $0x14] sm:$0xf]
        %v642 = vld [vmem:[%s635 + $0x18] sm:$0xf]
        %v643 = vld [vmem:[%s635 + $0x1c] sm:$0xf]
        %v646 = vunpack.c.l.b16 %v633
        %v647 = vunpack.c.l.b16 %v634
        %v648 = vpack.c.b16 %v647, %v646
        %v657 = vunpack.c.l.b16 %v636
        %v658 = vunpack.c.l.b16 %v637
        %v659 = vunpack.c.l.b16 %v638
        %v660 = vunpack.c.l.b16 %v639
        %v661 = vunpack.c.l.b16 %v640
        %v662 = vunpack.c.l.b16 %v641
        %v663 = vunpack.c.l.b16 %v642
        %v664 = vunpack.c.l.b16 %v643
        %v665 = vpack.c.b16 %v658, %v657
        %v666 = vpack.c.b16 %v660, %v659
        %v667 = vpack.c.b16 %v662, %v661
        %v668 = vpack.c.b16 %v664, %v663
        %v674 = vsel %vm427, %v648, 0
        %676 = vmatprep.subr.bf16.mxu0 0
        %677 = vmatpush1.bf16.msra.mxu0 %v665
        %678 = vmatprep.subr.bf16.mxu0 0
        %679 = vmatpush1.bf16.msra.mxu0 %v666
        %680 = vmatprep.subr.bf16.mxu0 0
        %681 = vmatpush1.bf16.msra.mxu0 %v667
        %682 = vmatprep.subr.bf16.mxu0 0
        %683 = vmatpush1.bf16.msra.mxu0 %v668
        %684 = vmatprep.subr.bf16.mxu0 0
        %685 = vmatpush1.bf16.msra.mxu0 0
        %686 = vmatprep.subr.bf16.mxu0 0
        %687 = vmatpush1.bf16.msra.mxu0 0
        %688 = vmatprep.subr.bf16.mxu0 0
        %689 = vmatpush1.bf16.msra.mxu0 0
        %690 = vmatprep.subr.bf16.mxu0 0
        %691 = vmatpush1.bf16.msra.mxu0 0
        %692 = vmatprep.subr.bf16.mxu0 0
        %693 = vmatpush1.bf16.msra.mxu0 0
        %694 = vmatprep.subr.bf16.mxu0 0
        %695 = vmatpush1.bf16.msra.mxu0 0
        %696 = vmatprep.subr.bf16.mxu0 0
        %697 = vmatpush1.bf16.msra.mxu0 0
        %698 = vmatprep.subr.bf16.mxu0 0
        %699 = vmatpush1.bf16.msra.mxu0 0
        %700 = vmatprep.subr.bf16.mxu0 0
        %701 = vmatpush1.bf16.msra.mxu0 0
        %702 = vmatprep.subr.bf16.mxu0 0
        %703 = vmatpush1.bf16.msra.mxu0 0
        %704 = vmatprep.subr.bf16.mxu0 0
        %705 = vmatpush1.bf16.msra.mxu0 0
        %706 = vmatprep.subr.bf16.mxu0 0
        %707 = vmatpush1.bf16.msra.mxu0 0
        %708 = vmatprep.mubr.bf16.mxu0 0
        %709 = vmatmul.mubr.bf16.gmra.mrb[0].mxu0 %v674
        %v710 = vpop.f32.mrb[0].mxu0
        %v711 = vadd.f32 0.0, %v710
        %v712 = vpop.f32.mrb[0].mxu0
        %v713 = vpop.f32.mrb[0].mxu0
        %v714 = vadd.f32 0.0, %v713
        %v715 = vpop.f32.mrb[0].mxu0
        %716 = vdwg.mxu0
        %v717 = vadd.f32 %v630, %v711
        %v718 = vadd.f32 %v631, %v714
        %s719 = scalar_lea.vmem %s348, 32 [#allocation2]
        %v720 = vld [vmem:[%s719] sm:$0xf]
        %v721 = vld [vmem:[%s719 + $0x4] sm:$0xf]
        %s722 = scalar_lea.vmem %s1, 128
        %v723 = vld [vmem:[%s722] sm:$0xf]
        %v724 = vld [vmem:[%s722 + $0x4] sm:$0xf]
        %v725 = vld [vmem:[%s722 + $0x8] sm:$0xf]
        %v726 = vld [vmem:[%s722 + $0xc] sm:$0xf]
        %v727 = vld [vmem:[%s722 + $0x10] sm:$0xf]
        %v728 = vld [vmem:[%s722 + $0x14] sm:$0xf]
        %v729 = vld [vmem:[%s722 + $0x18] sm:$0xf]
        %v730 = vld [vmem:[%s722 + $0x1c] sm:$0xf]
        %v733 = vunpack.c.l.b16 %v720
        %v734 = vunpack.c.l.b16 %v721
        %v735 = vpack.c.b16 %v734, %v733
        %v744 = vunpack.c.l.b16 %v723
        %v745 = vunpack.c.l.b16 %v724
        %v746 = vunpack.c.l.b16 %v725
        %v747 = vunpack.c.l.b16 %v726
        %v748 = vunpack.c.l.b16 %v727
        %v749 = vunpack.c.l.b16 %v728
        %v750 = vunpack.c.l.b16 %v729
        %v751 = vunpack.c.l.b16 %v730
        %v752 = vpack.c.b16 %v745, %v744
        %v753 = vpack.c.b16 %v747, %v746
        %v754 = vpack.c.b16 %v749, %v748
        %v755 = vpack.c.b16 %v751, %v750
        %v761 = vsel %vm427, %v735, 0
        %763 = vmatprep.subr.bf16.mxu0 0
        %764 = vmatpush1.bf16.msra.mxu0 %v752
        %765 = vmatprep.subr.bf16.mxu0 0
        %766 = vmatpush1.bf16.msra.mxu0 %v753
        %767 = vmatprep.subr.bf16.mxu0 0
        %768 = vmatpush1.bf16.msra.mxu0 %v754
        %769 = vmatprep.subr.bf16.mxu0 0
        %770 = vmatpush1.bf16.msra.mxu0 %v755
        %771 = vmatprep.subr.bf16.mxu0 0
        %772 = vmatpush1.bf16.msra.mxu0 0
        %773 = vmatprep.subr.bf16.mxu0 0
        %774 = vmatpush1.bf16.msra.mxu0 0
        %775 = vmatprep.subr.bf16.mxu0 0
        %776 = vmatpush1.bf16.msra.mxu0 0
        %777 = vmatprep.subr.bf16.mxu0 0
        %778 = vmatpush1.bf16.msra.mxu0 0
        %779 = vmatprep.subr.bf16.mxu0 0
        %780 = vmatpush1.bf16.msra.mxu0 0
        %781 = vmatprep.subr.bf16.mxu0 0
        %782 = vmatpush1.bf16.msra.mxu0 0
        %783 = vmatprep.subr.bf16.mxu0 0
        %784 = vmatpush1.bf16.msra.mxu0 0
        %785 = vmatprep.subr.bf16.mxu0 0
        %786 = vmatpush1.bf16.msra.mxu0 0
        %787 = vmatprep.subr.bf16.mxu0 0
        %788 = vmatpush1.bf16.msra.mxu0 0
        %789 = vmatprep.subr.bf16.mxu0 0
        %790 = vmatpush1.bf16.msra.mxu0 0
        %791 = vmatprep.subr.bf16.mxu0 0
        %792 = vmatpush1.bf16.msra.mxu0 0
        %793 = vmatprep.subr.bf16.mxu0 0
        %794 = vmatpush1.bf16.msra.mxu0 0
        %795 = vmatprep.mubr.bf16.mxu0 0
        %796 = vmatmul.mubr.bf16.gmra.mrb[0].mxu0 %v761
        %v797 = vpop.f32.mrb[0].mxu0
        %v798 = vadd.f32 0.0, %v797
        %v799 = vpop.f32.mrb[0].mxu0
        %v800 = vpop.f32.mrb[0].mxu0
        %v801 = vadd.f32 0.0, %v800
        %v802 = vpop.f32.mrb[0].mxu0
        %803 = vdwg.mxu0
        %v804 = vadd.f32 %v717, %v798
        %v805 = vadd.f32 %v718, %v801
        %806 = vmatprep.subr.bf16.mxu0 0
        %807 = vmatpush1.bf16.msra.mxu0 %v419
        %808 = vmatprep.subr.bf16.mxu0 0
        %809 = vmatpush1.bf16.msra.mxu0 %v420
        %810 = vmatprep.subr.bf16.mxu0 0
        %811 = vmatpush1.bf16.msra.mxu0 %v421
        %812 = vmatprep.subr.bf16.mxu0 0
        %813 = vmatpush1.bf16.msra.mxu0 %v422
        %814 = vmatprep.subr.bf16.mxu0 0
        %815 = vmatpush1.bf16.msra.mxu0 0
        %816 = vmatprep.subr.bf16.mxu0 0
        %817 = vmatpush1.bf16.msra.mxu0 0
        %818 = vmatprep.subr.bf16.mxu0 0
        %819 = vmatpush1.bf16.msra.mxu0 0
        %820 = vmatprep.subr.bf16.mxu0 0
        %821 = vmatpush1.bf16.msra.mxu0 0
        %822 = vmatprep.subr.bf16.mxu0 0
        %823 = vmatpush1.bf16.msra.mxu0 0
        %824 = vmatprep.subr.bf16.mxu0 0
        %825 = vmatpush1.bf16.msra.mxu0 0
        %826 = vmatprep.subr.bf16.mxu0 0
        %827 = vmatpush1.bf16.msra.mxu0 0
        %828 = vmatprep.subr.bf16.mxu0 0
        %829 = vmatpush1.bf16.msra.mxu0 0
        %830 = vmatprep.subr.bf16.mxu0 0
        %831 = vmatpush1.bf16.msra.mxu0 0
        %832 = vmatprep.subr.bf16.mxu0 0
        %833 = vmatpush1.bf16.msra.mxu0 0
        %834 = vmatprep.subr.bf16.mxu0 0
        %835 = vmatpush1.bf16.msra.mxu0 0
        %836 = vmatprep.subr.bf16.mxu0 0
        %837 = vmatpush1.bf16.msra.mxu0 0
        %838 = vmatprep.mubr.bf16.mxu0 0
        %839 = vmatmul.mubr.bf16.gmra.mrb[0].mxu0 %v587
        %v840 = vpop.f32.mrb[0].mxu0
        %v841 = vadd.f32 0.0, %v840
        %v842 = vpop.f32.mrb[0].mxu0
        %v843 = vpop.f32.mrb[0].mxu0
        %v844 = vadd.f32 0.0, %v843
        %v845 = vpop.f32.mrb[0].mxu0
        %846 = vdwg.mxu0
        %847 = vmatprep.subr.bf16.mxu0 0
        %848 = vmatpush1.bf16.msra.mxu0 %v493
        %849 = vmatprep.subr.bf16.mxu0 0
        %850 = vmatpush1.bf16.msra.mxu0 %v494
        %851 = vmatprep.subr.bf16.mxu0 0
        %852 = vmatpush1.bf16.msra.mxu0 %v495
        %853 = vmatprep.subr.bf16.mxu0 0
        %854 = vmatpush1.bf16.msra.mxu0 %v496
        %855 = vmatprep.subr.bf16.mxu0 0
        %856 = vmatpush1.bf16.msra.mxu0 0
        %857 = vmatprep.subr.bf16.mxu0 0
        %858 = vmatpush1.bf16.msra.mxu0 0
        %859 = vmatprep.subr.bf16.mxu0 0
        %860 = vmatpush1.bf16.msra.mxu0 0
        %861 = vmatprep.subr.bf16.mxu0 0
        %862 = vmatpush1.bf16.msra.mxu0 0
        %863 = vmatprep.subr.bf16.mxu0 0
        %864 = vmatpush1.bf16.msra.mxu0 0
        %865 = vmatprep.subr.bf16.mxu0 0
        %866 = vmatpush1.bf16.msra.mxu0 0
        %867 = vmatprep.subr.bf16.mxu0 0
        %868 = vmatpush1.bf16.msra.mxu0 0
        %869 = vmatprep.subr.bf16.mxu0 0
        %870 = vmatpush1.bf16.msra.mxu0 0
        %871 = vmatprep.subr.bf16.mxu0 0
        %872 = vmatpush1.bf16.msra.mxu0 0
        %873 = vmatprep.subr.bf16.mxu0 0
        %874 = vmatpush1.bf16.msra.mxu0 0
        %875 = vmatprep.subr.bf16.mxu0 0
        %876 = vmatpush1.bf16.msra.mxu0 0
        %877 = vmatprep.subr.bf16.mxu0 0
        %878 = vmatpush1.bf16.msra.mxu0 0
        %879 = vmatprep.mubr.bf16.mxu0 0
        %880 = vmatmul.mubr.bf16.gmra.mrb[0].mxu0 %v429
        %v881 = vpop.f32.mrb[0].mxu0
        %v882 = vadd.f32 %v841, %v881
        %v883 = vpop.f32.mrb[0].mxu0
        %v884 = vpop.f32.mrb[0].mxu0
        %v885 = vadd.f32 %v844, %v884
        %v886 = vpop.f32.mrb[0].mxu0
        %887 = vdwg.mxu0
        %888 = vmatprep.subr.bf16.mxu0 0
        %889 = vmatpush1.bf16.msra.mxu0 %v578
        %890 = vmatprep.subr.bf16.mxu0 0
        %891 = vmatpush1.bf16.msra.mxu0 %v579
        %892 = vmatprep.subr.bf16.mxu0 0
        %893 = vmatpush1.bf16.msra.mxu0 %v580
        %894 = vmatprep.subr.bf16.mxu0 0
        %895 = vmatpush1.bf16.msra.mxu0 %v581
        %896 = vmatprep.subr.bf16.mxu0 0
        %897 = vmatpush1.bf16.msra.mxu0 0
        %898 = vmatprep.subr.bf16.mxu0 0
        %899 = vmatpush1.bf16.msra.mxu0 0
        %900 = vmatprep.subr.bf16.mxu0 0
        %901 = vmatpush1.bf16.msra.mxu0 0
        %902 = vmatprep.subr.bf16.mxu0 0
        %903 = vmatpush1.bf16.msra.mxu0 0
        %904 = vmatprep.subr.bf16.mxu0 0
        %905 = vmatpush1.bf16.msra.mxu0 0
        %906 = vmatprep.subr.bf16.mxu0 0
        %907 = vmatpush1.bf16.msra.mxu0 0
        %908 = vmatprep.subr.bf16.mxu0 0
        %909 = vmatpush1.bf16.msra.mxu0 0
        %910 = vmatprep.subr.bf16.mxu0 0
        %911 = vmatpush1.bf16.msra.mxu0 0
        %912 = vmatprep.subr.bf16.mxu0 0
        %913 = vmatpush1.bf16.msra.mxu0 0
        %914 = vmatprep.subr.bf16.mxu0 0
        %915 = vmatpush1.bf16.msra.mxu0 0
        %916 = vmatprep.subr.bf16.mxu0 0
        %917 = vmatpush1.bf16.msra.mxu0 0
        %918 = vmatprep.subr.bf16.mxu0 0
        %919 = vmatpush1.bf16.msra.mxu0 0
        %920 = vmatprep.mubr.bf16.mxu0 0
        %921 = vmatmul.mubr.bf16.gmra.mrb[0].mxu0 %v674
        %v922 = vpop.f32.mrb[0].mxu0
        %v923 = vadd.f32 0.0, %v922
        %v924 = vpop.f32.mrb[0].mxu0
        %v925 = vpop.f32.mrb[0].mxu0
        %v926 = vadd.f32 0.0, %v925
        %v927 = vpop.f32.mrb[0].mxu0
        %928 = vdwg.mxu0
        %v929 = vadd.f32 %v882, %v923
        %v930 = vadd.f32 %v885, %v926
        %931 = vmatprep.subr.bf16.mxu0 0
        %932 = vmatpush1.bf16.msra.mxu0 %v665
        %933 = vmatprep.subr.bf16.mxu0 0
        %934 = vmatpush1.bf16.msra.mxu0 %v666
        %935 = vmatprep.subr.bf16.mxu0 0
        %936 = vmatpush1.bf16.msra.mxu0 %v667
        %937 = vmatprep.subr.bf16.mxu0 0
        %938 = vmatpush1.bf16.msra.mxu0 %v668
        %939 = vmatprep.subr.bf16.mxu0 0
        %940 = vmatpush1.bf16.msra.mxu0 0
        %941 = vmatprep.subr.bf16.mxu0 0
        %942 = vmatpush1.bf16.msra.mxu0 0
        %943 = vmatprep.subr.bf16.mxu0 0
        %944 = vmatpush1.bf16.msra.mxu0 0
        %945 = vmatprep.subr.bf16.mxu0 0
        %946 = vmatpush1.bf16.msra.mxu0 0
        %947 = vmatprep.subr.bf16.mxu0 0
        %948 = vmatpush1.bf16.msra.mxu0 0
        %949 = vmatprep.subr.bf16.mxu0 0
        %950 = vmatpush1.bf16.msra.mxu0 0
        %951 = vmatprep.subr.bf16.mxu0 0
        %952 = vmatpush1.bf16.msra.mxu0 0
        %953 = vmatprep.subr.bf16.mxu0 0
        %954 = vmatpush1.bf16.msra.mxu0 0
        %955 = vmatprep.subr.bf16.mxu0 0
        %956 = vmatpush1.bf16.msra.mxu0 0
        %957 = vmatprep.subr.bf16.mxu0 0
        %958 = vmatpush1.bf16.msra.mxu0 0
        %959 = vmatprep.subr.bf16.mxu0 0
        %960 = vmatpush1.bf16.msra.mxu0 0
        %961 = vmatprep.subr.bf16.mxu0 0
        %962 = vmatpush1.bf16.msra.mxu0 0
        %963 = vmatprep.mubr.bf16.mxu0 0
        %964 = vmatmul.mubr.bf16.gmra.mrb[0].mxu0 %v761
        %v965 = vpop.f32.mrb[0].mxu0
        %v966 = vadd.f32 0.0, %v965
        %v967 = vpop.f32.mrb[0].mxu0
        %v968 = vpop.f32.mrb[0].mxu0
        %v969 = vadd.f32 0.0, %v968
        %v970 = vpop.f32.mrb[0].mxu0
        %971 = vdwg.mxu0
        %v972 = vadd.f32 %v929, %v966
        %v973 = vadd.f32 %v930, %v969
        %s974 = scalar_lea.vmem %s348, 40 [#allocation2]
        %v975 = vld [vmem:[%s974] sm:$0xf]
        %v976 = vld [vmem:[%s974 + $0x4] sm:$0xf]
        %v979 = vunpack.c.l.b16 %v975
        %v980 = vunpack.c.l.b16 %v976
        %v981 = vpack.c.b16 %v980, %v979
        %v983 = vsel %vm427, %v981, 0
        %985 = vmatprep.subr.bf16.mxu0 0
        %986 = vmatpush1.bf16.msra.mxu0 %v752
        %987 = vmatprep.subr.bf16.mxu0 0
        %988 = vmatpush1.bf16.msra.mxu0 %v753
        %989 = vmatprep.subr.bf16.mxu0 0
        %990 = vmatpush1.bf16.msra.mxu0 %v754
        %991 = vmatprep.subr.bf16.mxu0 0
        %992 = vmatpush1.bf16.msra.mxu0 %v755
        %993 = vmatprep.subr.bf16.mxu0 0
        %994 = vmatpush1.bf16.msra.mxu0 0
        %995 = vmatprep.subr.bf16.mxu0 0
        %996 = vmatpush1.bf16.msra.mxu0 0
        %997 = vmatprep.subr.bf16.mxu0 0
        %998 = vmatpush1.bf16.msra.mxu0 0
        %999 = vmatprep.subr.bf16.mxu0 0
        %1000 = vmatpush1.bf16.msra.mxu0 0
        %1001 = vmatprep.subr.bf16.mxu0 0
        %1002 = vmatpush1.bf16.msra.mxu0 0
        %1003 = vmatprep.subr.bf16.mxu0 0
        %1004 = vmatpush1.bf16.msra.mxu0 0
        %1005 = vmatprep.subr.bf16.mxu0 0
        %1006 = vmatpush1.bf16.msra.mxu0 0
        %1007 = vmatprep.subr.bf16.mxu0 0
        %1008 = vmatpush1.bf16.msra.mxu0 0
        %1009 = vmatprep.subr.bf16.mxu0 0
        %1010 = vmatpush1.bf16.msra.mxu0 0
        %1011 = vmatprep.subr.bf16.mxu0 0
        %1012 = vmatpush1.bf16.msra.mxu0 0
        %1013 = vmatprep.subr.bf16.mxu0 0
        %1014 = vmatpush1.bf16.msra.mxu0 0
        %1015 = vmatprep.subr.bf16.mxu0 0
        %1016 = vmatpush1.bf16.msra.mxu0 0
        %1017 = vmatprep.mubr.bf16.mxu0 0
        %1018 = vmatmul.mubr.bf16.gmra.mrb[0].mxu0 %v983
        %v1019 = vpop.f32.mrb[0].mxu0
        %v1020 = vadd.f32 0.0, %v1019
        %v1021 = vpop.f32.mrb[0].mxu0
        %v1022 = vpop.f32.mrb[0].mxu0
        %v1023 = vadd.f32 0.0, %v1022
        %v1024 = vpop.f32.mrb[0].mxu0
        %1025 = vdwg.mxu0
        %v1026 = vadd.f32 %v972, %v1020
        %v1027 = vadd.f32 %v973, %v1023
        %v1028 = vmax.f32 %v804, %v1026
        %v1029 = vmax.f32 %v805, %v1027
        %1030 = vmatprep.subr.bf16.mxu0 0
        %1031 = vmatpush1.bf16.msra.mxu0 %v419
        %1032 = vmatprep.subr.bf16.mxu0 0
        %1033 = vmatpush1.bf16.msra.mxu0 %v420
        %1034 = vmatprep.subr.bf16.mxu0 0
        %1035 = vmatpush1.bf16.msra.mxu0 %v421
        %1036 = vmatprep.subr.bf16.mxu0 0
        %1037 = vmatpush1.bf16.msra.mxu0 %v422
        %1038 = vmatprep.subr.bf16.mxu0 0
        %1039 = vmatpush1.bf16.msra.mxu0 0
        %1040 = vmatprep.subr.bf16.mxu0 0
        %1041 = vmatpush1.bf16.msra.mxu0 0
        %1042 = vmatprep.subr.bf16.mxu0 0
        %1043 = vmatpush1.bf16.msra.mxu0 0
        %1044 = vmatprep.subr.bf16.mxu0 0
        %1045 = vmatpush1.bf16.msra.mxu0 0
        %1046 = vmatprep.subr.bf16.mxu0 0
        %1047 = vmatpush1.bf16.msra.mxu0 0
        %1048 = vmatprep.subr.bf16.mxu0 0
        %1049 = vmatpush1.bf16.msra.mxu0 0
        %1050 = vmatprep.subr.bf16.mxu0 0
        %1051 = vmatpush1.bf16.msra.mxu0 0
        %1052 = vmatprep.subr.bf16.mxu0 0
        %1053 = vmatpush1.bf16.msra.mxu0 0
        %1054 = vmatprep.subr.bf16.mxu0 0
        %1055 = vmatpush1.bf16.msra.mxu0 0
        %1056 = vmatprep.subr.bf16.mxu0 0
        %1057 = vmatpush1.bf16.msra.mxu0 0
        %1058 = vmatprep.subr.bf16.mxu0 0
        %1059 = vmatpush1.bf16.msra.mxu0 0
        %1060 = vmatprep.subr.bf16.mxu0 0
        %1061 = vmatpush1.bf16.msra.mxu0 0
        %1062 = vmatprep.mubr.bf16.mxu0 0
        %1063 = vmatmul.mubr.bf16.gmra.mrb[0].mxu0 %v674
        %v1064 = vpop.f32.mrb[0].mxu0
        %v1065 = vadd.f32 0.0, %v1064
        %v1066 = vpop.f32.mrb[0].mxu0
        %v1067 = vpop.f32.mrb[0].mxu0
        %v1068 = vadd.f32 0.0, %v1067
        %v1069 = vpop.f32.mrb[0].mxu0
        %1070 = vdwg.mxu0
        %1071 = vmatprep.subr.bf16.mxu0 0
        %1072 = vmatpush1.bf16.msra.mxu0 %v493
        %1073 = vmatprep.subr.bf16.mxu0 0
        %1074 = vmatpush1.bf16.msra.mxu0 %v494
        %1075 = vmatprep.subr.bf16.mxu0 0
        %1076 = vmatpush1.bf16.msra.mxu0 %v495
        %1077 = vmatprep.subr.bf16.mxu0 0
        %1078 = vmatpush1.bf16.msra.mxu0 %v496
        %1079 = vmatprep.subr.bf16.mxu0 0
        %1080 = vmatpush1.bf16.msra.mxu0 0
        %1081 = vmatprep.subr.bf16.mxu0 0
        %1082 = vmatpush1.bf16.msra.mxu0 0
        %1083 = vmatprep.subr.bf16.mxu0 0
        %1084 = vmatpush1.bf16.msra.mxu0 0
        %1085 = vmatprep.subr.bf16.mxu0 0
        %1086 = vmatpush1.bf16.msra.mxu0 0
        %1087 = vmatprep.subr.bf16.mxu0 0
        %1088 = vmatpush1.bf16.msra.mxu0 0
        %1089 = vmatprep.subr.bf16.mxu0 0
        %1090 = vmatpush1.bf16.msra.mxu0 0
        %1091 = vmatprep.subr.bf16.mxu0 0
        %1092 = vmatpush1.bf16.msra.mxu0 0
        %1093 = vmatprep.subr.bf16.mxu0 0
        %1094 = vmatpush1.bf16.msra.mxu0 0
        %1095 = vmatprep.subr.bf16.mxu0 0
        %1096 = vmatpush1.bf16.msra.mxu0 0
        %1097 = vmatprep.subr.bf16.mxu0 0
        %1098 = vmatpush1.bf16.msra.mxu0 0
        %1099 = vmatprep.subr.bf16.mxu0 0
        %1100 = vmatpush1.bf16.msra.mxu0 0
        %1101 = vmatprep.subr.bf16.mxu0 0
        %1102 = vmatpush1.bf16.msra.mxu0 0
        %1103 = vmatprep.mubr.bf16.mxu0 0
        %1104 = vmatmul.mubr.bf16.gmra.mrb[0].mxu0 %v587
        %v1105 = vpop.f32.mrb[0].mxu0
        %v1106 = vadd.f32 %v1065, %v1105
        %v1107 = vpop.f32.mrb[0].mxu0
        %v1108 = vpop.f32.mrb[0].mxu0
        %v1109 = vadd.f32 %v1068, %v1108
        %v1110 = vpop.f32.mrb[0].mxu0
        %1111 = vdwg.mxu0
        %1112 = vmatprep.subr.bf16.mxu0 0
        %1113 = vmatpush1.bf16.msra.mxu0 %v578
        %1114 = vmatprep.subr.bf16.mxu0 0
        %1115 = vmatpush1.bf16.msra.mxu0 %v579
        %1116 = vmatprep.subr.bf16.mxu0 0
        %1117 = vmatpush1.bf16.msra.mxu0 %v580
        %1118 = vmatprep.subr.bf16.mxu0 0
        %1119 = vmatpush1.bf16.msra.mxu0 %v581
        %1120 = vmatprep.subr.bf16.mxu0 0
        %1121 = vmatpush1.bf16.msra.mxu0 0
        %1122 = vmatprep.subr.bf16.mxu0 0
        %1123 = vmatpush1.bf16.msra.mxu0 0
        %1124 = vmatprep.subr.bf16.mxu0 0
        %1125 = vmatpush1.bf16.msra.mxu0 0
        %1126 = vmatprep.subr.bf16.mxu0 0
        %1127 = vmatpush1.bf16.msra.mxu0 0
        %1128 = vmatprep.subr.bf16.mxu0 0
        %1129 = vmatpush1.bf16.msra.mxu0 0
        %1130 = vmatprep.subr.bf16.mxu0 0
        %1131 = vmatpush1.bf16.msra.mxu0 0
        %1132 = vmatprep.subr.bf16.mxu0 0
        %1133 = vmatpush1.bf16.msra.mxu0 0
        %1134 = vmatprep.subr.bf16.mxu0 0
        %1135 = vmatpush1.bf16.msra.mxu0 0
        %1136 = vmatprep.subr.bf16.mxu0 0
        %1137 = vmatpush1.bf16.msra.mxu0 0
        %1138 = vmatprep.subr.bf16.mxu0 0
        %1139 = vmatpush1.bf16.msra.mxu0 0
        %1140 = vmatprep.subr.bf16.mxu0 0
        %1141 = vmatpush1.bf16.msra.mxu0 0
        %1142 = vmatprep.subr.bf16.mxu0 0
        %1143 = vmatpush1.bf16.msra.mxu0 0
        %1144 = vmatprep.mubr.bf16.mxu0 0
        %1145 = vmatmul.mubr.bf16.gmra.mrb[0].mxu0 %v761
        %v1146 = vpop.f32.mrb[0].mxu0
        %v1147 = vadd.f32 0.0, %v1146
        %v1148 = vpop.f32.mrb[0].mxu0
        %v1149 = vpop.f32.mrb[0].mxu0
        %v1150 = vadd.f32 0.0, %v1149
        %v1151 = vpop.f32.mrb[0].mxu0
        %1152 = vdwg.mxu0
        %v1153 = vadd.f32 %v1106, %v1147
        %v1154 = vadd.f32 %v1109, %v1150
        %1155 = vmatprep.subr.bf16.mxu0 0
        %1156 = vmatpush1.bf16.msra.mxu0 %v665
        %1157 = vmatprep.subr.bf16.mxu0 0
        %1158 = vmatpush1.bf16.msra.mxu0 %v666
        %1159 = vmatprep.subr.bf16.mxu0 0
        %1160 = vmatpush1.bf16.msra.mxu0 %v667
        %1161 = vmatprep.subr.bf16.mxu0 0
        %1162 = vmatpush1.bf16.msra.mxu0 %v668
        %1163 = vmatprep.subr.bf16.mxu0 0
        %1164 = vmatpush1.bf16.msra.mxu0 0
        %1165 = vmatprep.subr.bf16.mxu0 0
        %1166 = vmatpush1.bf16.msra.mxu0 0
        %1167 = vmatprep.subr.bf16.mxu0 0
        %1168 = vmatpush1.bf16.msra.mxu0 0
        %1169 = vmatprep.subr.bf16.mxu0 0
        %1170 = vmatpush1.bf16.msra.mxu0 0
        %1171 = vmatprep.subr.bf16.mxu0 0
        %1172 = vmatpush1.bf16.msra.mxu0 0
        %1173 = vmatprep.subr.bf16.mxu0 0
        %1174 = vmatpush1.bf16.msra.mxu0 0
        %1175 = vmatprep.subr.bf16.mxu0 0
        %1176 = vmatpush1.bf16.msra.mxu0 0
        %1177 = vmatprep.subr.bf16.mxu0 0
        %1178 = vmatpush1.bf16.msra.mxu0 0
        %1179 = vmatprep.subr.bf16.mxu0 0
        %1180 = vmatpush1.bf16.msra.mxu0 0
        %1181 = vmatprep.subr.bf16.mxu0 0
        %1182 = vmatpush1.bf16.msra.mxu0 0
        %1183 = vmatprep.subr.bf16.mxu0 0
        %1184 = vmatpush1.bf16.msra.mxu0 0
        %1185 = vmatprep.subr.bf16.mxu0 0
        %1186 = vmatpush1.bf16.msra.mxu0 0
        %1187 = vmatprep.mubr.bf16.mxu0 0
        %1188 = vmatmul.mubr.bf16.gmra.mrb[0].mxu0 %v983
        %v1189 = vpop.f32.mrb[0].mxu0
        %v1190 = vadd.f32 0.0, %v1189
        %v1191 = vpop.f32.mrb[0].mxu0
        %v1192 = vpop.f32.mrb[0].mxu0
        %v1193 = vadd.f32 0.0, %v1192
        %v1194 = vpop.f32.mrb[0].mxu0
        %1195 = vdwg.mxu0
        %v1196 = vadd.f32 %v1153, %v1190
        %v1197 = vadd.f32 %v1154, %v1193
        %s1198 = scalar_lea.vmem %s348, 48 [#allocation2]
        %v1199 = vld [vmem:[%s1198] sm:$0xf]
        %v1200 = vld [vmem:[%s1198 + $0x4] sm:$0xf]
        %v1203 = vunpack.c.l.b16 %v1199
        %v1204 = vunpack.c.l.b16 %v1200
        %v1205 = vpack.c.b16 %v1204, %v1203
        %v1207 = vsel %vm427, %v1205, 0
        %1209 = vmatprep.subr.bf16.mxu0 0
        %1210 = vmatpush1.bf16.msra.mxu0 %v752
        %1211 = vmatprep.subr.bf16.mxu0 0
        %1212 = vmatpush1.bf16.msra.mxu0 %v753
        %1213 = vmatprep.subr.bf16.mxu0 0
        %1214 = vmatpush1.bf16.msra.mxu0 %v754
        %1215 = vmatprep.subr.bf16.mxu0 0
        %1216 = vmatpush1.bf16.msra.mxu0 %v755
        %1217 = vmatprep.subr.bf16.mxu0 0
        %1218 = vmatpush1.bf16.msra.mxu0 0
        %1219 = vmatprep.subr.bf16.mxu0 0
        %1220 = vmatpush1.bf16.msra.mxu0 0
        %1221 = vmatprep.subr.bf16.mxu0 0
        %1222 = vmatpush1.bf16.msra.mxu0 0
        %1223 = vmatprep.subr.bf16.mxu0 0
        %1224 = vmatpush1.bf16.msra.mxu0 0
        %1225 = vmatprep.subr.bf16.mxu0 0
        %1226 = vmatpush1.bf16.msra.mxu0 0
        %1227 = vmatprep.subr.bf16.mxu0 0
        %1228 = vmatpush1.bf16.msra.mxu0 0
        %1229 = vmatprep.subr.bf16.mxu0 0
        %1230 = vmatpush1.bf16.msra.mxu0 0
        %1231 = vmatprep.subr.bf16.mxu0 0
        %1232 = vmatpush1.bf16.msra.mxu0 0
        %1233 = vmatprep.subr.bf16.mxu0 0
        %1234 = vmatpush1.bf16.msra.mxu0 0
        %1235 = vmatprep.subr.bf16.mxu0 0
        %1236 = vmatpush1.bf16.msra.mxu0 0
        %1237 = vmatprep.subr.bf16.mxu0 0
        %1238 = vmatpush1.bf16.msra.mxu0 0
        %1239 = vmatprep.subr.bf16.mxu0 0
        %1240 = vmatpush1.bf16.msra.mxu0 0
        %1241 = vmatprep.mubr.bf16.mxu0 0
        %1242 = vmatmul.mubr.bf16.gmra.mrb[0].mxu0 %v1207
        %v1243 = vpop.f32.mrb[0].mxu0
        %v1244 = vadd.f32 0.0, %v1243
        %v1245 = vpop.f32.mrb[0].mxu0
        %v1246 = vpop.f32.mrb[0].mxu0
        %v1247 = vadd.f32 0.0, %v1246
        %v1248 = vpop.f32.mrb[0].mxu0
        %1249 = vdwg.mxu0
        %v1250 = vadd.f32 %v1196, %v1244
        %v1251 = vadd.f32 %v1197, %v1247
        %v1252 = vmax.f32 %v1028, %v1250
        %v1253 = vmax.f32 %v1029, %v1251
        %1254 = vmatprep.subr.bf16.mxu0 0
        %1255 = vmatpush1.bf16.msra.mxu0 %v419
        %1256 = vmatprep.subr.bf16.mxu0 0
        %1257 = vmatpush1.bf16.msra.mxu0 %v420
        %1258 = vmatprep.subr.bf16.mxu0 0
        %1259 = vmatpush1.bf16.msra.mxu0 %v421
        %1260 = vmatprep.subr.bf16.mxu0 0
        %1261 = vmatpush1.bf16.msra.mxu0 %v422
        %1262 = vmatprep.subr.bf16.mxu0 0
        %1263 = vmatpush1.bf16.msra.mxu0 0
        %1264 = vmatprep.subr.bf16.mxu0 0
        %1265 = vmatpush1.bf16.msra.mxu0 0
        %1266 = vmatprep.subr.bf16.mxu0 0
        %1267 = vmatpush1.bf16.msra.mxu0 0
        %1268 = vmatprep.subr.bf16.mxu0 0
        %1269 = vmatpush1.bf16.msra.mxu0 0
        %1270 = vmatprep.subr.bf16.mxu0 0
        %1271 = vmatpush1.bf16.msra.mxu0 0
        %1272 = vmatprep.subr.bf16.mxu0 0
        %1273 = vmatpush1.bf16.msra.mxu0 0
        %1274 = vmatprep.subr.bf16.mxu0 0
        %1275 = vmatpush1.bf16.msra.mxu0 0
        %1276 = vmatprep.subr.bf16.mxu0 0
        %1277 = vmatpush1.bf16.msra.mxu0 0
        %1278 = vmatprep.subr.bf16.mxu0 0
        %1279 = vmatpush1.bf16.msra.mxu0 0
        %1280 = vmatprep.subr.bf16.mxu0 0
        %1281 = vmatpush1.bf16.msra.mxu0 0
        %1282 = vmatprep.subr.bf16.mxu0 0
        %1283 = vmatpush1.bf16.msra.mxu0 0
        %1284 = vmatprep.subr.bf16.mxu0 0
        %1285 = vmatpush1.bf16.msra.mxu0 0
        %1286 = vmatprep.mubr.bf16.mxu0 0
        %1287 = vmatmul.mubr.bf16.gmra.mrb[0].mxu0 %v761
        %v1288 = vpop.f32.mrb[0].mxu0
        %v1289 = vadd.f32 0.0, %v1288
        %v1290 = vpop.f32.mrb[0].mxu0
        %v1291 = vpop.f32.mrb[0].mxu0
        %v1292 = vadd.f32 0.0, %v1291
        %v1293 = vpop.f32.mrb[0].mxu0
        %1294 = vdwg.mxu0
        %1295 = vmatprep.subr.bf16.mxu0 0
        %1296 = vmatpush1.bf16.msra.mxu0 %v493
        %1297 = vmatprep.subr.bf16.mxu0 0
        %1298 = vmatpush1.bf16.msra.mxu0 %v494
        %1299 = vmatprep.subr.bf16.mxu0 0
        %1300 = vmatpush1.bf16.msra.mxu0 %v495
        %1301 = vmatprep.subr.bf16.mxu0 0
        %1302 = vmatpush1.bf16.msra.mxu0 %v496
        %1303 = vmatprep.subr.bf16.mxu0 0
        %1304 = vmatpush1.bf16.msra.mxu0 0
        %1305 = vmatprep.subr.bf16.mxu0 0
        %1306 = vmatpush1.bf16.msra.mxu0 0
        %1307 = vmatprep.subr.bf16.mxu0 0
        %1308 = vmatpush1.bf16.msra.mxu0 0
        %1309 = vmatprep.subr.bf16.mxu0 0
        %1310 = vmatpush1.bf16.msra.mxu0 0
        %1311 = vmatprep.subr.bf16.mxu0 0
        %1312 = vmatpush1.bf16.msra.mxu0 0
        %1313 = vmatprep.subr.bf16.mxu0 0
        %1314 = vmatpush1.bf16.msra.mxu0 0
        %1315 = vmatprep.subr.bf16.mxu0 0
        %1316 = vmatpush1.bf16.msra.mxu0 0
        %1317 = vmatprep.subr.bf16.mxu0 0
        %1318 = vmatpush1.bf16.msra.mxu0 0
        %1319 = vmatprep.subr.bf16.mxu0 0
        %1320 = vmatpush1.bf16.msra.mxu0 0
        %1321 = vmatprep.subr.bf16.mxu0 0
        %1322 = vmatpush1.bf16.msra.mxu0 0
        %1323 = vmatprep.subr.bf16.mxu0 0
        %1324 = vmatpush1.bf16.msra.mxu0 0
        %1325 = vmatprep.subr.bf16.mxu0 0
        %1326 = vmatpush1.bf16.msra.mxu0 0
        %1327 = vmatprep.mubr.bf16.mxu0 0
        %1328 = vmatmul.mubr.bf16.gmra.mrb[0].mxu0 %v674
        %v1329 = vpop.f32.mrb[0].mxu0
        %v1330 = vadd.f32 %v1289, %v1329
        %v1331 = vpop.f32.mrb[0].mxu0
        %v1332 = vpop.f32.mrb[0].mxu0
        %v1333 = vadd.f32 %v1292, %v1332
        %v1334 = vpop.f32.mrb[0].mxu0
        %1335 = vdwg.mxu0
        %1336 = vmatprep.subr.bf16.mxu0 0
        %1337 = vmatpush1.bf16.msra.mxu0 %v578
        %1338 = vmatprep.subr.bf16.mxu0 0
        %1339 = vmatpush1.bf16.msra.mxu0 %v579
        %1340 = vmatprep.subr.bf16.mxu0 0
        %1341 = vmatpush1.bf16.msra.mxu0 %v580
        %1342 = vmatprep.subr.bf16.mxu0 0
        %1343 = vmatpush1.bf16.msra.mxu0 %v581
        %1344 = vmatprep.subr.bf16.mxu0 0
        %1345 = vmatpush1.bf16.msra.mxu0 0
        %1346 = vmatprep.subr.bf16.mxu0 0
        %1347 = vmatpush1.bf16.msra.mxu0 0
        %1348 = vmatprep.subr.bf16.mxu0 0
        %1349 = vmatpush1.bf16.msra.mxu0 0
        %1350 = vmatprep.subr.bf16.mxu0 0
        %1351 = vmatpush1.bf16.msra.mxu0 0
        %1352 = vmatprep.subr.bf16.mxu0 0
        %1353 = vmatpush1.bf16.msra.mxu0 0
        %1354 = vmatprep.subr.bf16.mxu0 0
        %1355 = vmatpush1.bf16.msra.mxu0 0
        %1356 = vmatprep.subr.bf16.mxu0 0
        %1357 = vmatpush1.bf16.msra.mxu0 0
        %1358 = vmatprep.subr.bf16.mxu0 0
        %1359 = vmatpush1.bf16.msra.mxu0 0
        %1360 = vmatprep.subr.bf16.mxu0 0
        %1361 = vmatpush1.bf16.msra.mxu0 0
        %1362 = vmatprep.subr.bf16.mxu0 0
        %1363 = vmatpush1.bf16.msra.mxu0 0
        %1364 = vmatprep.subr.bf16.mxu0 0
        %1365 = vmatpush1.bf16.msra.mxu0 0
        %1366 = vmatprep.subr.bf16.mxu0 0
        %1367 = vmatpush1.bf16.msra.mxu0 0
        %1368 = vmatprep.mubr.bf16.mxu0 0
        %1369 = vmatmul.mubr.bf16.gmra.mrb[0].mxu0 %v983
        %v1370 = vpop.f32.mrb[0].mxu0
        %v1371 = vadd.f32 0.0, %v1370
        %v1372 = vpop.f32.mrb[0].mxu0
        %v1373 = vpop.f32.mrb[0].mxu0
        %v1374 = vadd.f32 0.0, %v1373
        %v1375 = vpop.f32.mrb[0].mxu0
        %1376 = vdwg.mxu0
        %v1377 = vadd.f32 %v1330, %v1371
        %v1378 = vadd.f32 %v1333, %v1374
        %1379 = vmatprep.subr.bf16.mxu0 0
        %1380 = vmatpush1.bf16.msra.mxu0 %v665
        %1381 = vmatprep.subr.bf16.mxu0 0
        %1382 = vmatpush1.bf16.msra.mxu0 %v666
        %1383 = vmatprep.subr.bf16.mxu0 0
        %1384 = vmatpush1.bf16.msra.mxu0 %v667
        %1385 = vmatprep.subr.bf16.mxu0 0
        %1386 = vmatpush1.bf16.msra.mxu0 %v668
        %1387 = vmatprep.subr.bf16.mxu0 0
        %1388 = vmatpush1.bf16.msra.mxu0 0
        %1389 = vmatprep.subr.bf16.mxu0 0
        %1390 = vmatpush1.bf16.msra.mxu0 0
        %1391 = vmatprep.subr.bf16.mxu0 0
        %1392 = vmatpush1.bf16.msra.mxu0 0
        %1393 = vmatprep.subr.bf16.mxu0 0
        %1394 = vmatpush1.bf16.msra.mxu0 0
        %1395 = vmatprep.subr.bf16.mxu0 0
        %1396 = vmatpush1.bf16.msra.mxu0 0
        %1397 = vmatprep.subr.bf16.mxu0 0
        %1398 = vmatpush1.bf16.msra.mxu0 0
        %1399 = vmatprep.subr.bf16.mxu0 0
        %1400 = vmatpush1.bf16.msra.mxu0 0
        %1401 = vmatprep.subr.bf16.mxu0 0
        %1402 = vmatpush1.bf16.msra.mxu0 0
        %1403 = vmatprep.subr.bf16.mxu0 0
        %1404 = vmatpush1.bf16.msra.mxu0 0
        %1405 = vmatprep.subr.bf16.mxu0 0
        %1406 = vmatpush1.bf16.msra.mxu0 0
        %1407 = vmatprep.subr.bf16.mxu0 0
        %1408 = vmatpush1.bf16.msra.mxu0 0
        %1409 = vmatprep.subr.bf16.mxu0 0
        %1410 = vmatpush1.bf16.msra.mxu0 0
        %1411 = vmatprep.mubr.bf16.mxu0 0
        %1412 = vmatmul.mubr.bf16.gmra.mrb[0].mxu0 %v1207
        %v1413 = vpop.f32.mrb[0].mxu0
        %v1414 = vadd.f32 0.0, %v1413
        %v1415 = vpop.f32.mrb[0].mxu0
        %v1416 = vpop.f32.mrb[0].mxu0
        %v1417 = vadd.f32 0.0, %v1416
        %v1418 = vpop.f32.mrb[0].mxu0
        %1419 = vdwg.mxu0
        %v1420 = vadd.f32 %v1377, %v1414
        %v1421 = vadd.f32 %v1378, %v1417
        %s1422 = scalar_lea.vmem %s348, 56 [#allocation2]
        %v1423 = vld [vmem:[%s1422] sm:$0xf]
        %v1424 = vld [vmem:[%s1422 + $0x4] sm:$0xf]
        %v1427 = vunpack.c.l.b16 %v1423
        %v1428 = vunpack.c.l.b16 %v1424
        %v1429 = vpack.c.b16 %v1428, %v1427
        %v1431 = vsel %vm427, %v1429, 0
        %1433 = vmatprep.subr.bf16.mxu0 0
        %1434 = vmatpush1.bf16.msra.mxu0 %v752
        %1435 = vmatprep.subr.bf16.mxu0 0
        %1436 = vmatpush1.bf16.msra.mxu0 %v753
        %1437 = vmatprep.subr.bf16.mxu0 0
        %1438 = vmatpush1.bf16.msra.mxu0 %v754
        %1439 = vmatprep.subr.bf16.mxu0 0
        %1440 = vmatpush1.bf16.msra.mxu0 %v755
        %1441 = vmatprep.subr.bf16.mxu0 0
        %1442 = vmatpush1.bf16.msra.mxu0 0
        %1443 = vmatprep.subr.bf16.mxu0 0
        %1444 = vmatpush1.bf16.msra.mxu0 0
        %1445 = vmatprep.subr.bf16.mxu0 0
        %1446 = vmatpush1.bf16.msra.mxu0 0
        %1447 = vmatprep.subr.bf16.mxu0 0
        %1448 = vmatpush1.bf16.msra.mxu0 0
        %1449 = vmatprep.subr.bf16.mxu0 0
        %1450 = vmatpush1.bf16.msra.mxu0 0
        %1451 = vmatprep.subr.bf16.mxu0 0
        %1452 = vmatpush1.bf16.msra.mxu0 0
        %1453 = vmatprep.subr.bf16.mxu0 0
        %1454 = vmatpush1.bf16.msra.mxu0 0
        %1455 = vmatprep.subr.bf16.mxu0 0
        %1456 = vmatpush1.bf16.msra.mxu0 0
        %1457 = vmatprep.subr.bf16.mxu0 0
        %1458 = vmatpush1.bf16.msra.mxu0 0
        %1459 = vmatprep.subr.bf16.mxu0 0
        %1460 = vmatpush1.bf16.msra.mxu0 0
        %1461 = vmatprep.subr.bf16.mxu0 0
        %1462 = vmatpush1.bf16.msra.mxu0 0
        %1463 = vmatprep.subr.bf16.mxu0 0
        %1464 = vmatpush1.bf16.msra.mxu0 0
        %1465 = vmatprep.mubr.bf16.mxu0 0
        %1466 = vmatmul.mubr.bf16.gmra.mrb[0].mxu0 %v1431
        %v1467 = vpop.f32.mrb[0].mxu0
        %v1468 = vadd.f32 0.0, %v1467
        %v1469 = vpop.f32.mrb[0].mxu0
        %v1470 = vpop.f32.mrb[0].mxu0
        %v1471 = vadd.f32 0.0, %v1470
        %v1472 = vpop.f32.mrb[0].mxu0
        %1473 = vdwg.mxu0
        %v1474 = vadd.f32 %v1420, %v1468
        %v1475 = vadd.f32 %v1421, %v1471
        %v1476 = vmax.f32 %v1252, %v1474
        %v1477 = vmax.f32 %v1253, %v1475
        %1478 = vmatprep.subr.bf16.mxu0 0
        %1479 = vmatpush1.bf16.msra.mxu0 %v419
        %1480 = vmatprep.subr.bf16.mxu0 0
        %1481 = vmatpush1.bf16.msra.mxu0 %v420
        %1482 = vmatprep.subr.bf16.mxu0 0
        %1483 = vmatpush1.bf16.msra.mxu0 %v421
        %1484 = vmatprep.subr.bf16.mxu0 0
        %1485 = vmatpush1.bf16.msra.mxu0 %v422
        %1486 = vmatprep.subr.bf16.mxu0 0
        %1487 = vmatpush1.bf16.msra.mxu0 0
        %1488 = vmatprep.subr.bf16.mxu0 0
        %1489 = vmatpush1.bf16.msra.mxu0 0
        %1490 = vmatprep.subr.bf16.mxu0 0
        %1491 = vmatpush1.bf16.msra.mxu0 0
        %1492 = vmatprep.subr.bf16.mxu0 0
        %1493 = vmatpush1.bf16.msra.mxu0 0
        %1494 = vmatprep.subr.bf16.mxu0 0
        %1495 = vmatpush1.bf16.msra.mxu0 0
        %1496 = vmatprep.subr.bf16.mxu0 0
        %1497 = vmatpush1.bf16.msra.mxu0 0
        %1498 = vmatprep.subr.bf16.mxu0 0
        %1499 = vmatpush1.bf16.msra.mxu0 0
        %1500 = vmatprep.subr.bf16.mxu0 0
        %1501 = vmatpush1.bf16.msra.mxu0 0
        %1502 = vmatprep.subr.bf16.mxu0 0
        %1503 = vmatpush1.bf16.msra.mxu0 0
        %1504 = vmatprep.subr.bf16.mxu0 0
        %1505 = vmatpush1.bf16.msra.mxu0 0
        %1506 = vmatprep.subr.bf16.mxu0 0
        %1507 = vmatpush1.bf16.msra.mxu0 0
        %1508 = vmatprep.subr.bf16.mxu0 0
        %1509 = vmatpush1.bf16.msra.mxu0 0
        %1510 = vmatprep.mubr.bf16.mxu0 0
        %1511 = vmatmul.mubr.bf16.gmra.mrb[0].mxu0 %v983
        %v1512 = vpop.f32.mrb[0].mxu0
        %v1513 = vadd.f32 0.0, %v1512
        %v1514 = vpop.f32.mrb[0].mxu0
        %v1515 = vpop.f32.mrb[0].mxu0
        %v1516 = vadd.f32 0.0, %v1515
        %v1517 = vpop.f32.mrb[0].mxu0
        %1518 = vdwg.mxu0
        %1519 = vmatprep.subr.bf16.mxu0 0
        %1520 = vmatpush1.bf16.msra.mxu0 %v493
        %1521 = vmatprep.subr.bf16.mxu0 0
        %1522 = vmatpush1.bf16.msra.mxu0 %v494
        %1523 = vmatprep.subr.bf16.mxu0 0
        %1524 = vmatpush1.bf16.msra.mxu0 %v495
        %1525 = vmatprep.subr.bf16.mxu0 0
        %1526 = vmatpush1.bf16.msra.mxu0 %v496
        %1527 = vmatprep.subr.bf16.mxu0 0
        %1528 = vmatpush1.bf16.msra.mxu0 0
        %1529 = vmatprep.subr.bf16.mxu0 0
        %1530 = vmatpush1.bf16.msra.mxu0 0
        %1531 = vmatprep.subr.bf16.mxu0 0
        %1532 = vmatpush1.bf16.msra.mxu0 0
        %1533 = vmatprep.subr.bf16.mxu0 0
        %1534 = vmatpush1.bf16.msra.mxu0 0
        %1535 = vmatprep.subr.bf16.mxu0 0
        %1536 = vmatpush1.bf16.msra.mxu0 0
        %1537 = vmatprep.subr.bf16.mxu0 0
        %1538 = vmatpush1.bf16.msra.mxu0 0
        %1539 = vmatprep.subr.bf16.mxu0 0
        %1540 = vmatpush1.bf16.msra.mxu0 0
        %1541 = vmatprep.subr.bf16.mxu0 0
        %1542 = vmatpush1.bf16.msra.mxu0 0
        %1543 = vmatprep.subr.bf16.mxu0 0
        %1544 = vmatpush1.bf16.msra.mxu0 0
        %1545 = vmatprep.subr.bf16.mxu0 0
        %1546 = vmatpush1.bf16.msra.mxu0 0
        %1547 = vmatprep.subr.bf16.mxu0 0
        %1548 = vmatpush1.bf16.msra.mxu0 0
        %1549 = vmatprep.subr.bf16.mxu0 0
        %1550 = vmatpush1.bf16.msra.mxu0 0
        %1551 = vmatprep.mubr.bf16.mxu0 0
        %1552 = vmatmul.mubr.bf16.gmra.mrb[0].mxu0 %v761
        %v1553 = vpop.f32.mrb[0].mxu0
        %v1554 = vadd.f32 %v1513, %v1553
        %v1555 = vpop.f32.mrb[0].mxu0
        %v1556 = vpop.f32.mrb[0].mxu0
        %v1557 = vadd.f32 %v1516, %v1556
        %v1558 = vpop.f32.mrb[0].mxu0
        %1559 = vdwg.mxu0
        %1560 = vmatprep.subr.bf16.mxu0 0
        %1561 = vmatpush1.bf16.msra.mxu0 %v578
        %1562 = vmatprep.subr.bf16.mxu0 0
        %1563 = vmatpush1.bf16.msra.mxu0 %v579
        %1564 = vmatprep.subr.bf16.mxu0 0
        %1565 = vmatpush1.bf16.msra.mxu0 %v580
        %1566 = vmatprep.subr.bf16.mxu0 0
        %1567 = vmatpush1.bf16.msra.mxu0 %v581
        %1568 = vmatprep.subr.bf16.mxu0 0
        %1569 = vmatpush1.bf16.msra.mxu0 0
        %1570 = vmatprep.subr.bf16.mxu0 0
        %1571 = vmatpush1.bf16.msra.mxu0 0
        %1572 = vmatprep.subr.bf16.mxu0 0
        %1573 = vmatpush1.bf16.msra.mxu0 0
        %1574 = vmatprep.subr.bf16.mxu0 0
        %1575 = vmatpush1.bf16.msra.mxu0 0
        %1576 = vmatprep.subr.bf16.mxu0 0
        %1577 = vmatpush1.bf16.msra.mxu0 0
        %1578 = vmatprep.subr.bf16.mxu0 0
        %1579 = vmatpush1.bf16.msra.mxu0 0
        %1580 = vmatprep.subr.bf16.mxu0 0
        %1581 = vmatpush1.bf16.msra.mxu0 0
        %1582 = vmatprep.subr.bf16.mxu0 0
        %1583 = vmatpush1.bf16.msra.mxu0 0
        %1584 = vmatprep.subr.bf16.mxu0 0
        %1585 = vmatpush1.bf16.msra.mxu0 0
        %1586 = vmatprep.subr.bf16.mxu0 0
        %1587 = vmatpush1.bf16.msra.mxu0 0
        %1588 = vmatprep.subr.bf16.mxu0 0
        %1589 = vmatpush1.bf16.msra.mxu0 0
        %1590 = vmatprep.subr.bf16.mxu0 0
        %1591 = vmatpush1.bf16.msra.mxu0 0
        %1592 = vmatprep.mubr.bf16.mxu0 0
        %1593 = vmatmul.mubr.bf16.gmra.mrb[0].mxu0 %v1207
        %v1594 = vpop.f32.mrb[0].mxu0
        %v1595 = vadd.f32 0.0, %v1594
        %v1596 = vpop.f32.mrb[0].mxu0
        %v1597 = vpop.f32.mrb[0].mxu0
        %v1598 = vadd.f32 0.0, %v1597
        %v1599 = vpop.f32.mrb[0].mxu0
        %1600 = vdwg.mxu0
        %v1601 = vadd.f32 %v1554, %v1595
        %v1602 = vadd.f32 %v1557, %v1598
        %1603 = vmatprep.subr.bf16.mxu0 0
        %1604 = vmatpush1.bf16.msra.mxu0 %v665
        %1605 = vmatprep.subr.bf16.mxu0 0
        %1606 = vmatpush1.bf16.msra.mxu0 %v666
        %1607 = vmatprep.subr.bf16.mxu0 0
        %1608 = vmatpush1.bf16.msra.mxu0 %v667
        %1609 = vmatprep.subr.bf16.mxu0 0
        %1610 = vmatpush1.bf16.msra.mxu0 %v668
        %1611 = vmatprep.subr.bf16.mxu0 0
        %1612 = vmatpush1.bf16.msra.mxu0 0
        %1613 = vmatprep.subr.bf16.mxu0 0
        %1614 = vmatpush1.bf16.msra.mxu0 0
        %1615 = vmatprep.subr.bf16.mxu0 0
        %1616 = vmatpush1.bf16.msra.mxu0 0
        %1617 = vmatprep.subr.bf16.mxu0 0
        %1618 = vmatpush1.bf16.msra.mxu0 0
        %1619 = vmatprep.subr.bf16.mxu0 0
        %1620 = vmatpush1.bf16.msra.mxu0 0
        %1621 = vmatprep.subr.bf16.mxu0 0
        %1622 = vmatpush1.bf16.msra.mxu0 0
        %1623 = vmatprep.subr.bf16.mxu0 0
        %1624 = vmatpush1.bf16.msra.mxu0 0
        %1625 = vmatprep.subr.bf16.mxu0 0
        %1626 = vmatpush1.bf16.msra.mxu0 0
        %1627 = vmatprep.subr.bf16.mxu0 0
        %1628 = vmatpush1.bf16.msra.mxu0 0
        %1629 = vmatprep.subr.bf16.mxu0 0
        %1630 = vmatpush1.bf16.msra.mxu0 0
        %1631 = vmatprep.subr.bf16.mxu0 0
        %1632 = vmatpush1.bf16.msra.mxu0 0
        %1633 = vmatprep.subr.bf16.mxu0 0
        %1634 = vmatpush1.bf16.msra.mxu0 0
        %1635 = vmatprep.mubr.bf16.mxu0 0
        %1636 = vmatmul.mubr.bf16.gmra.mrb[0].mxu0 %v1431
        %v1637 = vpop.f32.mrb[0].mxu0
        %v1638 = vadd.f32 0.0, %v1637
        %v1639 = vpop.f32.mrb[0].mxu0
        %v1640 = vpop.f32.mrb[0].mxu0
        %v1641 = vadd.f32 0.0, %v1640
        %v1642 = vpop.f32.mrb[0].mxu0
        %1643 = vdwg.mxu0
        %v1644 = vadd.f32 %v1601, %v1638
        %v1645 = vadd.f32 %v1602, %v1641
        %s1646 = scalar_lea.vmem %s348, 64 [#allocation2]
        %v1647 = vld [vmem:[%s1646] sm:$0xf]
        %v1648 = vld [vmem:[%s1646 + $0x4] sm:$0xf]
        %v1651 = vunpack.c.l.b16 %v1647
        %v1652 = vunpack.c.l.b16 %v1648
        %v1653 = vpack.c.b16 %v1652, %v1651
        %v1655 = vsel %vm427, %v1653, 0
        %1657 = vmatprep.subr.bf16.mxu0 0
        %1658 = vmatpush1.bf16.msra.mxu0 %v752
        %1659 = vmatprep.subr.bf16.mxu0 0
        %1660 = vmatpush1.bf16.msra.mxu0 %v753
        %1661 = vmatprep.subr.bf16.mxu0 0
        %1662 = vmatpush1.bf16.msra.mxu0 %v754
        %1663 = vmatprep.subr.bf16.mxu0 0
        %1664 = vmatpush1.bf16.msra.mxu0 %v755
        %1665 = vmatprep.subr.bf16.mxu0 0
        %1666 = vmatpush1.bf16.msra.mxu0 0
        %1667 = vmatprep.subr.bf16.mxu0 0
        %1668 = vmatpush1.bf16.msra.mxu0 0
        %1669 = vmatprep.subr.bf16.mxu0 0
        %1670 = vmatpush1.bf16.msra.mxu0 0
        %1671 = vmatprep.subr.bf16.mxu0 0
        %1672 = vmatpush1.bf16.msra.mxu0 0
        %1673 = vmatprep.subr.bf16.mxu0 0
        %1674 = vmatpush1.bf16.msra.mxu0 0
        %1675 = vmatprep.subr.bf16.mxu0 0
        %1676 = vmatpush1.bf16.msra.mxu0 0
        %1677 = vmatprep.subr.bf16.mxu0 0
        %1678 = vmatpush1.bf16.msra.mxu0 0
        %1679 = vmatprep.subr.bf16.mxu0 0
        %1680 = vmatpush1.bf16.msra.mxu0 0
        %1681 = vmatprep.subr.bf16.mxu0 0
        %1682 = vmatpush1.bf16.msra.mxu0 0
        %1683 = vmatprep.subr.bf16.mxu0 0
        %1684 = vmatpush1.bf16.msra.mxu0 0
        %1685 = vmatprep.subr.bf16.mxu0 0
        %1686 = vmatpush1.bf16.msra.mxu0 0
        %1687 = vmatprep.subr.bf16.mxu0 0
        %1688 = vmatpush1.bf16.msra.mxu0 0
        %1689 = vmatprep.mubr.bf16.mxu0 0
        %1690 = vmatmul.mubr.bf16.gmra.mrb[0].mxu0 %v1655
        %v1691 = vpop.f32.mrb[0].mxu0
        %v1692 = vadd.f32 0.0, %v1691
        %v1693 = vpop.f32.mrb[0].mxu0
        %v1694 = vpop.f32.mrb[0].mxu0
        %v1695 = vadd.f32 0.0, %v1694
        %v1696 = vpop.f32.mrb[0].mxu0
        %1697 = vdwg.mxu0
        %v1698 = vadd.f32 %v1644, %v1692
        %v1699 = vadd.f32 %v1645, %v1695
        %v1700 = vmax.f32 %v1476, %v1698
        %v1701 = vmax.f32 %v1477, %v1699
        %1702 = vmatprep.subr.bf16.mxu0 0
        %1703 = vmatpush1.bf16.msra.mxu0 %v419
        %1704 = vmatprep.subr.bf16.mxu0 0
        %1705 = vmatpush1.bf16.msra.mxu0 %v420
        %1706 = vmatprep.subr.bf16.mxu0 0
        %1707 = vmatpush1.bf16.msra.mxu0 %v421
        %1708 = vmatprep.subr.bf16.mxu0 0
        %1709 = vmatpush1.bf16.msra.mxu0 %v422
        %1710 = vmatprep.subr.bf16.mxu0 0
        %1711 = vmatpush1.bf16.msra.mxu0 0
        %1712 = vmatprep.subr.bf16.mxu0 0
        %1713 = vmatpush1.bf16.msra.mxu0 0
        %1714 = vmatprep.subr.bf16.mxu0 0
        %1715 = vmatpush1.bf16.msra.mxu0 0
        %1716 = vmatprep.subr.bf16.mxu0 0
        %1717 = vmatpush1.bf16.msra.mxu0 0
        %1718 = vmatprep.subr.bf16.mxu0 0
        %1719 = vmatpush1.bf16.msra.mxu0 0
        %1720 = vmatprep.subr.bf16.mxu0 0
        %1721 = vmatpush1.bf16.msra.mxu0 0
        %1722 = vmatprep.subr.bf16.mxu0 0
        %1723 = vmatpush1.bf16.msra.mxu0 0
        %1724 = vmatprep.subr.bf16.mxu0 0
        %1725 = vmatpush1.bf16.msra.mxu0 0
        %1726 = vmatprep.subr.bf16.mxu0 0
        %1727 = vmatpush1.bf16.msra.mxu0 0
        %1728 = vmatprep.subr.bf16.mxu0 0
        %1729 = vmatpush1.bf16.msra.mxu0 0
        %1730 = vmatprep.subr.bf16.mxu0 0
        %1731 = vmatpush1.bf16.msra.mxu0 0
        %1732 = vmatprep.subr.bf16.mxu0 0
        %1733 = vmatpush1.bf16.msra.mxu0 0
        %1734 = vmatprep.mubr.bf16.mxu0 0
        %1735 = vmatmul.mubr.bf16.gmra.mrb[0].mxu0 %v1207
        %v1736 = vpop.f32.mrb[0].mxu0
        %v1737 = vadd.f32 0.0, %v1736
        %v1738 = vpop.f32.mrb[0].mxu0
        %v1739 = vpop.f32.mrb[0].mxu0
        %v1740 = vadd.f32 0.0, %v1739
        %v1741 = vpop.f32.mrb[0].mxu0
        %1742 = vdwg.mxu0
        %1743 = vmatprep.subr.bf16.mxu0 0
        %1744 = vmatpush1.bf16.msra.mxu0 %v493
        %1745 = vmatprep.subr.bf16.mxu0 0
        %1746 = vmatpush1.bf16.msra.mxu0 %v494
        %1747 = vmatprep.subr.bf16.mxu0 0
        %1748 = vmatpush1.bf16.msra.mxu0 %v495
        %1749 = vmatprep.subr.bf16.mxu0 0
        %1750 = vmatpush1.bf16.msra.mxu0 %v496
        %1751 = vmatprep.subr.bf16.mxu0 0
        %1752 = vmatpush1.bf16.msra.mxu0 0
        %1753 = vmatprep.subr.bf16.mxu0 0
        %1754 = vmatpush1.bf16.msra.mxu0 0
        %1755 = vmatprep.subr.bf16.mxu0 0
        %1756 = vmatpush1.bf16.msra.mxu0 0
        %1757 = vmatprep.subr.bf16.mxu0 0
        %1758 = vmatpush1.bf16.msra.mxu0 0
        %1759 = vmatprep.subr.bf16.mxu0 0
        %1760 = vmatpush1.bf16.msra.mxu0 0
        %1761 = vmatprep.subr.bf16.mxu0 0
        %1762 = vmatpush1.bf16.msra.mxu0 0
        %1763 = vmatprep.subr.bf16.mxu0 0
        %1764 = vmatpush1.bf16.msra.mxu0 0
        %1765 = vmatprep.subr.bf16.mxu0 0
        %1766 = vmatpush1.bf16.msra.mxu0 0
        %1767 = vmatprep.subr.bf16.mxu0 0
        %1768 = vmatpush1.bf16.msra.mxu0 0
        %1769 = vmatprep.subr.bf16.mxu0 0
        %1770 = vmatpush1.bf16.msra.mxu0 0
        %1771 = vmatprep.subr.bf16.mxu0 0
        %1772 = vmatpush1.bf16.msra.mxu0 0
        %1773 = vmatprep.subr.bf16.mxu0 0
        %1774 = vmatpush1.bf16.msra.mxu0 0
        %1775 = vmatprep.mubr.bf16.mxu0 0
        %1776 = vmatmul.mubr.bf16.gmra.mrb[0].mxu0 %v983
        %v1777 = vpop.f32.mrb[0].mxu0
        %v1778 = vadd.f32 %v1737, %v1777
        %v1779 = vpop.f32.mrb[0].mxu0
        %v1780 = vpop.f32.mrb[0].mxu0
        %v1781 = vadd.f32 %v1740, %v1780
        %v1782 = vpop.f32.mrb[0].mxu0
        %1783 = vdwg.mxu0
        %1784 = vmatprep.subr.bf16.mxu0 0
        %1785 = vmatpush1.bf16.msra.mxu0 %v578
        %1786 = vmatprep.subr.bf16.mxu0 0
        %1787 = vmatpush1.bf16.msra.mxu0 %v579
        %1788 = vmatprep.subr.bf16.mxu0 0
        %1789 = vmatpush1.bf16.msra.mxu0 %v580
        %1790 = vmatprep.subr.bf16.mxu0 0
        %1791 = vmatpush1.bf16.msra.mxu0 %v581
        %1792 = vmatprep.subr.bf16.mxu0 0
        %1793 = vmatpush1.bf16.msra.mxu0 0
        %1794 = vmatprep.subr.bf16.mxu0 0
        %1795 = vmatpush1.bf16.msra.mxu0 0
        %1796 = vmatprep.subr.bf16.mxu0 0
        %1797 = vmatpush1.bf16.msra.mxu0 0
        %1798 = vmatprep.subr.bf16.mxu0 0
        %1799 = vmatpush1.bf16.msra.mxu0 0
        %1800 = vmatprep.subr.bf16.mxu0 0
        %1801 = vmatpush1.bf16.msra.mxu0 0
        %1802 = vmatprep.subr.bf16.mxu0 0
        %1803 = vmatpush1.bf16.msra.mxu0 0
        %1804 = vmatprep.subr.bf16.mxu0 0
        %1805 = vmatpush1.bf16.msra.mxu0 0
        %1806 = vmatprep.subr.bf16.mxu0 0
        %1807 = vmatpush1.bf16.msra.mxu0 0
        %1808 = vmatprep.subr.bf16.mxu0 0
        %1809 = vmatpush1.bf16.msra.mxu0 0
        %1810 = vmatprep.subr.bf16.mxu0 0
        %1811 = vmatpush1.bf16.msra.mxu0 0
        %1812 = vmatprep.subr.bf16.mxu0 0
        %1813 = vmatpush1.bf16.msra.mxu0 0
        %1814 = vmatprep.subr.bf16.mxu0 0
        %1815 = vmatpush1.bf16.msra.mxu0 0
        %1816 = vmatprep.mubr.bf16.mxu0 0
        %1817 = vmatmul.mubr.bf16.gmra.mrb[0].mxu0 %v1431
        %v1818 = vpop.f32.mrb[0].mxu0
        %v1819 = vadd.f32 0.0, %v1818
        %v1820 = vpop.f32.mrb[0].mxu0
        %v1821 = vpop.f32.mrb[0].mxu0
        %v1822 = vadd.f32 0.0, %v1821
        %v1823 = vpop.f32.mrb[0].mxu0
        %1824 = vdwg.mxu0
        %v1825 = vadd.f32 %v1778, %v1819
        %v1826 = vadd.f32 %v1781, %v1822
        %1827 = vmatprep.subr.bf16.mxu0 0
        %1828 = vmatpush1.bf16.msra.mxu0 %v665
        %1829 = vmatprep.subr.bf16.mxu0 0
        %1830 = vmatpush1.bf16.msra.mxu0 %v666
        %1831 = vmatprep.subr.bf16.mxu0 0
        %1832 = vmatpush1.bf16.msra.mxu0 %v667
        %1833 = vmatprep.subr.bf16.mxu0 0
        %1834 = vmatpush1.bf16.msra.mxu0 %v668
        %1835 = vmatprep.subr.bf16.mxu0 0
        %1836 = vmatpush1.bf16.msra.mxu0 0
        %1837 = vmatprep.subr.bf16.mxu0 0
        %1838 = vmatpush1.bf16.msra.mxu0 0
        %1839 = vmatprep.subr.bf16.mxu0 0
        %1840 = vmatpush1.bf16.msra.mxu0 0
        %1841 = vmatprep.subr.bf16.mxu0 0
        %1842 = vmatpush1.bf16.msra.mxu0 0
        %1843 = vmatprep.subr.bf16.mxu0 0
        %1844 = vmatpush1.bf16.msra.mxu0 0
        %1845 = vmatprep.subr.bf16.mxu0 0
        %1846 = vmatpush1.bf16.msra.mxu0 0
        %1847 = vmatprep.subr.bf16.mxu0 0
        %1848 = vmatpush1.bf16.msra.mxu0 0
        %1849 = vmatprep.subr.bf16.mxu0 0
        %1850 = vmatpush1.bf16.msra.mxu0 0
        %1851 = vmatprep.subr.bf16.mxu0 0
        %1852 = vmatpush1.bf16.msra.mxu0 0
        %1853 = vmatprep.subr.bf16.mxu0 0
        %1854 = vmatpush1.bf16.msra.mxu0 0
        %1855 = vmatprep.subr.bf16.mxu0 0
        %1856 = vmatpush1.bf16.msra.mxu0 0
        %1857 = vmatprep.subr.bf16.mxu0 0
        %1858 = vmatpush1.bf16.msra.mxu0 0
        %1859 = vmatprep.mubr.bf16.mxu0 0
        %1860 = vmatmul.mubr.bf16.gmra.mrb[0].mxu0 %v1655
        %v1861 = vpop.f32.mrb[0].mxu0
        %v1862 = vadd.f32 0.0, %v1861
        %v1863 = vpop.f32.mrb[0].mxu0
        %v1864 = vpop.f32.mrb[0].mxu0
        %v1865 = vadd.f32 0.0, %v1864
        %v1866 = vpop.f32.mrb[0].mxu0
        %1867 = vdwg.mxu0
        %v1868 = vadd.f32 %v1825, %v1862
        %v1869 = vadd.f32 %v1826, %v1865
        %s1870 = scalar_lea.vmem %s348, 72 [#allocation2]
        %v1871 = vld [vmem:[%s1870] sm:$0xf]
        %v1872 = vld [vmem:[%s1870 + $0x4] sm:$0xf]
        %v1875 = vunpack.c.l.b16 %v1871
        %v1876 = vunpack.c.l.b16 %v1872
        %v1877 = vpack.c.b16 %v1876, %v1875
        %v1879 = vsel %vm427, %v1877, 0
        %1881 = vmatprep.subr.bf16.mxu0 0
        %1882 = vmatpush1.bf16.msra.mxu0 %v752
        %1883 = vmatprep.subr.bf16.mxu0 0
        %1884 = vmatpush1.bf16.msra.mxu0 %v753
        %1885 = vmatprep.subr.bf16.mxu0 0
        %1886 = vmatpush1.bf16.msra.mxu0 %v754
        %1887 = vmatprep.subr.bf16.mxu0 0
        %1888 = vmatpush1.bf16.msra.mxu0 %v755
        %1889 = vmatprep.subr.bf16.mxu0 0
        %1890 = vmatpush1.bf16.msra.mxu0 0
        %1891 = vmatprep.subr.bf16.mxu0 0
        %1892 = vmatpush1.bf16.msra.mxu0 0
        %1893 = vmatprep.subr.bf16.mxu0 0
        %1894 = vmatpush1.bf16.msra.mxu0 0
        %1895 = vmatprep.subr.bf16.mxu0 0
        %1896 = vmatpush1.bf16.msra.mxu0 0
        %1897 = vmatprep.subr.bf16.mxu0 0
        %1898 = vmatpush1.bf16.msra.mxu0 0
        %1899 = vmatprep.subr.bf16.mxu0 0
        %1900 = vmatpush1.bf16.msra.mxu0 0
        %1901 = vmatprep.subr.bf16.mxu0 0
        %1902 = vmatpush1.bf16.msra.mxu0 0
        %1903 = vmatprep.subr.bf16.mxu0 0
        %1904 = vmatpush1.bf16.msra.mxu0 0
        %1905 = vmatprep.subr.bf16.mxu0 0
        %1906 = vmatpush1.bf16.msra.mxu0 0
        %1907 = vmatprep.subr.bf16.mxu0 0
        %1908 = vmatpush1.bf16.msra.mxu0 0
        %1909 = vmatprep.subr.bf16.mxu0 0
        %1910 = vmatpush1.bf16.msra.mxu0 0
        %1911 = vmatprep.subr.bf16.mxu0 0
        %1912 = vmatpush1.bf16.msra.mxu0 0
        %1913 = vmatprep.mubr.bf16.mxu0 0
        %1914 = vmatmul.mubr.bf16.gmra.mrb[0].mxu0 %v1879
        %v1915 = vpop.f32.mrb[0].mxu0
        %v1916 = vadd.f32 0.0, %v1915
        %v1917 = vpop.f32.mrb[0].mxu0
        %v1918 = vpop.f32.mrb[0].mxu0
        %v1919 = vadd.f32 0.0, %v1918
        %v1920 = vpop.f32.mrb[0].mxu0
        %1921 = vdwg.mxu0
        %v1922 = vadd.f32 %v1868, %v1916
        %v1923 = vadd.f32 %v1869, %v1919
        %v1924 = vmax.f32 %v1700, %v1922
        %v1925 = vmax.f32 %v1701, %v1923
        %1926 = vmatprep.subr.bf16.mxu0 0
        %1927 = vmatpush1.bf16.msra.mxu0 %v419
        %1928 = vmatprep.subr.bf16.mxu0 0
        %1929 = vmatpush1.bf16.msra.mxu0 %v420
        %1930 = vmatprep.subr.bf16.mxu0 0
        %1931 = vmatpush1.bf16.msra.mxu0 %v421
        %1932 = vmatprep.subr.bf16.mxu0 0
        %1933 = vmatpush1.bf16.msra.mxu0 %v422
        %1934 = vmatprep.subr.bf16.mxu0 0
        %1935 = vmatpush1.bf16.msra.mxu0 0
        %1936 = vmatprep.subr.bf16.mxu0 0
        %1937 = vmatpush1.bf16.msra.mxu0 0
        %1938 = vmatprep.subr.bf16.mxu0 0
        %1939 = vmatpush1.bf16.msra.mxu0 0
        %1940 = vmatprep.subr.bf16.mxu0 0
        %1941 = vmatpush1.bf16.msra.mxu0 0
        %1942 = vmatprep.subr.bf16.mxu0 0
        %1943 = vmatpush1.bf16.msra.mxu0 0
        %1944 = vmatprep.subr.bf16.mxu0 0
        %1945 = vmatpush1.bf16.msra.mxu0 0
        %1946 = vmatprep.subr.bf16.mxu0 0
        %1947 = vmatpush1.bf16.msra.mxu0 0
        %1948 = vmatprep.subr.bf16.mxu0 0
        %1949 = vmatpush1.bf16.msra.mxu0 0
        %1950 = vmatprep.subr.bf16.mxu0 0
        %1951 = vmatpush1.bf16.msra.mxu0 0
        %1952 = vmatprep.subr.bf16.mxu0 0
        %1953 = vmatpush1.bf16.msra.mxu0 0
        %1954 = vmatprep.subr.bf16.mxu0 0
        %1955 = vmatpush1.bf16.msra.mxu0 0
        %1956 = vmatprep.subr.bf16.mxu0 0
        %1957 = vmatpush1.bf16.msra.mxu0 0
        %1958 = vmatprep.mubr.bf16.mxu0 0
        %1959 = vmatmul.mubr.bf16.gmra.mrb[0].mxu0 %v1431
        %v1960 = vpop.f32.mrb[0].mxu0
        %v1961 = vadd.f32 0.0, %v1960
        %v1962 = vpop.f32.mrb[0].mxu0
        %v1963 = vpop.f32.mrb[0].mxu0
        %v1964 = vadd.f32 0.0, %v1963
        %v1965 = vpop.f32.mrb[0].mxu0
        %1966 = vdwg.mxu0
        %1967 = vmatprep.subr.bf16.mxu0 0
        %1968 = vmatpush1.bf16.msra.mxu0 %v493
        %1969 = vmatprep.subr.bf16.mxu0 0
        %1970 = vmatpush1.bf16.msra.mxu0 %v494
        %1971 = vmatprep.subr.bf16.mxu0 0
        %1972 = vmatpush1.bf16.msra.mxu0 %v495
        %1973 = vmatprep.subr.bf16.mxu0 0
        %1974 = vmatpush1.bf16.msra.mxu0 %v496
        %1975 = vmatprep.subr.bf16.mxu0 0
        %1976 = vmatpush1.bf16.msra.mxu0 0
        %1977 = vmatprep.subr.bf16.mxu0 0
        %1978 = vmatpush1.bf16.msra.mxu0 0
        %1979 = vmatprep.subr.bf16.mxu0 0
        %1980 = vmatpush1.bf16.msra.mxu0 0
        %1981 = vmatprep.subr.bf16.mxu0 0
        %1982 = vmatpush1.bf16.msra.mxu0 0
        %1983 = vmatprep.subr.bf16.mxu0 0
        %1984 = vmatpush1.bf16.msra.mxu0 0
        %1985 = vmatprep.subr.bf16.mxu0 0
        %1986 = vmatpush1.bf16.msra.mxu0 0
        %1987 = vmatprep.subr.bf16.mxu0 0
        %1988 = vmatpush1.bf16.msra.mxu0 0
        %1989 = vmatprep.subr.bf16.mxu0 0
        %1990 = vmatpush1.bf16.msra.mxu0 0
        %1991 = vmatprep.subr.bf16.mxu0 0
        %1992 = vmatpush1.bf16.msra.mxu0 0
        %1993 = vmatprep.subr.bf16.mxu0 0
        %1994 = vmatpush1.bf16.msra.mxu0 0
        %1995 = vmatprep.subr.bf16.mxu0 0
        %1996 = vmatpush1.bf16.msra.mxu0 0
        %1997 = vmatprep.subr.bf16.mxu0 0
        %1998 = vmatpush1.bf16.msra.mxu0 0
        %1999 = vmatprep.mubr.bf16.mxu0 0
        %2000 = vmatmul.mubr.bf16.gmra.mrb[0].mxu0 %v1207
        %v2001 = vpop.f32.mrb[0].mxu0
        %v2002 = vadd.f32 %v1961, %v2001
        %v2003 = vpop.f32.mrb[0].mxu0
        %v2004 = vpop.f32.mrb[0].mxu0
        %v2005 = vadd.f32 %v1964, %v2004
        %v2006 = vpop.f32.mrb[0].mxu0
        %2007 = vdwg.mxu0
        %2008 = vmatprep.subr.bf16.mxu0 0
        %2009 = vmatpush1.bf16.msra.mxu0 %v578
        %2010 = vmatprep.subr.bf16.mxu0 0
        %2011 = vmatpush1.bf16.msra.mxu0 %v579
        %2012 = vmatprep.subr.bf16.mxu0 0
        %2013 = vmatpush1.bf16.msra.mxu0 %v580
        %2014 = vmatprep.subr.bf16.mxu0 0
        %2015 = vmatpush1.bf16.msra.mxu0 %v581
        %2016 = vmatprep.subr.bf16.mxu0 0
        %2017 = vmatpush1.bf16.msra.mxu0 0
        %2018 = vmatprep.subr.bf16.mxu0 0
        %2019 = vmatpush1.bf16.msra.mxu0 0
        %2020 = vmatprep.subr.bf16.mxu0 0
        %2021 = vmatpush1.bf16.msra.mxu0 0
        %2022 = vmatprep.subr.bf16.mxu0 0
        %2023 = vmatpush1.bf16.msra.mxu0 0
        %2024 = vmatprep.subr.bf16.mxu0 0
        %2025 = vmatpush1.bf16.msra.mxu0 0
        %2026 = vmatprep.subr.bf16.mxu0 0
        %2027 = vmatpush1.bf16.msra.mxu0 0
        %2028 = vmatprep.subr.bf16.mxu0 0
        %2029 = vmatpush1.bf16.msra.mxu0 0
        %2030 = vmatprep.subr.bf16.mxu0 0
        %2031 = vmatpush1.bf16.msra.mxu0 0
        %2032 = vmatprep.subr.bf16.mxu0 0
        %2033 = vmatpush1.bf16.msra.mxu0 0
        %2034 = vmatprep.subr.bf16.mxu0 0
        %2035 = vmatpush1.bf16.msra.mxu0 0
        %2036 = vmatprep.subr.bf16.mxu0 0
        %2037 = vmatpush1.bf16.msra.mxu0 0
        %2038 = vmatprep.subr.bf16.mxu0 0
        %2039 = vmatpush1.bf16.msra.mxu0 0
        %2040 = vmatprep.mubr.bf16.mxu0 0
        %2041 = vmatmul.mubr.bf16.gmra.mrb[0].mxu0 %v1655
        %v2042 = vpop.f32.mrb[0].mxu0
        %v2043 = vadd.f32 0.0, %v2042
        %v2044 = vpop.f32.mrb[0].mxu0
        %v2045 = vpop.f32.mrb[0].mxu0
        %v2046 = vadd.f32 0.0, %v2045
        %v2047 = vpop.f32.mrb[0].mxu0
        %2048 = vdwg.mxu0
        %v2049 = vadd.f32 %v2002, %v2043
        %v2050 = vadd.f32 %v2005, %v2046
        %2051 = vmatprep.subr.bf16.mxu0 0
        %2052 = vmatpush1.bf16.msra.mxu0 %v665
        %2053 = vmatprep.subr.bf16.mxu0 0
        %2054 = vmatpush1.bf16.msra.mxu0 %v666
        %2055 = vmatprep.subr.bf16.mxu0 0
        %2056 = vmatpush1.bf16.msra.mxu0 %v667
        %2057 = vmatprep.subr.bf16.mxu0 0
        %2058 = vmatpush1.bf16.msra.mxu0 %v668
        %2059 = vmatprep.subr.bf16.mxu0 0
        %2060 = vmatpush1.bf16.msra.mxu0 0
        %2061 = vmatprep.subr.bf16.mxu0 0
        %2062 = vmatpush1.bf16.msra.mxu0 0
        %2063 = vmatprep.subr.bf16.mxu0 0
        %2064 = vmatpush1.bf16.msra.mxu0 0
        %2065 = vmatprep.subr.bf16.mxu0 0
        %2066 = vmatpush1.bf16.msra.mxu0 0
        %2067 = vmatprep.subr.bf16.mxu0 0
        %2068 = vmatpush1.bf16.msra.mxu0 0
        %2069 = vmatprep.subr.bf16.mxu0 0
        %2070 = vmatpush1.bf16.msra.mxu0 0
        %2071 = vmatprep.subr.bf16.mxu0 0
        %2072 = vmatpush1.bf16.msra.mxu0 0
        %2073 = vmatprep.subr.bf16.mxu0 0
        %2074 = vmatpush1.bf16.msra.mxu0 0
        %2075 = vmatprep.subr.bf16.mxu0 0
        %2076 = vmatpush1.bf16.msra.mxu0 0
        %2077 = vmatprep.subr.bf16.mxu0 0
        %2078 = vmatpush1.bf16.msra.mxu0 0
        %2079 = vmatprep.subr.bf16.mxu0 0
        %2080 = vmatpush1.bf16.msra.mxu0 0
        %2081 = vmatprep.subr.bf16.mxu0 0
        %2082 = vmatpush1.bf16.msra.mxu0 0
        %2083 = vmatprep.mubr.bf16.mxu0 0
        %2084 = vmatmul.mubr.bf16.gmra.mrb[0].mxu0 %v1879
        %v2085 = vpop.f32.mrb[0].mxu0
        %v2086 = vadd.f32 0.0, %v2085
        %v2087 = vpop.f32.mrb[0].mxu0
        %v2088 = vpop.f32.mrb[0].mxu0
        %v2089 = vadd.f32 0.0, %v2088
        %v2090 = vpop.f32.mrb[0].mxu0
        %2091 = vdwg.mxu0
        %v2092 = vadd.f32 %v2049, %v2086
        %v2093 = vadd.f32 %v2050, %v2089
        %s2094 = scalar_lea.vmem %s348, 80 [#allocation2]
        %v2095 = vld [vmem:[%s2094] sm:$0xf]
        %v2096 = vld [vmem:[%s2094 + $0x4] sm:$0xf]
        %v2099 = vunpack.c.l.b16 %v2095
        %v2100 = vunpack.c.l.b16 %v2096
        %v2101 = vpack.c.b16 %v2100, %v2099
        %v2103 = vsel %vm427, %v2101, 0
        %2105 = vmatprep.subr.bf16.mxu0 0
        %2106 = vmatpush1.bf16.msra.mxu0 %v752
        %2107 = vmatprep.subr.bf16.mxu0 0
        %2108 = vmatpush1.bf16.msra.mxu0 %v753
        %2109 = vmatprep.subr.bf16.mxu0 0
        %2110 = vmatpush1.bf16.msra.mxu0 %v754
        %2111 = vmatprep.subr.bf16.mxu0 0
        %2112 = vmatpush1.bf16.msra.mxu0 %v755
        %2113 = vmatprep.subr.bf16.mxu0 0
        %2114 = vmatpush1.bf16.msra.mxu0 0
        %2115 = vmatprep.subr.bf16.mxu0 0
        %2116 = vmatpush1.bf16.msra.mxu0 0
        %2117 = vmatprep.subr.bf16.mxu0 0
        %2118 = vmatpush1.bf16.msra.mxu0 0
        %2119 = vmatprep.subr.bf16.mxu0 0
        %2120 = vmatpush1.bf16.msra.mxu0 0
        %2121 = vmatprep.subr.bf16.mxu0 0
        %2122 = vmatpush1.bf16.msra.mxu0 0
        %2123 = vmatprep.subr.bf16.mxu0 0
        %2124 = vmatpush1.bf16.msra.mxu0 0
        %2125 = vmatprep.subr.bf16.mxu0 0
        %2126 = vmatpush1.bf16.msra.mxu0 0
        %2127 = vmatprep.subr.bf16.mxu0 0
        %2128 = vmatpush1.bf16.msra.mxu0 0
        %2129 = vmatprep.subr.bf16.mxu0 0
        %2130 = vmatpush1.bf16.msra.mxu0 0
        %2131 = vmatprep.subr.bf16.mxu0 0
        %2132 = vmatpush1.bf16.msra.mxu0 0
        %2133 = vmatprep.subr.bf16.mxu0 0
        %2134 = vmatpush1.bf16.msra.mxu0 0
        %2135 = vmatprep.subr.bf16.mxu0 0
        %2136 = vmatpush1.bf16.msra.mxu0 0
        %2137 = vmatprep.mubr.bf16.mxu0 0
        %2138 = vmatmul.mubr.bf16.gmra.mrb[0].mxu0 %v2103
        %v2139 = vpop.f32.mrb[0].mxu0
        %v2140 = vadd.f32 0.0, %v2139
        %v2141 = vpop.f32.mrb[0].mxu0
        %v2142 = vpop.f32.mrb[0].mxu0
        %v2143 = vadd.f32 0.0, %v2142
        %v2144 = vpop.f32.mrb[0].mxu0
        %2145 = vdwg.mxu0
        %v2146 = vadd.f32 %v2092, %v2140
        %v2147 = vadd.f32 %v2093, %v2143
        %v2148 = vmax.f32 %v1924, %v2146
        %v2149 = vmax.f32 %v1925, %v2147
        %2150 = vmatprep.subr.bf16.mxu0 0
        %2151 = vmatpush1.bf16.msra.mxu0 %v419
        %2152 = vmatprep.subr.bf16.mxu0 0
        %2153 = vmatpush1.bf16.msra.mxu0 %v420
        %2154 = vmatprep.subr.bf16.mxu0 0
        %2155 = vmatpush1.bf16.msra.mxu0 %v421
        %2156 = vmatprep.subr.bf16.mxu0 0
        %2157 = vmatpush1.bf16.msra.mxu0 %v422
        %2158 = vmatprep.subr.bf16.mxu0 0
        %2159 = vmatpush1.bf16.msra.mxu0 0
        %2160 = vmatprep.subr.bf16.mxu0 0
        %2161 = vmatpush1.bf16.msra.mxu0 0
        %2162 = vmatprep.subr.bf16.mxu0 0
        %2163 = vmatpush1.bf16.msra.mxu0 0
        %2164 = vmatprep.subr.bf16.mxu0 0
        %2165 = vmatpush1.bf16.msra.mxu0 0
        %2166 = vmatprep.subr.bf16.mxu0 0
        %2167 = vmatpush1.bf16.msra.mxu0 0
        %2168 = vmatprep.subr.bf16.mxu0 0
        %2169 = vmatpush1.bf16.msra.mxu0 0
        %2170 = vmatprep.subr.bf16.mxu0 0
        %2171 = vmatpush1.bf16.msra.mxu0 0
        %2172 = vmatprep.subr.bf16.mxu0 0
        %2173 = vmatpush1.bf16.msra.mxu0 0
        %2174 = vmatprep.subr.bf16.mxu0 0
        %2175 = vmatpush1.bf16.msra.mxu0 0
        %2176 = vmatprep.subr.bf16.mxu0 0
        %2177 = vmatpush1.bf16.msra.mxu0 0
        %2178 = vmatprep.subr.bf16.mxu0 0
        %2179 = vmatpush1.bf16.msra.mxu0 0
        %2180 = vmatprep.subr.bf16.mxu0 0
        %2181 = vmatpush1.bf16.msra.mxu0 0
        %2182 = vmatprep.mubr.bf16.mxu0 0
        %2183 = vmatmul.mubr.bf16.gmra.mrb[0].mxu0 %v1655
        %v2184 = vpop.f32.mrb[0].mxu0
        %v2185 = vadd.f32 0.0, %v2184
        %v2186 = vpop.f32.mrb[0].mxu0
        %v2187 = vpop.f32.mrb[0].mxu0
        %v2188 = vadd.f32 0.0, %v2187
        %v2189 = vpop.f32.mrb[0].mxu0
        %2190 = vdwg.mxu0
        %2191 = vmatprep.subr.bf16.mxu0 0
        %2192 = vmatpush1.bf16.msra.mxu0 %v493
        %2193 = vmatprep.subr.bf16.mxu0 0
        %2194 = vmatpush1.bf16.msra.mxu0 %v494
        %2195 = vmatprep.subr.bf16.mxu0 0
        %2196 = vmatpush1.bf16.msra.mxu0 %v495
        %2197 = vmatprep.subr.bf16.mxu0 0
        %2198 = vmatpush1.bf16.msra.mxu0 %v496
        %2199 = vmatprep.subr.bf16.mxu0 0
        %2200 = vmatpush1.bf16.msra.mxu0 0
        %2201 = vmatprep.subr.bf16.mxu0 0
        %2202 = vmatpush1.bf16.msra.mxu0 0
        %2203 = vmatprep.subr.bf16.mxu0 0
        %2204 = vmatpush1.bf16.msra.mxu0 0
        %2205 = vmatprep.subr.bf16.mxu0 0
        %2206 = vmatpush1.bf16.msra.mxu0 0
        %2207 = vmatprep.subr.bf16.mxu0 0
        %2208 = vmatpush1.bf16.msra.mxu0 0
        %2209 = vmatprep.subr.bf16.mxu0 0
        %2210 = vmatpush1.bf16.msra.mxu0 0
        %2211 = vmatprep.subr.bf16.mxu0 0
        %2212 = vmatpush1.bf16.msra.mxu0 0
        %2213 = vmatprep.subr.bf16.mxu0 0
        %2214 = vmatpush1.bf16.msra.mxu0 0
        %2215 = vmatprep.subr.bf16.mxu0 0
        %2216 = vmatpush1.bf16.msra.mxu0 0
        %2217 = vmatprep.subr.bf16.mxu0 0
        %2218 = vmatpush1.bf16.msra.mxu0 0
        %2219 = vmatprep.subr.bf16.mxu0 0
        %2220 = vmatpush1.bf16.msra.mxu0 0
        %2221 = vmatprep.subr.bf16.mxu0 0
        %2222 = vmatpush1.bf16.msra.mxu0 0
        %2223 = vmatprep.mubr.bf16.mxu0 0
        %2224 = vmatmul.mubr.bf16.gmra.mrb[0].mxu0 %v1431
        %v2225 = vpop.f32.mrb[0].mxu0
        %v2226 = vadd.f32 %v2185, %v2225
        %v2227 = vpop.f32.mrb[0].mxu0
        %v2228 = vpop.f32.mrb[0].mxu0
        %v2229 = vadd.f32 %v2188, %v2228
        %v2230 = vpop.f32.mrb[0].mxu0
        %2231 = vdwg.mxu0
        %2232 = vmatprep.subr.bf16.mxu0 0
        %2233 = vmatpush1.bf16.msra.mxu0 %v578
        %2234 = vmatprep.subr.bf16.mxu0 0
        %2235 = vmatpush1.bf16.msra.mxu0 %v579
        %2236 = vmatprep.subr.bf16.mxu0 0
        %2237 = vmatpush1.bf16.msra.mxu0 %v580
        %2238 = vmatprep.subr.bf16.mxu0 0
        %2239 = vmatpush1.bf16.msra.mxu0 %v581
        %2240 = vmatprep.subr.bf16.mxu0 0
        %2241 = vmatpush1.bf16.msra.mxu0 0
        %2242 = vmatprep.subr.bf16.mxu0 0
        %2243 = vmatpush1.bf16.msra.mxu0 0
        %2244 = vmatprep.subr.bf16.mxu0 0
        %2245 = vmatpush1.bf16.msra.mxu0 0
        %2246 = vmatprep.subr.bf16.mxu0 0
        %2247 = vmatpush1.bf16.msra.mxu0 0
        %2248 = vmatprep.subr.bf16.mxu0 0
        %2249 = vmatpush1.bf16.msra.mxu0 0
        %2250 = vmatprep.subr.bf16.mxu0 0
        %2251 = vmatpush1.bf16.msra.mxu0 0
        %2252 = vmatprep.subr.bf16.mxu0 0
        %2253 = vmatpush1.bf16.msra.mxu0 0
        %2254 = vmatprep.subr.bf16.mxu0 0
        %2255 = vmatpush1.bf16.msra.mxu0 0
        %2256 = vmatprep.subr.bf16.mxu0 0
        %2257 = vmatpush1.bf16.msra.mxu0 0
        %2258 = vmatprep.subr.bf16.mxu0 0
        %2259 = vmatpush1.bf16.msra.mxu0 0
        %2260 = vmatprep.subr.bf16.mxu0 0
        %2261 = vmatpush1.bf16.msra.mxu0 0
        %2262 = vmatprep.subr.bf16.mxu0 0
        %2263 = vmatpush1.bf16.msra.mxu0 0
        %2264 = vmatprep.mubr.bf16.mxu0 0
        %2265 = vmatmul.mubr.bf16.gmra.mrb[0].mxu0 %v1879
        %v2266 = vpop.f32.mrb[0].mxu0
        %v2267 = vadd.f32 0.0, %v2266
        %v2268 = vpop.f32.mrb[0].mxu0
        %v2269 = vpop.f32.mrb[0].mxu0
        %v2270 = vadd.f32 0.0, %v2269
        %v2271 = vpop.f32.mrb[0].mxu0
        %2272 = vdwg.mxu0
        %v2273 = vadd.f32 %v2226, %v2267
        %v2274 = vadd.f32 %v2229, %v2270
        %2275 = vmatprep.subr.bf16.mxu0 0
        %2276 = vmatpush1.bf16.msra.mxu0 %v665
        %2277 = vmatprep.subr.bf16.mxu0 0
        %2278 = vmatpush1.bf16.msra.mxu0 %v666
        %2279 = vmatprep.subr.bf16.mxu0 0
        %2280 = vmatpush1.bf16.msra.mxu0 %v667
        %2281 = vmatprep.subr.bf16.mxu0 0
        %2282 = vmatpush1.bf16.msra.mxu0 %v668
        %2283 = vmatprep.subr.bf16.mxu0 0
        %2284 = vmatpush1.bf16.msra.mxu0 0
        %2285 = vmatprep.subr.bf16.mxu0 0
        %2286 = vmatpush1.bf16.msra.mxu0 0
        %2287 = vmatprep.subr.bf16.mxu0 0
        %2288 = vmatpush1.bf16.msra.mxu0 0
        %2289 = vmatprep.subr.bf16.mxu0 0
        %2290 = vmatpush1.bf16.msra.mxu0 0
        %2291 = vmatprep.subr.bf16.mxu0 0
        %2292 = vmatpush1.bf16.msra.mxu0 0
        %2293 = vmatprep.subr.bf16.mxu0 0
        %2294 = vmatpush1.bf16.msra.mxu0 0
        %2295 = vmatprep.subr.bf16.mxu0 0
        %2296 = vmatpush1.bf16.msra.mxu0 0
        %2297 = vmatprep.subr.bf16.mxu0 0
        %2298 = vmatpush1.bf16.msra.mxu0 0
        %2299 = vmatprep.subr.bf16.mxu0 0
        %2300 = vmatpush1.bf16.msra.mxu0 0
        %2301 = vmatprep.subr.bf16.mxu0 0
        %2302 = vmatpush1.bf16.msra.mxu0 0
        %2303 = vmatprep.subr.bf16.mxu0 0
        %2304 = vmatpush1.bf16.msra.mxu0 0
        %2305 = vmatprep.subr.bf16.mxu0 0
        %2306 = vmatpush1.bf16.msra.mxu0 0
        %2307 = vmatprep.mubr.bf16.mxu0 0
        %2308 = vmatmul.mubr.bf16.gmra.mrb[0].mxu0 %v2103
        %v2309 = vpop.f32.mrb[0].mxu0
        %v2310 = vadd.f32 0.0, %v2309
        %v2311 = vpop.f32.mrb[0].mxu0
        %v2312 = vpop.f32.mrb[0].mxu0
        %v2313 = vadd.f32 0.0, %v2312
        %v2314 = vpop.f32.mrb[0].mxu0
        %2315 = vdwg.mxu0
        %v2316 = vadd.f32 %v2273, %v2310
        %v2317 = vadd.f32 %v2274, %v2313
        %s2318 = scalar_lea.vmem %s348, 88 [#allocation2]
        %v2319 = vld [vmem:[%s2318] sm:$0xf]
        %v2320 = vld [vmem:[%s2318 + $0x4] sm:$0xf]
        %v2323 = vunpack.c.l.b16 %v2319
        %v2324 = vunpack.c.l.b16 %v2320
        %v2325 = vpack.c.b16 %v2324, %v2323
        %v2327 = vsel %vm427, %v2325, 0
        %2329 = vmatprep.subr.bf16.mxu0 0
        %2330 = vmatpush1.bf16.msra.mxu0 %v752
        %2331 = vmatprep.subr.bf16.mxu0 0
        %2332 = vmatpush1.bf16.msra.mxu0 %v753
        %2333 = vmatprep.subr.bf16.mxu0 0
        %2334 = vmatpush1.bf16.msra.mxu0 %v754
        %2335 = vmatprep.subr.bf16.mxu0 0
        %2336 = vmatpush1.bf16.msra.mxu0 %v755
        %2337 = vmatprep.subr.bf16.mxu0 0
        %2338 = vmatpush1.bf16.msra.mxu0 0
        %2339 = vmatprep.subr.bf16.mxu0 0
        %2340 = vmatpush1.bf16.msra.mxu0 0
        %2341 = vmatprep.subr.bf16.mxu0 0
        %2342 = vmatpush1.bf16.msra.mxu0 0
        %2343 = vmatprep.subr.bf16.mxu0 0
        %2344 = vmatpush1.bf16.msra.mxu0 0
        %2345 = vmatprep.subr.bf16.mxu0 0
        %2346 = vmatpush1.bf16.msra.mxu0 0
        %2347 = vmatprep.subr.bf16.mxu0 0
        %2348 = vmatpush1.bf16.msra.mxu0 0
        %2349 = vmatprep.subr.bf16.mxu0 0
        %2350 = vmatpush1.bf16.msra.mxu0 0
        %2351 = vmatprep.subr.bf16.mxu0 0
        %2352 = vmatpush1.bf16.msra.mxu0 0
        %2353 = vmatprep.subr.bf16.mxu0 0
        %2354 = vmatpush1.bf16.msra.mxu0 0
        %2355 = vmatprep.subr.bf16.mxu0 0
        %2356 = vmatpush1.bf16.msra.mxu0 0
        %2357 = vmatprep.subr.bf16.mxu0 0
        %2358 = vmatpush1.bf16.msra.mxu0 0
        %2359 = vmatprep.subr.bf16.mxu0 0
        %2360 = vmatpush1.bf16.msra.mxu0 0
        %2361 = vmatprep.mubr.bf16.mxu0 0
        %2362 = vmatmul.mubr.bf16.gmra.mrb[0].mxu0 %v2327
        %v2363 = vpop.f32.mrb[0].mxu0
        %v2364 = vadd.f32 0.0, %v2363
        %v2365 = vpop.f32.mrb[0].mxu0
        %v2366 = vpop.f32.mrb[0].mxu0
        %v2367 = vadd.f32 0.0, %v2366
        %v2368 = vpop.f32.mrb[0].mxu0
        %2369 = vdwg.mxu0
        %v2370 = vadd.f32 %v2316, %v2364
        %v2371 = vadd.f32 %v2317, %v2367
        %v2372 = vmax.f32 %v2148, %v2370
        %v2373 = vmax.f32 %v2149, %v2371
        %2374 = vmatprep.subr.bf16.mxu0 0
        %2375 = vmatpush1.bf16.msra.mxu0 %v419
        %2376 = vmatprep.subr.bf16.mxu0 0
        %2377 = vmatpush1.bf16.msra.mxu0 %v420
        %2378 = vmatprep.subr.bf16.mxu0 0
        %2379 = vmatpush1.bf16.msra.mxu0 %v421
        %2380 = vmatprep.subr.bf16.mxu0 0
        %2381 = vmatpush1.bf16.msra.mxu0 %v422
        %2382 = vmatprep.subr.bf16.mxu0 0
        %2383 = vmatpush1.bf16.msra.mxu0 0
        %2384 = vmatprep.subr.bf16.mxu0 0
        %2385 = vmatpush1.bf16.msra.mxu0 0
        %2386 = vmatprep.subr.bf16.mxu0 0
        %2387 = vmatpush1.bf16.msra.mxu0 0
        %2388 = vmatprep.subr.bf16.mxu0 0
        %2389 = vmatpush1.bf16.msra.mxu0 0
        %2390 = vmatprep.subr.bf16.mxu0 0
        %2391 = vmatpush1.bf16.msra.mxu0 0
        %2392 = vmatprep.subr.bf16.mxu0 0
        %2393 = vmatpush1.bf16.msra.mxu0 0
        %2394 = vmatprep.subr.bf16.mxu0 0
        %2395 = vmatpush1.bf16.msra.mxu0 0
        %2396 = vmatprep.subr.bf16.mxu0 0
        %2397 = vmatpush1.bf16.msra.mxu0 0
        %2398 = vmatprep.subr.bf16.mxu0 0
        %2399 = vmatpush1.bf16.msra.mxu0 0
        %2400 = vmatprep.subr.bf16.mxu0 0
        %2401 = vmatpush1.bf16.msra.mxu0 0
        %2402 = vmatprep.subr.bf16.mxu0 0
        %2403 = vmatpush1.bf16.msra.mxu0 0
        %2404 = vmatprep.subr.bf16.mxu0 0
        %2405 = vmatpush1.bf16.msra.mxu0 0
        %2406 = vmatprep.mubr.bf16.mxu0 0
        %2407 = vmatmul.mubr.bf16.gmra.mrb[0].mxu0 %v1879
        %v2408 = vpop.f32.mrb[0].mxu0
        %v2409 = vadd.f32 0.0, %v2408
        %v2410 = vpop.f32.mrb[0].mxu0
        %v2411 = vpop.f32.mrb[0].mxu0
        %v2412 = vadd.f32 0.0, %v2411
        %v2413 = vpop.f32.mrb[0].mxu0
        %2414 = vdwg.mxu0
        %2415 = vmatprep.subr.bf16.mxu0 0
        %2416 = vmatpush1.bf16.msra.mxu0 %v493
        %2417 = vmatprep.subr.bf16.mxu0 0
        %2418 = vmatpush1.bf16.msra.mxu0 %v494
        %2419 = vmatprep.subr.bf16.mxu0 0
        %2420 = vmatpush1.bf16.msra.mxu0 %v495
        %2421 = vmatprep.subr.bf16.mxu0 0
        %2422 = vmatpush1.bf16.msra.mxu0 %v496
        %2423 = vmatprep.subr.bf16.mxu0 0
        %2424 = vmatpush1.bf16.msra.mxu0 0
        %2425 = vmatprep.subr.bf16.mxu0 0
        %2426 = vmatpush1.bf16.msra.mxu0 0
        %2427 = vmatprep.subr.bf16.mxu0 0
        %2428 = vmatpush1.bf16.msra.mxu0 0
        %2429 = vmatprep.subr.bf16.mxu0 0
        %2430 = vmatpush1.bf16.msra.mxu0 0
        %2431 = vmatprep.subr.bf16.mxu0 0
        %2432 = vmatpush1.bf16.msra.mxu0 0
        %2433 = vmatprep.subr.bf16.mxu0 0
        %2434 = vmatpush1.bf16.msra.mxu0 0
        %2435 = vmatprep.subr.bf16.mxu0 0
        %2436 = vmatpush1.bf16.msra.mxu0 0
        %2437 = vmatprep.subr.bf16.mxu0 0
        %2438 = vmatpush1.bf16.msra.mxu0 0
        %2439 = vmatprep.subr.bf16.mxu0 0
        %2440 = vmatpush1.bf16.msra.mxu0 0
        %2441 = vmatprep.subr.bf16.mxu0 0
        %2442 = vmatpush1.bf16.msra.mxu0 0
        %2443 = vmatprep.subr.bf16.mxu0 0
        %2444 = vmatpush1.bf16.msra.mxu0 0
        %2445 = vmatprep.subr.bf16.mxu0 0
        %2446 = vmatpush1.bf16.msra.mxu0 0
        %2447 = vmatprep.mubr.bf16.mxu0 0
        %2448 = vmatmul.mubr.bf16.gmra.mrb[0].mxu0 %v1655
        %v2449 = vpop.f32.mrb[0].mxu0
        %v2450 = vadd.f32 %v2409, %v2449
        %v2451 = vpop.f32.mrb[0].mxu0
        %v2452 = vpop.f32.mrb[0].mxu0
        %v2453 = vadd.f32 %v2412, %v2452
        %v2454 = vpop.f32.mrb[0].mxu0
        %2455 = vdwg.mxu0
        %2456 = vmatprep.subr.bf16.mxu0 0
        %2457 = vmatpush1.bf16.msra.mxu0 %v578
        %2458 = vmatprep.subr.bf16.mxu0 0
        %2459 = vmatpush1.bf16.msra.mxu0 %v579
        %2460 = vmatprep.subr.bf16.mxu0 0
        %2461 = vmatpush1.bf16.msra.mxu0 %v580
        %2462 = vmatprep.subr.bf16.mxu0 0
        %2463 = vmatpush1.bf16.msra.mxu0 %v581
        %2464 = vmatprep.subr.bf16.mxu0 0
        %2465 = vmatpush1.bf16.msra.mxu0 0
        %2466 = vmatprep.subr.bf16.mxu0 0
        %2467 = vmatpush1.bf16.msra.mxu0 0
        %2468 = vmatprep.subr.bf16.mxu0 0
        %2469 = vmatpush1.bf16.msra.mxu0 0
        %2470 = vmatprep.subr.bf16.mxu0 0
        %2471 = vmatpush1.bf16.msra.mxu0 0
        %2472 = vmatprep.subr.bf16.mxu0 0
        %2473 = vmatpush1.bf16.msra.mxu0 0
        %2474 = vmatprep.subr.bf16.mxu0 0
        %2475 = vmatpush1.bf16.msra.mxu0 0
        %2476 = vmatprep.subr.bf16.mxu0 0
        %2477 = vmatpush1.bf16.msra.mxu0 0
        %2478 = vmatprep.subr.bf16.mxu0 0
        %2479 = vmatpush1.bf16.msra.mxu0 0
        %2480 = vmatprep.subr.bf16.mxu0 0
        %2481 = vmatpush1.bf16.msra.mxu0 0
        %2482 = vmatprep.subr.bf16.mxu0 0
        %2483 = vmatpush1.bf16.msra.mxu0 0
        %2484 = vmatprep.subr.bf16.mxu0 0
        %2485 = vmatpush1.bf16.msra.mxu0 0
        %2486 = vmatprep.subr.bf16.mxu0 0
        %2487 = vmatpush1.bf16.msra.mxu0 0
        %2488 = vmatprep.mubr.bf16.mxu0 0
        %2489 = vmatmul.mubr.bf16.gmra.mrb[0].mxu0 %v2103
        %v2490 = vpop.f32.mrb[0].mxu0
        %v2491 = vadd.f32 0.0, %v2490
        %v2492 = vpop.f32.mrb[0].mxu0
        %v2493 = vpop.f32.mrb[0].mxu0
        %v2494 = vadd.f32 0.0, %v2493
        %v2495 = vpop.f32.mrb[0].mxu0
        %2496 = vdwg.mxu0
        %v2497 = vadd.f32 %v2450, %v2491
        %v2498 = vadd.f32 %v2453, %v2494
        %2499 = vmatprep.subr.bf16.mxu0 0
        %2500 = vmatpush1.bf16.msra.mxu0 %v665
        %2501 = vmatprep.subr.bf16.mxu0 0
        %2502 = vmatpush1.bf16.msra.mxu0 %v666
        %2503 = vmatprep.subr.bf16.mxu0 0
        %2504 = vmatpush1.bf16.msra.mxu0 %v667
        %2505 = vmatprep.subr.bf16.mxu0 0
        %2506 = vmatpush1.bf16.msra.mxu0 %v668
        %2507 = vmatprep.subr.bf16.mxu0 0
        %2508 = vmatpush1.bf16.msra.mxu0 0
        %2509 = vmatprep.subr.bf16.mxu0 0
        %2510 = vmatpush1.bf16.msra.mxu0 0
        %2511 = vmatprep.subr.bf16.mxu0 0
        %2512 = vmatpush1.bf16.msra.mxu0 0
        %2513 = vmatprep.subr.bf16.mxu0 0
        %2514 = vmatpush1.bf16.msra.mxu0 0
        %2515 = vmatprep.subr.bf16.mxu0 0
        %2516 = vmatpush1.bf16.msra.mxu0 0
        %2517 = vmatprep.subr.bf16.mxu0 0
        %2518 = vmatpush1.bf16.msra.mxu0 0
        %2519 = vmatprep.subr.bf16.mxu0 0
        %2520 = vmatpush1.bf16.msra.mxu0 0
        %2521 = vmatprep.subr.bf16.mxu0 0
        %2522 = vmatpush1.bf16.msra.mxu0 0
        %2523 = vmatprep.subr.bf16.mxu0 0
        %2524 = vmatpush1.bf16.msra.mxu0 0
        %2525 = vmatprep.subr.bf16.mxu0 0
        %2526 = vmatpush1.bf16.msra.mxu0 0
        %2527 = vmatprep.subr.bf16.mxu0 0
        %2528 = vmatpush1.bf16.msra.mxu0 0
        %2529 = vmatprep.subr.bf16.mxu0 0
        %2530 = vmatpush1.bf16.msra.mxu0 0
        %2531 = vmatprep.mubr.bf16.mxu0 0
        %2532 = vmatmul.mubr.bf16.gmra.mrb[0].mxu0 %v2327
        %v2533 = vpop.f32.mrb[0].mxu0
        %v2534 = vadd.f32 0.0, %v2533
        %v2535 = vpop.f32.mrb[0].mxu0
        %v2536 = vpop.f32.mrb[0].mxu0
        %v2537 = vadd.f32 0.0, %v2536
        %v2538 = vpop.f32.mrb[0].mxu0
        %2539 = vdwg.mxu0
        %v2540 = vadd.f32 %v2497, %v2534
        %v2541 = vadd.f32 %v2498, %v2537
        %s2542 = scalar_lea.vmem %s348, 96 [#allocation2]
        %v2543 = vld [vmem:[%s2542] sm:$0xf]
        %v2544 = vld [vmem:[%s2542 + $0x4] sm:$0xf]
        %v2547 = vunpack.c.l.b16 %v2543
        %v2548 = vunpack.c.l.b16 %v2544
        %v2549 = vpack.c.b16 %v2548, %v2547
        %v2551 = vsel %vm427, %v2549, 0
        %2553 = vmatprep.subr.bf16.mxu0 0
        %2554 = vmatpush1.bf16.msra.mxu0 %v752
        %2555 = vmatprep.subr.bf16.mxu0 0
        %2556 = vmatpush1.bf16.msra.mxu0 %v753
        %2557 = vmatprep.subr.bf16.mxu0 0
        %2558 = vmatpush1.bf16.msra.mxu0 %v754
        %2559 = vmatprep.subr.bf16.mxu0 0
        %2560 = vmatpush1.bf16.msra.mxu0 %v755
        %2561 = vmatprep.subr.bf16.mxu0 0
        %2562 = vmatpush1.bf16.msra.mxu0 0
        %2563 = vmatprep.subr.bf16.mxu0 0
        %2564 = vmatpush1.bf16.msra.mxu0 0
        %2565 = vmatprep.subr.bf16.mxu0 0
        %2566 = vmatpush1.bf16.msra.mxu0 0
        %2567 = vmatprep.subr.bf16.mxu0 0
        %2568 = vmatpush1.bf16.msra.mxu0 0
        %2569 = vmatprep.subr.bf16.mxu0 0
        %2570 = vmatpush1.bf16.msra.mxu0 0
        %2571 = vmatprep.subr.bf16.mxu0 0
        %2572 = vmatpush1.bf16.msra.mxu0 0
        %2573 = vmatprep.subr.bf16.mxu0 0
        %2574 = vmatpush1.bf16.msra.mxu0 0
        %2575 = vmatprep.subr.bf16.mxu0 0
        %2576 = vmatpush1.bf16.msra.mxu0 0
        %2577 = vmatprep.subr.bf16.mxu0 0
        %2578 = vmatpush1.bf16.msra.mxu0 0
        %2579 = vmatprep.subr.bf16.mxu0 0
        %2580 = vmatpush1.bf16.msra.mxu0 0
        %2581 = vmatprep.subr.bf16.mxu0 0
        %2582 = vmatpush1.bf16.msra.mxu0 0
        %2583 = vmatprep.subr.bf16.mxu0 0
        %2584 = vmatpush1.bf16.msra.mxu0 0
        %2585 = vmatprep.mubr.bf16.mxu0 0
        %2586 = vmatmul.mubr.bf16.gmra.mrb[0].mxu0 %v2551
        %v2587 = vpop.f32.mrb[0].mxu0
        %v2588 = vadd.f32 0.0, %v2587
        %v2589 = vpop.f32.mrb[0].mxu0
        %v2590 = vpop.f32.mrb[0].mxu0
        %v2591 = vadd.f32 0.0, %v2590
        %v2592 = vpop.f32.mrb[0].mxu0
        %2593 = vdwg.mxu0
        %v2594 = vadd.f32 %v2540, %v2588
        %v2595 = vadd.f32 %v2541, %v2591
        %v2596 = vmax.f32 %v2372, %v2594
        %v2597 = vmax.f32 %v2373, %v2595
        %2598 = vmatprep.subr.bf16.mxu0 0
        %2599 = vmatpush1.bf16.msra.mxu0 %v419
        %2600 = vmatprep.subr.bf16.mxu0 0
        %2601 = vmatpush1.bf16.msra.mxu0 %v420
        %2602 = vmatprep.subr.bf16.mxu0 0
        %2603 = vmatpush1.bf16.msra.mxu0 %v421
        %2604 = vmatprep.subr.bf16.mxu0 0
        %2605 = vmatpush1.bf16.msra.mxu0 %v422
        %2606 = vmatprep.subr.bf16.mxu0 0
        %2607 = vmatpush1.bf16.msra.mxu0 0
        %2608 = vmatprep.subr.bf16.mxu0 0
        %2609 = vmatpush1.bf16.msra.mxu0 0
        %2610 = vmatprep.subr.bf16.mxu0 0
        %2611 = vmatpush1.bf16.msra.mxu0 0
        %2612 = vmatprep.subr.bf16.mxu0 0
        %2613 = vmatpush1.bf16.msra.mxu0 0
        %2614 = vmatprep.subr.bf16.mxu0 0
        %2615 = vmatpush1.bf16.msra.mxu0 0
        %2616 = vmatprep.subr.bf16.mxu0 0
        %2617 = vmatpush1.bf16.msra.mxu0 0
        %2618 = vmatprep.subr.bf16.mxu0 0
        %2619 = vmatpush1.bf16.msra.mxu0 0
        %2620 = vmatprep.subr.bf16.mxu0 0
        %2621 = vmatpush1.bf16.msra.mxu0 0
        %2622 = vmatprep.subr.bf16.mxu0 0
        %2623 = vmatpush1.bf16.msra.mxu0 0
        %2624 = vmatprep.subr.bf16.mxu0 0
        %2625 = vmatpush1.bf16.msra.mxu0 0
        %2626 = vmatprep.subr.bf16.mxu0 0
        %2627 = vmatpush1.bf16.msra.mxu0 0
        %2628 = vmatprep.subr.bf16.mxu0 0
        %2629 = vmatpush1.bf16.msra.mxu0 0
        %2630 = vmatprep.mubr.bf16.mxu0 0
        %2631 = vmatmul.mubr.bf16.gmra.mrb[0].mxu0 %v2103
        %v2632 = vpop.f32.mrb[0].mxu0
        %v2633 = vadd.f32 0.0, %v2632
        %v2634 = vpop.f32.mrb[0].mxu0
        %v2635 = vpop.f32.mrb[0].mxu0
        %v2636 = vadd.f32 0.0, %v2635
        %v2637 = vpop.f32.mrb[0].mxu0
        %2638 = vdwg.mxu0
        %2639 = vmatprep.subr.bf16.mxu0 0
        %2640 = vmatpush1.bf16.msra.mxu0 %v493
        %2641 = vmatprep.subr.bf16.mxu0 0
        %2642 = vmatpush1.bf16.msra.mxu0 %v494
        %2643 = vmatprep.subr.bf16.mxu0 0
        %2644 = vmatpush1.bf16.msra.mxu0 %v495
        %2645 = vmatprep.subr.bf16.mxu0 0
        %2646 = vmatpush1.bf16.msra.mxu0 %v496
        %2647 = vmatprep.subr.bf16.mxu0 0
        %2648 = vmatpush1.bf16.msra.mxu0 0
        %2649 = vmatprep.subr.bf16.mxu0 0
        %2650 = vmatpush1.bf16.msra.mxu0 0
        %2651 = vmatprep.subr.bf16.mxu0 0
        %2652 = vmatpush1.bf16.msra.mxu0 0
        %2653 = vmatprep.subr.bf16.mxu0 0
        %2654 = vmatpush1.bf16.msra.mxu0 0
        %2655 = vmatprep.subr.bf16.mxu0 0
        %2656 = vmatpush1.bf16.msra.mxu0 0
        %2657 = vmatprep.subr.bf16.mxu0 0
        %2658 = vmatpush1.bf16.msra.mxu0 0
        %2659 = vmatprep.subr.bf16.mxu0 0
        %2660 = vmatpush1.bf16.msra.mxu0 0
        %2661 = vmatprep.subr.bf16.mxu0 0
        %2662 = vmatpush1.bf16.msra.mxu0 0
        %2663 = vmatprep.subr.bf16.mxu0 0
        %2664 = vmatpush1.bf16.msra.mxu0 0
        %2665 = vmatprep.subr.bf16.mxu0 0
        %2666 = vmatpush1.bf16.msra.mxu0 0
        %2667 = vmatprep.subr.bf16.mxu0 0
        %2668 = vmatpush1.bf16.msra.mxu0 0
        %2669 = vmatprep.subr.bf16.mxu0 0
        %2670 = vmatpush1.bf16.msra.mxu0 0
        %2671 = vmatprep.mubr.bf16.mxu0 0
        %2672 = vmatmul.mubr.bf16.gmra.mrb[0].mxu0 %v1879
        %v2673 = vpop.f32.mrb[0].mxu0
        %v2674 = vadd.f32 %v2633, %v2673
        %v2675 = vpop.f32.mrb[0].mxu0
        %v2676 = vpop.f32.mrb[0].mxu0
        %v2677 = vadd.f32 %v2636, %v2676
        %v2678 = vpop.f32.mrb[0].mxu0
        %2679 = vdwg.mxu0
        %2680 = vmatprep.subr.bf16.mxu0 0
        %2681 = vmatpush1.bf16.msra.mxu0 %v578
        %2682 = vmatprep.subr.bf16.mxu0 0
        %2683 = vmatpush1.bf16.msra.mxu0 %v579
        %2684 = vmatprep.subr.bf16.mxu0 0
        %2685 = vmatpush1.bf16.msra.mxu0 %v580
        %2686 = vmatprep.subr.bf16.mxu0 0
        %2687 = vmatpush1.bf16.msra.mxu0 %v581
        %2688 = vmatprep.subr.bf16.mxu0 0
        %2689 = vmatpush1.bf16.msra.mxu0 0
        %2690 = vmatprep.subr.bf16.mxu0 0
        %2691 = vmatpush1.bf16.msra.mxu0 0
        %2692 = vmatprep.subr.bf16.mxu0 0
        %2693 = vmatpush1.bf16.msra.mxu0 0
        %2694 = vmatprep.subr.bf16.mxu0 0
        %2695 = vmatpush1.bf16.msra.mxu0 0
        %2696 = vmatprep.subr.bf16.mxu0 0
        %2697 = vmatpush1.bf16.msra.mxu0 0
        %2698 = vmatprep.subr.bf16.mxu0 0
        %2699 = vmatpush1.bf16.msra.mxu0 0
        %2700 = vmatprep.subr.bf16.mxu0 0
        %2701 = vmatpush1.bf16.msra.mxu0 0
        %2702 = vmatprep.subr.bf16.mxu0 0
        %2703 = vmatpush1.bf16.msra.mxu0 0
        %2704 = vmatprep.subr.bf16.mxu0 0
        %2705 = vmatpush1.bf16.msra.mxu0 0
        %2706 = vmatprep.subr.bf16.mxu0 0
        %2707 = vmatpush1.bf16.msra.mxu0 0
        %2708 = vmatprep.subr.bf16.mxu0 0
        %2709 = vmatpush1.bf16.msra.mxu0 0
        %2710 = vmatprep.subr.bf16.mxu0 0
        %2711 = vmatpush1.bf16.msra.mxu0 0
        %2712 = vmatprep.mubr.bf16.mxu0 0
        %2713 = vmatmul.mubr.bf16.gmra.mrb[0].mxu0 %v2327
        %v2714 = vpop.f32.mrb[0].mxu0
        %v2715 = vadd.f32 0.0, %v2714
        %v2716 = vpop.f32.mrb[0].mxu0
        %v2717 = vpop.f32.mrb[0].mxu0
        %v2718 = vadd.f32 0.0, %v2717
        %v2719 = vpop.f32.mrb[0].mxu0
        %2720 = vdwg.mxu0
        %v2721 = vadd.f32 %v2674, %v2715
        %v2722 = vadd.f32 %v2677, %v2718
        %2723 = vmatprep.subr.bf16.mxu0 0
        %2724 = vmatpush1.bf16.msra.mxu0 %v665
        %2725 = vmatprep.subr.bf16.mxu0 0
        %2726 = vmatpush1.bf16.msra.mxu0 %v666
        %2727 = vmatprep.subr.bf16.mxu0 0
        %2728 = vmatpush1.bf16.msra.mxu0 %v667
        %2729 = vmatprep.subr.bf16.mxu0 0
        %2730 = vmatpush1.bf16.msra.mxu0 %v668
        %2731 = vmatprep.subr.bf16.mxu0 0
        %2732 = vmatpush1.bf16.msra.mxu0 0
        %2733 = vmatprep.subr.bf16.mxu0 0
        %2734 = vmatpush1.bf16.msra.mxu0 0
        %2735 = vmatprep.subr.bf16.mxu0 0
        %2736 = vmatpush1.bf16.msra.mxu0 0
        %2737 = vmatprep.subr.bf16.mxu0 0
        %2738 = vmatpush1.bf16.msra.mxu0 0
        %2739 = vmatprep.subr.bf16.mxu0 0
        %2740 = vmatpush1.bf16.msra.mxu0 0
        %2741 = vmatprep.subr.bf16.mxu0 0
        %2742 = vmatpush1.bf16.msra.mxu0 0
        %2743 = vmatprep.subr.bf16.mxu0 0
        %2744 = vmatpush1.bf16.msra.mxu0 0
        %2745 = vmatprep.subr.bf16.mxu0 0
        %2746 = vmatpush1.bf16.msra.mxu0 0
        %2747 = vmatprep.subr.bf16.mxu0 0
        %2748 = vmatpush1.bf16.msra.mxu0 0
        %2749 = vmatprep.subr.bf16.mxu0 0
        %2750 = vmatpush1.bf16.msra.mxu0 0
        %2751 = vmatprep.subr.bf16.mxu0 0
        %2752 = vmatpush1.bf16.msra.mxu0 0
        %2753 = vmatprep.subr.bf16.mxu0 0
        %2754 = vmatpush1.bf16.msra.mxu0 0
        %2755 = vmatprep.mubr.bf16.mxu0 0
        %2756 = vmatmul.mubr.bf16.gmra.mrb[0].mxu0 %v2551
        %v2757 = vpop.f32.mrb[0].mxu0
        %v2758 = vadd.f32 0.0, %v2757
        %v2759 = vpop.f32.mrb[0].mxu0
        %v2760 = vpop.f32.mrb[0].mxu0
        %v2761 = vadd.f32 0.0, %v2760
        %v2762 = vpop.f32.mrb[0].mxu0
        %2763 = vdwg.mxu0
        %v2764 = vadd.f32 %v2721, %v2758
        %v2765 = vadd.f32 %v2722, %v2761
        %s2766 = scalar_lea.vmem %s348, 104 [#allocation2]
        %v2767 = vld [vmem:[%s2766] sm:$0xf]
        %v2768 = vld [vmem:[%s2766 + $0x4] sm:$0xf]
        %v2771 = vunpack.c.l.b16 %v2767
        %v2772 = vunpack.c.l.b16 %v2768
        %v2773 = vpack.c.b16 %v2772, %v2771
        %v2775 = vsel %vm427, %v2773, 0
        %2777 = vmatprep.subr.bf16.mxu0 0
        %2778 = vmatpush1.bf16.msra.mxu0 %v752
        %2779 = vmatprep.subr.bf16.mxu0 0
        %2780 = vmatpush1.bf16.msra.mxu0 %v753
        %2781 = vmatprep.subr.bf16.mxu0 0
        %2782 = vmatpush1.bf16.msra.mxu0 %v754
        %2783 = vmatprep.subr.bf16.mxu0 0
        %2784 = vmatpush1.bf16.msra.mxu0 %v755
        %2785 = vmatprep.subr.bf16.mxu0 0
        %2786 = vmatpush1.bf16.msra.mxu0 0
        %2787 = vmatprep.subr.bf16.mxu0 0
        %2788 = vmatpush1.bf16.msra.mxu0 0
        %2789 = vmatprep.subr.bf16.mxu0 0
        %2790 = vmatpush1.bf16.msra.mxu0 0
        %2791 = vmatprep.subr.bf16.mxu0 0
        %2792 = vmatpush1.bf16.msra.mxu0 0
        %2793 = vmatprep.subr.bf16.mxu0 0
        %2794 = vmatpush1.bf16.msra.mxu0 0
        %2795 = vmatprep.subr.bf16.mxu0 0
        %2796 = vmatpush1.bf16.msra.mxu0 0
        %2797 = vmatprep.subr.bf16.mxu0 0
        %2798 = vmatpush1.bf16.msra.mxu0 0
        %2799 = vmatprep.subr.bf16.mxu0 0
        %2800 = vmatpush1.bf16.msra.mxu0 0
        %2801 = vmatprep.subr.bf16.mxu0 0
        %2802 = vmatpush1.bf16.msra.mxu0 0
        %2803 = vmatprep.subr.bf16.mxu0 0
        %2804 = vmatpush1.bf16.msra.mxu0 0
        %2805 = vmatprep.subr.bf16.mxu0 0
        %2806 = vmatpush1.bf16.msra.mxu0 0
        %2807 = vmatprep.subr.bf16.mxu0 0
        %2808 = vmatpush1.bf16.msra.mxu0 0
        %2809 = vmatprep.mubr.bf16.mxu0 0
        %2810 = vmatmul.mubr.bf16.gmra.mrb[0].mxu0 %v2775
        %v2811 = vpop.f32.mrb[0].mxu0
        %v2812 = vadd.f32 0.0, %v2811
        %v2813 = vpop.f32.mrb[0].mxu0
        %v2814 = vpop.f32.mrb[0].mxu0
        %v2815 = vadd.f32 0.0, %v2814
        %v2816 = vpop.f32.mrb[0].mxu0
        %2817 = vdwg.mxu0
        %v2818 = vadd.f32 %v2764, %v2812
        %v2819 = vadd.f32 %v2765, %v2815
        %v2820 = vmax.f32 %v2596, %v2818
        %v2821 = vmax.f32 %v2597, %v2819
        %v2822 = vld [vmem:[%s2] sm:$0x1]
        %v2824 = vlaneseq
        %v2825 = vshrl.u32 %v2824, 7
        %v2826 = vsub.s32 0, %v2825
        %v2827 = vrot.slane %v2822, %v2826
        %v2829 = vadd.f32 %v2820, %v2827
        %v2830 = vadd.f32 %v2821, %v2827
        %v2831 = vmax.f32 %v2829, 0.0
        %v2832 = vmax.f32 %v2830, 0.0
        %v2833 = vpack.c.bf16 %v2832, %v2831
        %v2834 = vld [vmem:[%s3] sm:$0xff]
        %v2835 = vld [vmem:[%s3 + $0x8] sm:$0xff]
        %v2836 = vld [vmem:[%s3 + $0x10] sm:$0xff]
        %v2837 = vld [vmem:[%s3 + $0x18] sm:$0xff]
        %v2838 = vld [vmem:[%s3 + $0x20] sm:$0xff]
        %v2839 = vld [vmem:[%s3 + $0x28] sm:$0xff]
        %v2840 = vld [vmem:[%s3 + $0x30] sm:$0xff]
        %v2841 = vld [vmem:[%s3 + $0x38] sm:$0xff]
        %v2842 = vld [vmem:[%s3 + $0x40] sm:$0xff]
        %v2843 = vld [vmem:[%s3 + $0x48] sm:$0xff]
        %v2844 = vld [vmem:[%s3 + $0x50] sm:$0xff]
        %v2845 = vld [vmem:[%s3 + $0x58] sm:$0xff]
        %v2846 = vld [vmem:[%s3 + $0x60] sm:$0xff]
        %v2847 = vld [vmem:[%s3 + $0x68] sm:$0xff]
        %v2848 = vld [vmem:[%s3 + $0x70] sm:$0xff]
        %v2849 = vld [vmem:[%s3 + $0x78] sm:$0xff]
        %v2850 = vld [vmem:[%s4] sm:$0x3]
        %v2852 = vlaneseq
        %v2853 = vshrl.u32 %v2852, 7
        %v2854 = vsub.s32 0, %v2853
        %v2855 = vrot.slane %v2850, %v2854
        %v2856 = vlaneseq
        %v2857 = vshrl.u32 %v2856, 7
        %v2858 = vsub.s32 1, %v2857
        %v2859 = vrot.slane %v2850, %v2858
        %v2878 = vunpack.c.l.b16 %v2834
        %v2879 = vunpack.c.h.b16 %v2834
        %v2880 = vunpack.c.l.b16 %v2835
        %v2881 = vunpack.c.h.b16 %v2835
        %v2882 = vunpack.c.l.b16 %v2836
        %v2883 = vunpack.c.h.b16 %v2836
        %v2884 = vunpack.c.l.b16 %v2837
        %v2885 = vunpack.c.h.b16 %v2837
        %v2886 = vunpack.c.l.b16 %v2838
        %v2887 = vunpack.c.h.b16 %v2838
        %v2888 = vunpack.c.l.b16 %v2839
        %v2889 = vunpack.c.h.b16 %v2839
        %v2890 = vunpack.c.l.b16 %v2840
        %v2891 = vunpack.c.h.b16 %v2840
        %v2892 = vunpack.c.l.b16 %v2841
        %v2893 = vunpack.c.h.b16 %v2841
        %v2894 = vunpack.c.l.b16 %v2842
        %v2895 = vunpack.c.h.b16 %v2842
        %v2896 = vunpack.c.l.b16 %v2843
        %v2897 = vunpack.c.h.b16 %v2843
        %v2898 = vunpack.c.l.b16 %v2844
        %v2899 = vunpack.c.h.b16 %v2844
        %v2900 = vunpack.c.l.b16 %v2845
        %v2901 = vunpack.c.h.b16 %v2845
        %v2902 = vunpack.c.l.b16 %v2846
        %v2903 = vunpack.c.h.b16 %v2846
        %v2904 = vunpack.c.l.b16 %v2847
        %v2905 = vunpack.c.h.b16 %v2847
        %v2906 = vunpack.c.l.b16 %v2848
        %v2907 = vunpack.c.h.b16 %v2848
        %v2908 = vunpack.c.l.b16 %v2849
        %v2909 = vunpack.c.h.b16 %v2849
        %v2910 = vpack.c.b16 %v2880, %v2878
        %v2911 = vpack.c.b16 %v2881, %v2879
        %v2912 = vpack.c.b16 %v2884, %v2882
        %v2913 = vpack.c.b16 %v2885, %v2883
        %v2914 = vpack.c.b16 %v2888, %v2886
        %v2915 = vpack.c.b16 %v2889, %v2887
        %v2916 = vpack.c.b16 %v2892, %v2890
        %v2917 = vpack.c.b16 %v2893, %v2891
        %v2918 = vpack.c.b16 %v2896, %v2894
        %v2919 = vpack.c.b16 %v2897, %v2895
        %v2920 = vpack.c.b16 %v2900, %v2898
        %v2921 = vpack.c.b16 %v2901, %v2899
        %v2922 = vpack.c.b16 %v2904, %v2902
        %v2923 = vpack.c.b16 %v2905, %v2903
        %v2924 = vpack.c.b16 %v2908, %v2906
        %v2925 = vpack.c.b16 %v2909, %v2907
        %2942 = vmatprep.subr.bf16.mxu0 %v2911
        %2943 = vmatpush1.bf16.msra.mxu0 %v2910
        %2944 = vmatprep.subr.bf16.mxu0 %v2913
        %2945 = vmatpush1.bf16.msra.mxu0 %v2912
        %2946 = vmatprep.subr.bf16.mxu0 %v2915
        %2947 = vmatpush1.bf16.msra.mxu0 %v2914
        %2948 = vmatprep.subr.bf16.mxu0 %v2917
        %2949 = vmatpush1.bf16.msra.mxu0 %v2916
        %2950 = vmatprep.subr.bf16.mxu0 %v2919
        %2951 = vmatpush1.bf16.msra.mxu0 %v2918
        %2952 = vmatprep.subr.bf16.mxu0 %v2921
        %2953 = vmatpush1.bf16.msra.mxu0 %v2920
        %2954 = vmatprep.subr.bf16.mxu0 %v2923
        %2955 = vmatpush1.bf16.msra.mxu0 %v2922
        %2956 = vmatprep.subr.bf16.mxu0 %v2925
        %2957 = vmatpush1.bf16.msra.mxu0 %v2924
        %2958 = vmatprep.subr.bf16.mxu0 0
        %2959 = vmatpush1.bf16.msra.mxu0 0
        %2960 = vmatprep.subr.bf16.mxu0 0
        %2961 = vmatpush1.bf16.msra.mxu0 0
        %2962 = vmatprep.subr.bf16.mxu0 0
        %2963 = vmatpush1.bf16.msra.mxu0 0
        %2964 = vmatprep.subr.bf16.mxu0 0
        %2965 = vmatpush1.bf16.msra.mxu0 0
        %2966 = vmatprep.subr.bf16.mxu0 0
        %2967 = vmatpush1.bf16.msra.mxu0 0
        %2968 = vmatprep.subr.bf16.mxu0 0
        %2969 = vmatpush1.bf16.msra.mxu0 0
        %2970 = vmatprep.subr.bf16.mxu0 0
        %2971 = vmatpush1.bf16.msra.mxu0 0
        %2972 = vmatprep.subr.bf16.mxu0 0
        %2973 = vmatpush1.bf16.msra.mxu0 0
        %2974 = vmatprep.mubr.bf16.mxu0 0
        %2975 = vmatmul.mubr.bf16.gmra.mrb[0].mxu0 %v2833
        %v2976 = vpop.f32.mrb[0].mxu0
        %v2977 = vadd.f32 %v2855, %v2976
        %v2978 = vpop.f32.mrb[0].mxu0
        %v2979 = vadd.f32 %v2859, %v2978
        %v2980 = vpop.f32.mrb[0].mxu0
        %v2981 = vadd.f32 %v2855, %v2980
        %v2982 = vpop.f32.mrb[0].mxu0
        %v2983 = vadd.f32 %v2859, %v2982
        %2984 = vdwg.mxu0
        %v2985 = vmax.f32 %v2977, 0.0
        %v2986 = vmax.f32 %v2981, 0.0
        %v2987 = vxor.u32 %v2979, 2147483648
        %v2988 = vxor.u32 %v2983, 2147483648
        %v2989 = vmul.f32 %v2987, 1.442695
        %v2990 = vpow.pop %v2989
        %v2991 = vmul.f32 %v2988, 1.442695
        %v2992 = vpow.pop %v2991
        %v2993 = vadd.f32 %v2990, 1.0
        %v2994 = vadd.f32 %v2992, 1.0
        %v2995 = vrcp.pop %v2993
        %v2996 = vmul.f32 1.0, %v2995
        %v2997 = vrcp.pop %v2994
        %v2998 = vmul.f32 1.0, %v2997
        %v2999 = vmul.f32 %v2996, %v2985
        %v3000 = vmul.f32 %v2998, %v2986
        %v3001 = vsub.f32 1.0, %v2996
        %v3002 = vsub.f32 1.0, %v2998
        %v3003 = vmul.f32 %v3001, %v2831
        %v3004 = vmul.f32 %v3002, %v2832
        %v3005 = vadd.f32 %v2999, %v3003
        %v3006 = vadd.f32 %v3000, %v3004
        %3007 = vst [vmem:[%s372] sm:$0xff] %v3005
        %3008 = vst [vmem:[%s372 + $0x8] sm:$0xff] %v3006
        %s3009 = sand.u32 %s137, 1
        %s3010 = scalar_lea.sflag [#allocation4], %s3009
        %s3011 = sand.u32 %s137, 1
        %s3012 = smul.addr %s3011, 16
        %s3013 = scalar_lea.vmem [#allocation3], %s3012
        // Predicated region
        $region82: #{model_embeddings_forward.1} parent=76 // pred_check
          %p3014 = pneg %p147
        $region83: #{model_embeddings_forward.1} parent=76 // pred_check_branch
          %3016 = sbr.rel (%p3014) target = $region85
        $region84: #{model_embeddings_forward.1} parent=76 // pred_region
          %s3017 = smul.u32 2, %s19
          %s3019 = ssub.s32 256, 256
          %3020 = vsyncadd %s3010, %s3019
          %s3021 = smul.addr %s3017, 128
          %s3022 = scalar_lea.hbm %s5, %s3021
          %s3023 = sshll.u32 %s3013, 4
          %s3024 = int_to_ptr.vmem [resolvable:$true] %s3023
          %3029 = dma.vmem_to_hbm [thread:$0]  %s3024, 256, %s3022, %s3010, 128, 128, 8
        $region85: #{model_embeddings_forward.1} parent=76 // pred_fallthru
          _
      $region77: #{model_embeddings_forward.1} parent=5 // pred_fallthru
        _
      %p3030 = scmp.le.s32.totalorder 2, %s14
      // Predicated region
      $region86: #{model_embeddings_forward.1} parent=5 // pred_check
        %p3031 = pneg %p3030
      $region87: #{model_embeddings_forward.1} parent=5 // pred_check_branch
        %3033 = sbr.rel (%p3031) target = $region89
      $region88: #{model_embeddings_forward.1} parent=5 // pred_region
        %s3034 = ssub.s32 %s14, 2
        // Predicated region
        $region90: #{model_embeddings_forward.1} parent=88 // pred_check
          %p3035 = pneg %p153
        $region91: #{model_embeddings_forward.1} parent=88 // pred_check_branch
          %3037 = sbr.rel (%p3035) target = $region93
        $region92: #{model_embeddings_forward.1} parent=88 // pred_region
          %s3038 = sand.u32 %s138, 1
          %s3039 = scalar_lea.sflag [#allocation4], %s3038
          %s3040 = sand.u32 %s138, 1
          %s3041 = smul.addr %s3040, 16
          %s3042 = scalar_lea.vmem [#allocation3], %s3041
          %3043 = dma.done %s3039, 256
        $region93: #{model_embeddings_forward.1} parent=88 // pred_fallthru
          _
      $region89: #{model_embeddings_forward.1} parent=5 // pred_fallthru
        _
    $region6: #{model_embeddings_forward.1} parent=1 // loop_footer
      %s18 = sadd.s32 1, %s14
    $region7: #{model_embeddings_forward.1} parent=1 // loop_footer_branch
      %13 = sbr.rel target = $region3
    $region8: #{model_embeddings_forward.1} parent=1 // loop_exit
      _
    %3044 = vsyncpa [#allocation4], 1
    %s3045 = scalar_lea.sflag [#allocation4], 1
    %3046 = vsyncpa %s3045, 1

</llo_original>
